<compile_context>
chip_gen: v7x
topology: tpu7x:2x2x1
jax: 0.10.0
libtpu: 0.0.40
codegen_flags: <defaults>
</compile_context>

<pallas_src>
import functools

import jax
import jax.numpy as jnp
from jax.experimental import pallas as pl
from jax.experimental.pallas import tpu as pltpu


def _round_up(x, m):
    return ((x + m - 1) // m) * m


def _cdiv(a, b):
    return (a + b - 1) // b


# ---------------------------------------------------------------------------
# Kernel
# ---------------------------------------------------------------------------
def grunet_kernel(x_ref,
                  wih0_ref, bih0_ref, whh0_ref, bhh0_ref,
                  wih1_ref, bih1_ref, whh1_ref, bhh1_ref,
                  wlin_ref, blin_ref, wout_ref, bout_ref,
                  out_ref,
                  gi0_ref,
                  *, seq_len, bp, hp, unroll):
    """One batch tile.  All tensors are lane-packed: p batch rows per vreg row,
    hp = p*hid lanes per hidden state, gates laid out gate-major [r|z|n]."""

    # ---- Layer-0 input projections for every timestep: one big MXU matmul ---
    gi0_ref[...] = (jnp.dot(x_ref[...], wih0_ref[...],
                            preferred_element_type=jnp.float32)
                    + bih0_ref[...])

    def gru_step(gi, h, whh_ref, bhh_ref):
        # One fused (bp, hp) @ (hp, 3*hp) matmul for all three gates; r and z
        # go through a single lane-packed sigmoid pass (one EUP stream).
        gh = (jnp.dot(h, whh_ref[...], preferred_element_type=jnp.float32)
              + bhh_ref[...])
        rz = jax.nn.sigmoid(gi[:, :2 * hp] + gh[:, :2 * hp])
        r = rz[:, :hp]
        z = rz[:, hp:]
        n = jnp.tanh(gi[:, 2 * hp:] + r * gh[:, 2 * hp:])   # torch GRU: r*(W_hn h + b_hn)
        return (1.0 - z) * n + z * h

    def l0_step(t, h0):
        row = pl.multiple_of(t * bp, bp)
        return gru_step(gi0_ref[pl.ds(row, bp), :], h0, whh0_ref, bhh0_ref)

    def l1_step_and_head(t, h0_t, h1_prev, acc):
        # Layer-1 GRU step t fed by layer-0's hidden h0_t, then the streamed
        # head: relu(Linear(h1_t)) scaled by w_out[t] accumulated into acc.
        gi1 = (jnp.dot(h0_t, wih1_ref[...], preferred_element_type=jnp.float32)
               + bih1_ref[...])
        h1_t = gru_step(gi1, h1_prev, whh1_ref, bhh1_ref)
        lin = jnp.maximum(
            jnp.dot(h1_t, wlin_ref[...], preferred_element_type=jnp.float32)
            + blin_ref[...], 0.0)
        return h1_t, acc + lin * wout_ref[t]

    # TODO(synk): nn.GRU dropout(p=0.5) between layers only applies in train
    # mode; eval-mode semantics (no dropout) are implemented here.

    h_zero = jnp.zeros((bp, hp), jnp.float32)
    acc0 = jnp.zeros((bp, wlin_ref.shape[-1]), jnp.float32)

    # Software-pipelined recurrence: at iteration t, layer 1 (+ head) consumes
    # h0_{t-1} while layer 0 advances to h0_t.  The two chains are independent
    # within one iteration, so their MXU/EUP latencies overlap.
    h0 = l0_step(0, h_zero)

    def body(t, carry):
        h0_prev, h1_prev, acc = carry
        h1_new, acc_new = l1_step_and_head(t - 1, h0_prev, h1_prev, acc)
        h0_new = l0_step(t, h0_prev)
        return h0_new, h1_new, acc_new

    h0, h1, acc = jax.lax.fori_loop(1, seq_len, body, (h0, h_zero, acc0),
                                    unroll=unroll)
    _, acc = l1_step_and_head(seq_len - 1, h0, h1, acc)    # pipeline drain

    # Seq-mixing bias + final ReLU; p*o_slot is a multiple of 128 -> lane-dense
    # unmasked store.  Lane padding / padded batch rows are sliced off outside.
    out_ref[...] = jnp.maximum(acc + bout_ref[0], 0.0)


# ---------------------------------------------------------------------------
# Weight packing (gate fusion + lane packing with slot-block-diagonal layout)
# ---------------------------------------------------------------------------
def _pack_gru_weight(w, p):
    """torch GRU weight (3H, in) -> (p*in, 3*p*H): gate-major columns, block
    diagonal across the p packed batch slots."""
    three_h, in_dim = w.shape
    h = three_h // 3
    wgt = jnp.transpose(w.astype(jnp.float32).reshape(3, h, in_dim), (0, 2, 1))
    eye = jnp.eye(p, dtype=jnp.float32)
    blocks = jnp.einsum('ab,gik->gaibk', eye, wgt)          # (3, p, in, p, H)
    return (blocks.reshape(3, p * in_dim, p * h)
                  .transpose(1, 0, 2)
                  .reshape(p * in_dim, 3 * p * h))


def _pack_gru_bias(b, p):
    h = b.shape[0] // 3
    return jnp.tile(b.astype(jnp.float32).reshape(3, 1, h),
                    (1, p, 1)).reshape(1, 3 * p * h)


def _pack_head(w_lin, b_lin, p, o_slot):
    out_size, h = w_lin.shape
    wt = jnp.pad(w_lin.T.astype(jnp.float32), ((0, 0), (0, o_slot - out_size)))
    eye = jnp.eye(p, dtype=jnp.float32)
    w_packed = jnp.einsum('ab,ho->ahbo', eye, wt).reshape(p * h, p * o_slot)
    b_packed = jnp.tile(jnp.pad(b_lin.astype(jnp.float32),
                                (0, o_slot - out_size)).reshape(1, o_slot),
                        (1, p))
    return w_packed, b_packed


# ---------------------------------------------------------------------------
# Tiling / VMEM budget
# ---------------------------------------------------------------------------
def _vmem_budget_bytes():
    try:
        cap = int(pltpu.get_tpu_info().vmem_capacity_bytes)
    except Exception:
        cap = 64 * 1024 * 1024          # conservative: v7x per-TensorCore VMEM
    return int(cap * 3 // 4)            # ~48 MiB on v7x, ~96 MiB on v5e/v6e


def _min_grid_tiles():
    # v7x has 2 TensorCores per chip: give the "parallel" batch axis >= 2 tiles
    # so both cores do work.  Single-TC chips keep one big tile.
    try:
        kind = jax.devices()[0].device_kind.lower()
        return 2 if '7' in kind else 1
    except Exception:
        return 1


def _choose_tiling(bflat, seq_len, feat, hid, out_size):
    if hid <= 128 and 128 % hid == 0:
        p = 128 // hid                   # lane-packing factor (4 for hid=32)
    else:
        p = 1
    hp = p * hid
    o_slot = _round_up(out_size, max(1, 128 // p))   # p*o_slot multiple of 128
    b_unit = 8 * p                       # b_tile granularity (bp multiple of 8)
    budget = _vmem_budget_bytes()

    # Bytes that scale with packed rows per tile (bp): double-buffered x block,
    # the (T*bp, 3*hp) gi scratch, and the double-buffered output block.
    per_bp = 4 * (2 * seq_len * p * feat + seq_len * 3 * hp + 2 * p * o_slot)
    weights = 2 * 4 * (p * feat * 3 * hp + 3 * hp * 3 * hp
                       + hp * p * o_slot + 4 * 3 * hp + 2 * p * o_slot)
    bp_cap = max(8, (budget - weights - (2 << 20)) // per_bp)
    bp_cap = max(8, (bp_cap // 8) * 8)
    b_cap = bp_cap * p

    b_ceil = _round_up(bflat, b_unit)
    num_tiles = max(_min_grid_tiles(), _cdiv(b_ceil, b_cap))
    num_tiles = max(1, min(num_tiles, b_ceil // b_unit))
    b_tile = _round_up(_cdiv(b_ceil, num_tiles), b_unit)
    num_tiles = _cdiv(b_ceil, b_tile)
    return p, hp, o_slot, b_tile, num_tiles, budget


# ---------------------------------------------------------------------------
# Forward wrapper
# ---------------------------------------------------------------------------
def grunet_forward(x, params, seq_length):
    """x: (B, T, nx, nd) float32 -> (B, nx, nd) (requires output_size == nx*nd)."""
    nx, nd = x.shape[-2], x.shape[-1]
    feat = nx * nd
    T = seq_length
    xr = x.reshape(-1, T, feat).astype(jnp.float32)     # matches torch .view
    bflat = xr.shape[0]
    out_size = params['w_lin'].shape[0]
    hid = params['w_hh0'].shape[1]

    p, hp, o_slot, b_tile, num_tiles, vmem_budget = _choose_tiling(
        bflat, T, feat, hid, out_size)
    bp = b_tile // p
    b_pad = b_tile * num_tiles
    if b_pad != bflat:
        xr = jnp.pad(xr, ((0, b_pad - bflat), (0, 0), (0, 0)))

    # Lane-packed, time-major layout: packed row (t*bp + i) of tile k holds
    # batch rows k*b_tile + i*p + j at lanes [j*feat, (j+1)*feat).
    xk = (xr.reshape(num_tiles, bp, p, T, feat)
            .transpose(0, 3, 1, 2, 4)
            .reshape(num_tiles, T * bp, p * feat))

    # NOTE: operands are kept f32 to match the torch reference exactly; a bf16
    # cast of the hoisted matmul operands (f32 accumulation) would add ~3x MXU
    # throughput on v6e/v7x at the cost of small numeric drift.
    wlin_p, blin_p = _pack_head(params['w_lin'], params['b_lin'], p, o_slot)
    inputs = [
        xk,
        _pack_gru_weight(params['w_ih0'], p), _pack_gru_bias(params['b_ih0'], p),
        _pack_gru_weight(params['w_hh0'], p), _pack_gru_bias(params['b_hh0'], p),
        _pack_gru_weight(params['w_ih1'], p), _pack_gru_bias(params['b_ih1'], p),
        _pack_gru_weight(params['w_hh1'], p), _pack_gru_bias(params['b_hh1'], p),
        wlin_p, blin_p,
        params['w_out'].reshape(-1).astype(jnp.float32),   # (T,)  SMEM
        params['b_out'].astype(jnp.float32),               # (1,)  SMEM
    ]

    def const(shape):            # resident weight: same block every grid step
        return pl.BlockSpec(shape, lambda i, _n=len(shape): (0,) * _n)

    smem = pl.BlockSpec(memory_space=pltpu.MemorySpace.SMEM)
    g_lanes = 3 * hp
    in_specs = [
        pl.BlockSpec((pl.Squeezed(), T * bp, p * feat), lambda i: (i, 0, 0)),
        const((p * feat, g_lanes)), const((1, g_lanes)),
        const((hp, g_lanes)), const((1, g_lanes)),
        const((hp, g_lanes)), const((1, g_lanes)),
        const((hp, g_lanes)), const((1, g_lanes)),
        const((hp, p * o_slot)), const((1, p * o_slot)),
        smem, smem,
    ]

    kernel = functools.partial(
        grunet_kernel, seq_len=T, bp=bp, hp=hp,
        unroll=True if T <= 16 else 4)   # partial unroll for long sequences

    out = pl.pallas_call(
        kernel,
        out_shape=jax.ShapeDtypeStruct((num_tiles * bp, p * o_slot), jnp.float32),
        grid=(num_tiles,),
        in_specs=in_specs,
        out_specs=pl.BlockSpec((bp, p * o_slot), lambda i: (i, 0)),
        scratch_shapes=[
            pltpu.VMEM((T * bp, g_lanes), jnp.float32),   # layer-0 gate inputs
        ],
        compiler_params=pltpu.CompilerParams(
            dimension_semantics=("parallel",),
            vmem_limit_bytes=vmem_budget),
    )(*inputs)

    # Un-pack lanes -> batch rows, drop lane / batch padding.
    y = out.reshape(num_tiles * bp * p, o_slot)[:bflat, :out_size]
    return y.reshape(-1, nx, nd)


# ---------------------------------------------------------------------------
# Pure-JAX reference (mirrors torch eval-mode forward) for validation
# ---------------------------------------------------------------------------
def grunet_reference(x, params, seq_length):
    nx, nd = x.shape[-2], x.shape[-1]
    feat = nx * nd
    xr = x.reshape(-1, seq_length, feat).astype(jnp.float32)

    def gru_layer(inp, w_ih, w_hh, b_ih, b_hh):
        hid = w_hh.shape[1]

        def step(h, x_t):
            gi = x_t @ w_ih.T + b_ih
            gh = h @ w_hh.T + b_hh
            i_r, i_z, i_n = jnp.split(gi, 3, axis=-1)
            h_r, h_z, h_n = jnp.split(gh, 3, axis=-1)
            r = jax.nn.sigmoid(i_r + h_r)
            z = jax.nn.sigmoid(i_z + h_z)
            n = jnp.tanh(i_n + r * h_n)
            h_new = (1.0 - z) * n + z * h
            return h_new, h_new

        h0 = jnp.zeros((inp.shape[0], hid), jnp.float32)
        _, hs = jax.lax.scan(step, h0, jnp.swapaxes(inp, 0, 1))
        return jnp.swapaxes(hs, 0, 1)

    h1 = gru_layer(xr, params['w_ih0'], params['w_hh0'],
                   params['b_ih0'], params['b_hh0'])
    h2 = gru_layer(h1, params['w_ih1'], params['w_hh1'],
                   params['b_ih1'], params['b_hh1'])
    lin = jax.nn.relu(jnp.einsum('bth,oh->bto', h2, params['w_lin'])
                      + params['b_lin'])
    mixed = jnp.einsum('bto,t->bo', lin, params['w_out'][0]) + params['b_out'][0]
    return jax.nn.relu(mixed).reshape(-1, nx, nd)


# ---------------------------------------------------------------------------
# Parameter init matching the torch module's init_weight / defaults
# ---------------------------------------------------------------------------
def init_params(key, input_size, hid_size, output_size, seq_length):
    ks = jax.random.split(key, 12)

    def xavier_normal(k, shape):
        fan_out, fan_in = shape
        std = (2.0 / (fan_in + fan_out)) ** 0.5
        return std * jax.random.normal(k, shape, jnp.float32)

    def xavier_uniform(k, shape):
        fan_out, fan_in = shape
        a = (6.0 / (fan_in + fan_out)) ** 0.5
        return jax.random.uniform(k, shape, jnp.float32, -a, a)

    def gru_bias(k, n):
        bound = 1.0 / (hid_size ** 0.5)
        return jax.random.uniform(k, (n,), jnp.float32, -bound, bound)

    g = 3 * hid_size
    return {
        # GRU layer 0
        'w_ih0': xavier_normal(ks[0], (g, input_size)),
        'w_hh0': xavier_normal(ks[1], (g, hid_size)),
        'b_ih0': gru_bias(ks[2], g),
        'b_hh0': gru_bias(ks[3], g),
        # GRU layer 1
        'w_ih1': xavier_normal(ks[4], (g, hid_size)),
        'w_hh1': xavier_normal(ks[5], (g, hid_size)),
        'b_ih1': gru_bias(ks[6], g),
        'b_hh1': gru_bias(ks[7], g),
        # linear: hid_size -> output_size (bias filled with 0 in the module)
        'w_lin': xavier_uniform(ks[8], (output_size, hid_size)),
        'b_lin': jnp.zeros((output_size,), jnp.float32),
        # out: seq_length -> 1 (bias filled with 0 in the module)
        'w_out': xavier_uniform(ks[9], (1, seq_length)),
        'b_out': jnp.zeros((1,), jnp.float32),
    }


if __name__ == "__main__":
    # Small, self-consistent shapes: input_size = nx*nd, output_size = nx*nd.
    B, T, nx, nd = 2, 8, 4, 4
    input_size = nx * nd            # 16
    hid_size = 32
    output_size = nx * nd           # 16, so the final view(-1, nx, nd) works

    key = jax.random.PRNGKey(0)
    kx, kp = jax.random.split(key)
    x = jax.random.normal(kx, (B, T, nx, nd), jnp.float32)
    params = init_params(kp, input_size, hid_size, output_size, T)

    fwd = jax.jit(functools.partial(grunet_forward, seq_length=T))
    y = jax.block_until_ready(fwd(x, params))
    assert y.shape == (B, nx, nd), y.shape
    assert bool(jnp.all(jnp.isfinite(y)))

    y_ref = jax.jit(functools.partial(grunet_reference, seq_length=T))(x, params)
    err = float(jnp.max(jnp.abs(y - y_ref)))
    assert err < 5e-3, f"max abs error vs reference: {err}"
    print("KERNEL_OK")
</pallas_src>

<mosaic_0001>
module attributes {stable_mosaic.version = 11 : i64} {
  func.func @grunet_kernel(%arg0: i32, %arg1: memref<1x64x64xf32, #tpu.memory_space<vmem>>, %arg2: memref<64x384xf32, #tpu.memory_space<vmem>>, %arg3: memref<1x384xf32, #tpu.memory_space<vmem>>, %arg4: memref<128x384xf32, #tpu.memory_space<vmem>>, %arg5: memref<1x384xf32, #tpu.memory_space<vmem>>, %arg6: memref<128x384xf32, #tpu.memory_space<vmem>>, %arg7: memref<1x384xf32, #tpu.memory_space<vmem>>, %arg8: memref<128x384xf32, #tpu.memory_space<vmem>>, %arg9: memref<1x384xf32, #tpu.memory_space<vmem>>, %arg10: memref<128x128xf32, #tpu.memory_space<vmem>>, %arg11: memref<1x128xf32, #tpu.memory_space<vmem>>, %arg12: memref<8xf32, #tpu.memory_space<smem>>, %arg13: memref<1xf32, #tpu.memory_space<smem>>, %arg14: memref<8x128xf32, #tpu.memory_space<vmem>>, %arg15: memref<64x384xf32, #tpu.memory_space<vmem>>) attributes {dimension_semantics = [#tpu.dimension_semantics<parallel>], iteration_bounds = array<i64: 1>, scalar_prefetch = 0 : i64, scratch_operands = 1 : i64, tpu.core_type = #tpu.core_type<tc>, window_params = [{transform_indices = @transform_0, window_bounds = array<i64: 1, 64, 64>}, {pipeline_mode = #tpu.pipeline_mode<synchronous>, transform_indices = @transform_1, window_bounds = array<i64: 64, 384>}, {pipeline_mode = #tpu.pipeline_mode<synchronous>, transform_indices = @transform_2, window_bounds = array<i64: 1, 384>}, {pipeline_mode = #tpu.pipeline_mode<synchronous>, transform_indices = @transform_3, window_bounds = array<i64: 128, 384>}, {pipeline_mode = #tpu.pipeline_mode<synchronous>, transform_indices = @transform_4, window_bounds = array<i64: 1, 384>}, {pipeline_mode = #tpu.pipeline_mode<synchronous>, transform_indices = @transform_5, window_bounds = array<i64: 128, 384>}, {pipeline_mode = #tpu.pipeline_mode<synchronous>, transform_indices = @transform_6, window_bounds = array<i64: 1, 384>}, {pipeline_mode = #tpu.pipeline_mode<synchronous>, transform_indices = @transform_7, window_bounds = array<i64: 128, 384>}, {pipeline_mode = #tpu.pipeline_mode<synchronous>, transform_indices = @transform_8, window_bounds = array<i64: 1, 384>}, {pipeline_mode = #tpu.pipeline_mode<synchronous>, transform_indices = @transform_9, window_bounds = array<i64: 128, 128>}, {pipeline_mode = #tpu.pipeline_mode<synchronous>, transform_indices = @transform_10, window_bounds = array<i64: 1, 128>}, {transform_indices = @transform_11, window_bounds = array<i64: 8>}, {transform_indices = @transform_12, window_bounds = array<i64: 1>}, {transform_indices = @transform_13, window_bounds = array<i64: 8, 128>}]} {
    %c0 = arith.constant 0 : index
    %c0_0 = arith.constant 0 : index
    %c0_1 = arith.constant 0 : index
    %0 = vector.load %arg1[%c0, %c0_0, %c0_1] : memref<1x64x64xf32, #tpu.memory_space<vmem>>, vector<1x64x64xf32>
    %1 = vector.shape_cast %0 : vector<1x64x64xf32> to vector<64x64xf32>
    %c0_2 = arith.constant 0 : index
    %c0_3 = arith.constant 0 : index
    %2 = vector.load %arg2[%c0_2, %c0_3] : memref<64x384xf32, #tpu.memory_space<vmem>>, vector<64x384xf32>
    %cst = arith.constant dense<0.000000e+00> : vector<64x384xf32>
    %3 = tpu.matmul %1, %2, %cst {dimension_numbers = #tpu.dot_dimension_numbers<[1], [0], [0], [1], [0, 0, 1, 1], [], []>} : vector<64x64xf32>, vector<64x384xf32>, vector<64x384xf32> -> vector<64x384xf32>
    %c0_4 = arith.constant 0 : index
    %c0_5 = arith.constant 0 : index
    %4 = vector.load %arg3[%c0_4, %c0_5] : memref<1x384xf32, #tpu.memory_space<vmem>>, vector<1x384xf32>
    %5 = vector.broadcast %4 : vector<1x384xf32> to vector<64x384xf32>
    %6 = arith.addf %3, %5 : vector<64x384xf32>
    %c0_6 = arith.constant 0 : index
    %c0_7 = arith.constant 0 : index
    %7 = vector.load %arg15[%c0_6, %c0_7] : memref<64x384xf32, #tpu.memory_space<vmem>>, vector<64x384xf32>
    tpu.vector_store %arg15[%c0_6, %c0_7], %6 {strides = array<i32>} : memref<64x384xf32, #tpu.memory_space<vmem>>, vector<64x384xf32>,
    %cst_8 = arith.constant 0.000000e+00 : f32
    %8 = vector.broadcast %cst_8 : f32 to vector<8x128xf32>
    %cst_9 = arith.constant 0.000000e+00 : f32
    %9 = vector.broadcast %cst_9 : f32 to vector<8x128xf32>
    %c0_i32 = arith.constant 0 : i32
    %10 = tpu.assume_multiple %c0_i32, 8 : i32
    %11 = arith.index_cast %10 : i32 to index
    %c0_10 = arith.constant 0 : index
    %12 = vector.load %arg15[%11, %c0_10] : memref<64x384xf32, #tpu.memory_space<vmem>>, vector<8x384xf32>
    %c0_11 = arith.constant 0 : index
    %c0_12 = arith.constant 0 : index
    %13 = vector.load %arg4[%c0_11, %c0_12] : memref<128x384xf32, #tpu.memory_space<vmem>>, vector<128x384xf32>
    %cst_13 = arith.constant dense<0.000000e+00> : vector<8x384xf32>
    %14 = tpu.matmul %8, %13, %cst_13 {dimension_numbers = #tpu.dot_dimension_numbers<[1], [0], [0], [1], [0, 0, 1, 1], [], []>} : vector<8x128xf32>, vector<128x384xf32>, vector<8x384xf32> -> vector<8x384xf32>
    %c0_14 = arith.constant 0 : index
    %c0_15 = arith.constant 0 : index
    %15 = vector.load %arg5[%c0_14, %c0_15] : memref<1x384xf32, #tpu.memory_space<vmem>>, vector<1x384xf32>
    %16 = vector.broadcast %15 : vector<1x384xf32> to vector<8x384xf32>
    %17 = arith.addf %14, %16 : vector<8x384xf32>
    %18 = vector.extract_strided_slice %12 {offsets = [0, 0], sizes = [8, 256], strides = [1, 1]} : vector<8x384xf32> to vector<8x256xf32>
    %19 = vector.extract_strided_slice %17 {offsets = [0, 0], sizes = [8, 256], strides = [1, 1]} : vector<8x384xf32> to vector<8x256xf32>
    %20 = arith.addf %18, %19 : vector<8x256xf32>
    %21 = arith.negf %20 : vector<8x256xf32>
    %22 = math.exp %21 : vector<8x256xf32>
    %cst_16 = arith.constant 1.000000e+00 : f32
    %23 = vector.broadcast %cst_16 : f32 to vector<8x256xf32>
    %24 = arith.addf %23, %22 : vector<8x256xf32>
    %25 = arith.divf %23, %24 : vector<8x256xf32>
    %26 = vector.extract_strided_slice %25 {offsets = [0, 0], sizes = [8, 128], strides = [1, 1]} : vector<8x256xf32> to vector<8x128xf32>
    %27 = vector.extract_strided_slice %25 {offsets = [0, 128], sizes = [8, 128], strides = [1, 1]} : vector<8x256xf32> to vector<8x128xf32>
    %28 = vector.extract_strided_slice %12 {offsets = [0, 256], sizes = [8, 128], strides = [1, 1]} : vector<8x384xf32> to vector<8x128xf32>
    %29 = vector.extract_strided_slice %17 {offsets = [0, 256], sizes = [8, 128], strides = [1, 1]} : vector<8x384xf32> to vector<8x128xf32>
    %30 = arith.mulf %26, %29 : vector<8x128xf32>
    %31 = arith.addf %28, %30 : vector<8x128xf32>
    %32 = math.tanh %31 : vector<8x128xf32>
    %cst_17 = arith.constant 1.000000e+00 : f32
    %33 = vector.broadcast %cst_17 : f32 to vector<8x128xf32>
    %34 = arith.subf %33, %27 : vector<8x128xf32>
    %35 = arith.mulf %34, %32 : vector<8x128xf32>
    %36 = arith.mulf %27, %8 : vector<8x128xf32>
    %37 = arith.addf %35, %36 : vector<8x128xf32>
    %c1_i32 = arith.constant 1 : i32
    %c1_i32_18 = arith.constant 1 : i32
    %38 = arith.subi %c1_i32, %c1_i32_18 : i32
    %c0_19 = arith.constant 0 : index
    %c0_20 = arith.constant 0 : index
    %39 = vector.load %arg6[%c0_19, %c0_20] : memref<128x384xf32, #tpu.memory_space<vmem>>, vector<128x384xf32>
    %cst_21 = arith.constant dense<0.000000e+00> : vector<8x384xf32>
    %40 = tpu.matmul %37, %39, %cst_21 {dimension_numbers = #tpu.dot_dimension_numbers<[1], [0], [0], [1], [0, 0, 1, 1], [], []>} : vector<8x128xf32>, vector<128x384xf32>, vector<8x384xf32> -> vector<8x384xf32>
    %c0_22 = arith.constant 0 : index
    %c0_23 = arith.constant 0 : index
    %41 = vector.load %arg7[%c0_22, %c0_23] : memref<1x384xf32, #tpu.memory_space<vmem>>, vector<1x384xf32>
    %42 = vector.broadcast %41 : vector<1x384xf32> to vector<8x384xf32>
    %43 = arith.addf %40, %42 : vector<8x384xf32>
    %c0_24 = arith.constant 0 : index
    %c0_25 = arith.constant 0 : index
    %44 = vector.load %arg8[%c0_24, %c0_25] : memref<128x384xf32, #tpu.memory_space<vmem>>, vector<128x384xf32>
    %cst_26 = arith.constant dense<0.000000e+00> : vector<8x384xf32>
    %45 = tpu.matmul %8, %44, %cst_26 {dimension_numbers = #tpu.dot_dimension_numbers<[1], [0], [0], [1], [0, 0, 1, 1], [], []>} : vector<8x128xf32>, vector<128x384xf32>, vector<8x384xf32> -> vector<8x384xf32>
    %c0_27 = arith.constant 0 : index
    %c0_28 = arith.constant 0 : index
    %46 = vector.load %arg9[%c0_27, %c0_28] : memref<1x384xf32, #tpu.memory_space<vmem>>, vector<1x384xf32>
    %47 = vector.broadcast %46 : vector<1x384xf32> to vector<8x384xf32>
    %48 = arith.addf %45, %47 : vector<8x384xf32>
    %49 = vector.extract_strided_slice %43 {offsets = [0, 0], sizes = [8, 256], strides = [1, 1]} : vector<8x384xf32> to vector<8x256xf32>
    %50 = vector.extract_strided_slice %48 {offsets = [0, 0], sizes = [8, 256], strides = [1, 1]} : vector<8x384xf32> to vector<8x256xf32>
    %51 = arith.addf %49, %50 : vector<8x256xf32>
    %52 = arith.negf %51 : vector<8x256xf32>
    %53 = math.exp %52 : vector<8x256xf32>
    %cst_29 = arith.constant 1.000000e+00 : f32
    %54 = vector.broadcast %cst_29 : f32 to vector<8x256xf32>
    %55 = arith.addf %54, %53 : vector<8x256xf32>
    %56 = arith.divf %54, %55 : vector<8x256xf32>
    %57 = vector.extract_strided_slice %56 {offsets = [0, 0], sizes = [8, 128], strides = [1, 1]} : vector<8x256xf32> to vector<8x128xf32>
    %58 = vector.extract_strided_slice %56 {offsets = [0, 128], sizes = [8, 128], strides = [1, 1]} : vector<8x256xf32> to vector<8x128xf32>
    %59 = vector.extract_strided_slice %43 {offsets = [0, 256], sizes = [8, 128], strides = [1, 1]} : vector<8x384xf32> to vector<8x128xf32>
    %60 = vector.extract_strided_slice %48 {offsets = [0, 256], sizes = [8, 128], strides = [1, 1]} : vector<8x384xf32> to vector<8x128xf32>
    %61 = arith.mulf %57, %60 : vector<8x128xf32>
    %62 = arith.addf %59, %61 : vector<8x128xf32>
    %63 = math.tanh %62 : vector<8x128xf32>
    %cst_30 = arith.constant 1.000000e+00 : f32
    %64 = vector.broadcast %cst_30 : f32 to vector<8x128xf32>
    %65 = arith.subf %64, %58 : vector<8x128xf32>
    %66 = arith.mulf %65, %63 : vector<8x128xf32>
    %67 = arith.mulf %58, %8 : vector<8x128xf32>
    %68 = arith.addf %66, %67 : vector<8x128xf32>
    %c0_31 = arith.constant 0 : index
    %c0_32 = arith.constant 0 : index
    %69 = vector.load %arg10[%c0_31, %c0_32] : memref<128x128xf32, #tpu.memory_space<vmem>>, vector<128x128xf32>
    %cst_33 = arith.constant dense<0.000000e+00> : vector<8x128xf32>
    %70 = tpu.matmul %68, %69, %cst_33 {dimension_numbers = #tpu.dot_dimension_numbers<[1], [0], [0], [1], [0, 0, 1, 1], [], []>} : vector<8x128xf32>, vector<128x128xf32>, vector<8x128xf32> -> vector<8x128xf32>
    %c0_34 = arith.constant 0 : index
    %c0_35 = arith.constant 0 : index
    %71 = vector.load %arg11[%c0_34, %c0_35] : memref<1x128xf32, #tpu.memory_space<vmem>>, vector<1x128xf32>
    %72 = vector.broadcast %71 : vector<1x128xf32> to vector<8x128xf32>
    %73 = arith.addf %70, %72 : vector<8x128xf32>
    %cst_36 = arith.constant 0.000000e+00 : f32
    %74 = vector.broadcast %cst_36 : f32 to vector<8x128xf32>
    %75 = arith.maximumf %73, %74 : vector<8x128xf32>
    %76 = arith.index_cast %38 : i32 to index
    %77 = memref.load %arg12[%76] : memref<8xf32, #tpu.memory_space<smem>>
    %78 = vector.broadcast %77 : f32 to vector<8x128xf32>
    %79 = arith.mulf %75, %78 : vector<8x128xf32>
    %80 = arith.addf %9, %79 : vector<8x128xf32>
    %c8_i32 = arith.constant 8 : i32
    %81 = arith.muli %c1_i32, %c8_i32 : i32
    %82 = tpu.assume_multiple %81, 8 : i32
    %83 = arith.index_cast %82 : i32 to index
    %c0_37 = arith.constant 0 : index
    %84 = vector.load %arg15[%83, %c0_37] : memref<64x384xf32, #tpu.memory_space<vmem>>, vector<8x384xf32>
    %c0_38 = arith.constant 0 : index
    %c0_39 = arith.constant 0 : index
    %85 = vector.load %arg4[%c0_38, %c0_39] : memref<128x384xf32, #tpu.memory_space<vmem>>, vector<128x384xf32>
    %cst_40 = arith.constant dense<0.000000e+00> : vector<8x384xf32>
    %86 = tpu.matmul %37, %85, %cst_40 {dimension_numbers = #tpu.dot_dimension_numbers<[1], [0], [0], [1], [0, 0, 1, 1], [], []>} : vector<8x128xf32>, vector<128x384xf32>, vector<8x384xf32> -> vector<8x384xf32>
    %c0_41 = arith.constant 0 : index
    %c0_42 = arith.constant 0 : index
    %87 = vector.load %arg5[%c0_41, %c0_42] : memref<1x384xf32, #tpu.memory_space<vmem>>, vector<1x384xf32>
    %88 = vector.broadcast %87 : vector<1x384xf32> to vector<8x384xf32>
    %89 = arith.addf %86, %88 : vector<8x384xf32>
    %90 = vector.extract_strided_slice %84 {offsets = [0, 0], sizes = [8, 256], strides = [1, 1]} : vector<8x384xf32> to vector<8x256xf32>
    %91 = vector.extract_strided_slice %89 {offsets = [0, 0], sizes = [8, 256], strides = [1, 1]} : vector<8x384xf32> to vector<8x256xf32>
    %92 = arith.addf %90, %91 : vector<8x256xf32>
    %93 = arith.negf %92 : vector<8x256xf32>
    %94 = math.exp %93 : vector<8x256xf32>
    %cst_43 = arith.constant 1.000000e+00 : f32
    %95 = vector.broadcast %cst_43 : f32 to vector<8x256xf32>
    %96 = arith.addf %95, %94 : vector<8x256xf32>
    %97 = arith.divf %95, %96 : vector<8x256xf32>
    %98 = vector.extract_strided_slice %97 {offsets = [0, 0], sizes = [8, 128], strides = [1, 1]} : vector<8x256xf32> to vector<8x128xf32>
    %99 = vector.extract_strided_slice %97 {offsets = [0, 128], sizes = [8, 128], strides = [1, 1]} : vector<8x256xf32> to vector<8x128xf32>
    %100 = vector.extract_strided_slice %84 {offsets = [0, 256], sizes = [8, 128], strides = [1, 1]} : vector<8x384xf32> to vector<8x128xf32>
    %101 = vector.extract_strided_slice %89 {offsets = [0, 256], sizes = [8, 128], strides = [1, 1]} : vector<8x384xf32> to vector<8x128xf32>
    %102 = arith.mulf %98, %101 : vector<8x128xf32>
    %103 = arith.addf %100, %102 : vector<8x128xf32>
    %104 = math.tanh %103 : vector<8x128xf32>
    %cst_44 = arith.constant 1.000000e+00 : f32
    %105 = vector.broadcast %cst_44 : f32 to vector<8x128xf32>
    %106 = arith.subf %105, %99 : vector<8x128xf32>
    %107 = arith.mulf %106, %104 : vector<8x128xf32>
    %108 = arith.mulf %99, %37 : vector<8x128xf32>
    %109 = arith.addf %107, %108 : vector<8x128xf32>
    %c2_i32 = arith.constant 2 : i32
    %c1_i32_45 = arith.constant 1 : i32
    %110 = arith.subi %c2_i32, %c1_i32_45 : i32
    %c0_46 = arith.constant 0 : index
    %c0_47 = arith.constant 0 : index
    %111 = vector.load %arg6[%c0_46, %c0_47] : memref<128x384xf32, #tpu.memory_space<vmem>>, vector<128x384xf32>
    %cst_48 = arith.constant dense<0.000000e+00> : vector<8x384xf32>
    %112 = tpu.matmul %109, %111, %cst_48 {dimension_numbers = #tpu.dot_dimension_numbers<[1], [0], [0], [1], [0, 0, 1, 1], [], []>} : vector<8x128xf32>, vector<128x384xf32>, vector<8x384xf32> -> vector<8x384xf32>
    %c0_49 = arith.constant 0 : index
    %c0_50 = arith.constant 0 : index
    %113 = vector.load %arg7[%c0_49, %c0_50] : memref<1x384xf32, #tpu.memory_space<vmem>>, vector<1x384xf32>
    %114 = vector.broadcast %113 : vector<1x384xf32> to vector<8x384xf32>
    %115 = arith.addf %112, %114 : vector<8x384xf32>
    %c0_51 = arith.constant 0 : index
    %c0_52 = arith.constant 0 : index
    %116 = vector.load %arg8[%c0_51, %c0_52] : memref<128x384xf32, #tpu.memory_space<vmem>>, vector<128x384xf32>
    %cst_53 = arith.constant dense<0.000000e+00> : vector<8x384xf32>
    %117 = tpu.matmul %68, %116, %cst_53 {dimension_numbers = #tpu.dot_dimension_numbers<[1], [0], [0], [1], [0, 0, 1, 1], [], []>} : vector<8x128xf32>, vector<128x384xf32>, vector<8x384xf32> -> vector<8x384xf32>
    %c0_54 = arith.constant 0 : index
    %c0_55 = arith.constant 0 : index
    %118 = vector.load %arg9[%c0_54, %c0_55] : memref<1x384xf32, #tpu.memory_space<vmem>>, vector<1x384xf32>
    %119 = vector.broadcast %118 : vector<1x384xf32> to vector<8x384xf32>
    %120 = arith.addf %117, %119 : vector<8x384xf32>
    %121 = vector.extract_strided_slice %115 {offsets = [0, 0], sizes = [8, 256], strides = [1, 1]} : vector<8x384xf32> to vector<8x256xf32>
    %122 = vector.extract_strided_slice %120 {offsets = [0, 0], sizes = [8, 256], strides = [1, 1]} : vector<8x384xf32> to vector<8x256xf32>
    %123 = arith.addf %121, %122 : vector<8x256xf32>
    %124 = arith.negf %123 : vector<8x256xf32>
    %125 = math.exp %124 : vector<8x256xf32>
    %cst_56 = arith.constant 1.000000e+00 : f32
    %126 = vector.broadcast %cst_56 : f32 to vector<8x256xf32>
    %127 = arith.addf %126, %125 : vector<8x256xf32>
    %128 = arith.divf %126, %127 : vector<8x256xf32>
    %129 = vector.extract_strided_slice %128 {offsets = [0, 0], sizes = [8, 128], strides = [1, 1]} : vector<8x256xf32> to vector<8x128xf32>
    %130 = vector.extract_strided_slice %128 {offsets = [0, 128], sizes = [8, 128], strides = [1, 1]} : vector<8x256xf32> to vector<8x128xf32>
    %131 = vector.extract_strided_slice %115 {offsets = [0, 256], sizes = [8, 128], strides = [1, 1]} : vector<8x384xf32> to vector<8x128xf32>
    %132 = vector.extract_strided_slice %120 {offsets = [0, 256], sizes = [8, 128], strides = [1, 1]} : vector<8x384xf32> to vector<8x128xf32>
    %133 = arith.mulf %129, %132 : vector<8x128xf32>
    %134 = arith.addf %131, %133 : vector<8x128xf32>
    %135 = math.tanh %134 : vector<8x128xf32>
    %cst_57 = arith.constant 1.000000e+00 : f32
    %136 = vector.broadcast %cst_57 : f32 to vector<8x128xf32>
    %137 = arith.subf %136, %130 : vector<8x128xf32>
    %138 = arith.mulf %137, %135 : vector<8x128xf32>
    %139 = arith.mulf %130, %68 : vector<8x128xf32>
    %140 = arith.addf %138, %139 : vector<8x128xf32>
    %c0_58 = arith.constant 0 : index
    %c0_59 = arith.constant 0 : index
    %141 = vector.load %arg10[%c0_58, %c0_59] : memref<128x128xf32, #tpu.memory_space<vmem>>, vector<128x128xf32>
    %cst_60 = arith.constant dense<0.000000e+00> : vector<8x128xf32>
    %142 = tpu.matmul %140, %141, %cst_60 {dimension_numbers = #tpu.dot_dimension_numbers<[1], [0], [0], [1], [0, 0, 1, 1], [], []>} : vector<8x128xf32>, vector<128x128xf32>, vector<8x128xf32> -> vector<8x128xf32>
    %c0_61 = arith.constant 0 : index
    %c0_62 = arith.constant 0 : index
    %143 = vector.load %arg11[%c0_61, %c0_62] : memref<1x128xf32, #tpu.memory_space<vmem>>, vector<1x128xf32>
    %144 = vector.broadcast %143 : vector<1x128xf32> to vector<8x128xf32>
    %145 = arith.addf %142, %144 : vector<8x128xf32>
    %cst_63 = arith.constant 0.000000e+00 : f32
    %146 = vector.broadcast %cst_63 : f32 to vector<8x128xf32>
    %147 = arith.maximumf %145, %146 : vector<8x128xf32>
    %148 = arith.index_cast %110 : i32 to index
    %149 = memref.load %arg12[%148] : memref<8xf32, #tpu.memory_space<smem>>
    %150 = vector.broadcast %149 : f32 to vector<8x128xf32>
    %151 = arith.mulf %147, %150 : vector<8x128xf32>
    %152 = arith.addf %80, %151 : vector<8x128xf32>
    %c8_i32_64 = arith.constant 8 : i32
    %153 = arith.muli %c2_i32, %c8_i32_64 : i32
    %154 = tpu.assume_multiple %153, 8 : i32
    %155 = arith.index_cast %154 : i32 to index
    %c0_65 = arith.constant 0 : index
    %156 = vector.load %arg15[%155, %c0_65] : memref<64x384xf32, #tpu.memory_space<vmem>>, vector<8x384xf32>
    %c0_66 = arith.constant 0 : index
    %c0_67 = arith.constant 0 : index
    %157 = vector.load %arg4[%c0_66, %c0_67] : memref<128x384xf32, #tpu.memory_space<vmem>>, vector<128x384xf32>
    %cst_68 = arith.constant dense<0.000000e+00> : vector<8x384xf32>
    %158 = tpu.matmul %109, %157, %cst_68 {dimension_numbers = #tpu.dot_dimension_numbers<[1], [0], [0], [1], [0, 0, 1, 1], [], []>} : vector<8x128xf32>, vector<128x384xf32>, vector<8x384xf32> -> vector<8x384xf32>
    %c0_69 = arith.constant 0 : index
    %c0_70 = arith.constant 0 : index
    %159 = vector.load %arg5[%c0_69, %c0_70] : memref<1x384xf32, #tpu.memory_space<vmem>>, vector<1x384xf32>
    %160 = vector.broadcast %159 : vector<1x384xf32> to vector<8x384xf32>
    %161 = arith.addf %158, %160 : vector<8x384xf32>
    %162 = vector.extract_strided_slice %156 {offsets = [0, 0], sizes = [8, 256], strides = [1, 1]} : vector<8x384xf32> to vector<8x256xf32>
    %163 = vector.extract_strided_slice %161 {offsets = [0, 0], sizes = [8, 256], strides = [1, 1]} : vector<8x384xf32> to vector<8x256xf32>
    %164 = arith.addf %162, %163 : vector<8x256xf32>
    %165 = arith.negf %164 : vector<8x256xf32>
    %166 = math.exp %165 : vector<8x256xf32>
    %cst_71 = arith.constant 1.000000e+00 : f32
    %167 = vector.broadcast %cst_71 : f32 to vector<8x256xf32>
    %168 = arith.addf %167, %166 : vector<8x256xf32>
    %169 = arith.divf %167, %168 : vector<8x256xf32>
    %170 = vector.extract_strided_slice %169 {offsets = [0, 0], sizes = [8, 128], strides = [1, 1]} : vector<8x256xf32> to vector<8x128xf32>
    %171 = vector.extract_strided_slice %169 {offsets = [0, 128], sizes = [8, 128], strides = [1, 1]} : vector<8x256xf32> to vector<8x128xf32>
    %172 = vector.extract_strided_slice %156 {offsets = [0, 256], sizes = [8, 128], strides = [1, 1]} : vector<8x384xf32> to vector<8x128xf32>
    %173 = vector.extract_strided_slice %161 {offsets = [0, 256], sizes = [8, 128], strides = [1, 1]} : vector<8x384xf32> to vector<8x128xf32>
    %174 = arith.mulf %170, %173 : vector<8x128xf32>
    %175 = arith.addf %172, %174 : vector<8x128xf32>
    %176 = math.tanh %175 : vector<8x128xf32>
    %cst_72 = arith.constant 1.000000e+00 : f32
    %177 = vector.broadcast %cst_72 : f32 to vector<8x128xf32>
    %178 = arith.subf %177, %171 : vector<8x128xf32>
    %179 = arith.mulf %178, %176 : vector<8x128xf32>
    %180 = arith.mulf %171, %109 : vector<8x128xf32>
    %181 = arith.addf %179, %180 : vector<8x128xf32>
    %c3_i32 = arith.constant 3 : i32
    %c1_i32_73 = arith.constant 1 : i32
    %182 = arith.subi %c3_i32, %c1_i32_73 : i32
    %c0_74 = arith.constant 0 : index
    %c0_75 = arith.constant 0 : index
    %183 = vector.load %arg6[%c0_74, %c0_75] : memref<128x384xf32, #tpu.memory_space<vmem>>, vector<128x384xf32>
    %cst_76 = arith.constant dense<0.000000e+00> : vector<8x384xf32>
    %184 = tpu.matmul %181, %183, %cst_76 {dimension_numbers = #tpu.dot_dimension_numbers<[1], [0], [0], [1], [0, 0, 1, 1], [], []>} : vector<8x128xf32>, vector<128x384xf32>, vector<8x384xf32> -> vector<8x384xf32>
    %c0_77 = arith.constant 0 : index
    %c0_78 = arith.constant 0 : index
    %185 = vector.load %arg7[%c0_77, %c0_78] : memref<1x384xf32, #tpu.memory_space<vmem>>, vector<1x384xf32>
    %186 = vector.broadcast %185 : vector<1x384xf32> to vector<8x384xf32>
    %187 = arith.addf %184, %186 : vector<8x384xf32>
    %c0_79 = arith.constant 0 : index
    %c0_80 = arith.constant 0 : index
    %188 = vector.load %arg8[%c0_79, %c0_80] : memref<128x384xf32, #tpu.memory_space<vmem>>, vector<128x384xf32>
    %cst_81 = arith.constant dense<0.000000e+00> : vector<8x384xf32>
    %189 = tpu.matmul %140, %188, %cst_81 {dimension_numbers = #tpu.dot_dimension_numbers<[1], [0], [0], [1], [0, 0, 1, 1], [], []>} : vector<8x128xf32>, vector<128x384xf32>, vector<8x384xf32> -> vector<8x384xf32>
    %c0_82 = arith.constant 0 : index
    %c0_83 = arith.constant 0 : index
    %190 = vector.load %arg9[%c0_82, %c0_83] : memref<1x384xf32, #tpu.memory_space<vmem>>, vector<1x384xf32>
    %191 = vector.broadcast %190 : vector<1x384xf32> to vector<8x384xf32>
    %192 = arith.addf %189, %191 : vector<8x384xf32>
    %193 = vector.extract_strided_slice %187 {offsets = [0, 0], sizes = [8, 256], strides = [1, 1]} : vector<8x384xf32> to vector<8x256xf32>
    %194 = vector.extract_strided_slice %192 {offsets = [0, 0], sizes = [8, 256], strides = [1, 1]} : vector<8x384xf32> to vector<8x256xf32>
    %195 = arith.addf %193, %194 : vector<8x256xf32>
    %196 = arith.negf %195 : vector<8x256xf32>
    %197 = math.exp %196 : vector<8x256xf32>
    %cst_84 = arith.constant 1.000000e+00 : f32
    %198 = vector.broadcast %cst_84 : f32 to vector<8x256xf32>
    %199 = arith.addf %198, %197 : vector<8x256xf32>
    %200 = arith.divf %198, %199 : vector<8x256xf32>
    %201 = vector.extract_strided_slice %200 {offsets = [0, 0], sizes = [8, 128], strides = [1, 1]} : vector<8x256xf32> to vector<8x128xf32>
    %202 = vector.extract_strided_slice %200 {offsets = [0, 128], sizes = [8, 128], strides = [1, 1]} : vector<8x256xf32> to vector<8x128xf32>
    %203 = vector.extract_strided_slice %187 {offsets = [0, 256], sizes = [8, 128], strides = [1, 1]} : vector<8x384xf32> to vector<8x128xf32>
    %204 = vector.extract_strided_slice %192 {offsets = [0, 256], sizes = [8, 128], strides = [1, 1]} : vector<8x384xf32> to vector<8x128xf32>
    %205 = arith.mulf %201, %204 : vector<8x128xf32>
    %206 = arith.addf %203, %205 : vector<8x128xf32>
    %207 = math.tanh %206 : vector<8x128xf32>
    %cst_85 = arith.constant 1.000000e+00 : f32
    %208 = vector.broadcast %cst_85 : f32 to vector<8x128xf32>
    %209 = arith.subf %208, %202 : vector<8x128xf32>
    %210 = arith.mulf %209, %207 : vector<8x128xf32>
    %211 = arith.mulf %202, %140 : vector<8x128xf32>
    %212 = arith.addf %210, %211 : vector<8x128xf32>
    %c0_86 = arith.constant 0 : index
    %c0_87 = arith.constant 0 : index
    %213 = vector.load %arg10[%c0_86, %c0_87] : memref<128x128xf32, #tpu.memory_space<vmem>>, vector<128x128xf32>
    %cst_88 = arith.constant dense<0.000000e+00> : vector<8x128xf32>
    %214 = tpu.matmul %212, %213, %cst_88 {dimension_numbers = #tpu.dot_dimension_numbers<[1], [0], [0], [1], [0, 0, 1, 1], [], []>} : vector<8x128xf32>, vector<128x128xf32>, vector<8x128xf32> -> vector<8x128xf32>
    %c0_89 = arith.constant 0 : index
    %c0_90 = arith.constant 0 : index
    %215 = vector.load %arg11[%c0_89, %c0_90] : memref<1x128xf32, #tpu.memory_space<vmem>>, vector<1x128xf32>
    %216 = vector.broadcast %215 : vector<1x128xf32> to vector<8x128xf32>
    %217 = arith.addf %214, %216 : vector<8x128xf32>
    %cst_91 = arith.constant 0.000000e+00 : f32
    %218 = vector.broadcast %cst_91 : f32 to vector<8x128xf32>
    %219 = arith.maximumf %217, %218 : vector<8x128xf32>
    %220 = arith.index_cast %182 : i32 to index
    %221 = memref.load %arg12[%220] : memref<8xf32, #tpu.memory_space<smem>>
    %222 = vector.broadcast %221 : f32 to vector<8x128xf32>
    %223 = arith.mulf %219, %222 : vector<8x128xf32>
    %224 = arith.addf %152, %223 : vector<8x128xf32>
    %c8_i32_92 = arith.constant 8 : i32
    %225 = arith.muli %c3_i32, %c8_i32_92 : i32
    %226 = tpu.assume_multiple %225, 8 : i32
    %227 = arith.index_cast %226 : i32 to index
    %c0_93 = arith.constant 0 : index
    %228 = vector.load %arg15[%227, %c0_93] : memref<64x384xf32, #tpu.memory_space<vmem>>, vector<8x384xf32>
    %c0_94 = arith.constant 0 : index
    %c0_95 = arith.constant 0 : index
    %229 = vector.load %arg4[%c0_94, %c0_95] : memref<128x384xf32, #tpu.memory_space<vmem>>, vector<128x384xf32>
    %cst_96 = arith.constant dense<0.000000e+00> : vector<8x384xf32>
    %230 = tpu.matmul %181, %229, %cst_96 {dimension_numbers = #tpu.dot_dimension_numbers<[1], [0], [0], [1], [0, 0, 1, 1], [], []>} : vector<8x128xf32>, vector<128x384xf32>, vector<8x384xf32> -> vector<8x384xf32>
    %c0_97 = arith.constant 0 : index
    %c0_98 = arith.constant 0 : index
    %231 = vector.load %arg5[%c0_97, %c0_98] : memref<1x384xf32, #tpu.memory_space<vmem>>, vector<1x384xf32>
    %232 = vector.broadcast %231 : vector<1x384xf32> to vector<8x384xf32>
    %233 = arith.addf %230, %232 : vector<8x384xf32>
    %234 = vector.extract_strided_slice %228 {offsets = [0, 0], sizes = [8, 256], strides = [1, 1]} : vector<8x384xf32> to vector<8x256xf32>
    %235 = vector.extract_strided_slice %233 {offsets = [0, 0], sizes = [8, 256], strides = [1, 1]} : vector<8x384xf32> to vector<8x256xf32>
    %236 = arith.addf %234, %235 : vector<8x256xf32>
    %237 = arith.negf %236 : vector<8x256xf32>
    %238 = math.exp %237 : vector<8x256xf32>
    %cst_99 = arith.constant 1.000000e+00 : f32
    %239 = vector.broadcast %cst_99 : f32 to vector<8x256xf32>
    %240 = arith.addf %239, %238 : vector<8x256xf32>
    %241 = arith.divf %239, %240 : vector<8x256xf32>
    %242 = vector.extract_strided_slice %241 {offsets = [0, 0], sizes = [8, 128], strides = [1, 1]} : vector<8x256xf32> to vector<8x128xf32>
    %243 = vector.extract_strided_slice %241 {offsets = [0, 128], sizes = [8, 128], strides = [1, 1]} : vector<8x256xf32> to vector<8x128xf32>
    %244 = vector.extract_strided_slice %228 {offsets = [0, 256], sizes = [8, 128], strides = [1, 1]} : vector<8x384xf32> to vector<8x128xf32>
    %245 = vector.extract_strided_slice %233 {offsets = [0, 256], sizes = [8, 128], strides = [1, 1]} : vector<8x384xf32> to vector<8x128xf32>
    %246 = arith.mulf %242, %245 : vector<8x128xf32>
    %247 = arith.addf %244, %246 : vector<8x128xf32>
    %248 = math.tanh %247 : vector<8x128xf32>
    %cst_100 = arith.constant 1.000000e+00 : f32
    %249 = vector.broadcast %cst_100 : f32 to vector<8x128xf32>
    %250 = arith.subf %249, %243 : vector<8x128xf32>
    %251 = arith.mulf %250, %248 : vector<8x128xf32>
    %252 = arith.mulf %243, %181 : vector<8x128xf32>
    %253 = arith.addf %251, %252 : vector<8x128xf32>
    %c4_i32 = arith.constant 4 : i32
    %c1_i32_101 = arith.constant 1 : i32
    %254 = arith.subi %c4_i32, %c1_i32_101 : i32
    %c0_102 = arith.constant 0 : index
    %c0_103 = arith.constant 0 : index
    %255 = vector.load %arg6[%c0_102, %c0_103] : memref<128x384xf32, #tpu.memory_space<vmem>>, vector<128x384xf32>
    %cst_104 = arith.constant dense<0.000000e+00> : vector<8x384xf32>
    %256 = tpu.matmul %253, %255, %cst_104 {dimension_numbers = #tpu.dot_dimension_numbers<[1], [0], [0], [1], [0, 0, 1, 1], [], []>} : vector<8x128xf32>, vector<128x384xf32>, vector<8x384xf32> -> vector<8x384xf32>
    %c0_105 = arith.constant 0 : index
    %c0_106 = arith.constant 0 : index
    %257 = vector.load %arg7[%c0_105, %c0_106] : memref<1x384xf32, #tpu.memory_space<vmem>>, vector<1x384xf32>
    %258 = vector.broadcast %257 : vector<1x384xf32> to vector<8x384xf32>
    %259 = arith.addf %256, %258 : vector<8x384xf32>
    %c0_107 = arith.constant 0 : index
    %c0_108 = arith.constant 0 : index
    %260 = vector.load %arg8[%c0_107, %c0_108] : memref<128x384xf32, #tpu.memory_space<vmem>>, vector<128x384xf32>
    %cst_109 = arith.constant dense<0.000000e+00> : vector<8x384xf32>
    %261 = tpu.matmul %212, %260, %cst_109 {dimension_numbers = #tpu.dot_dimension_numbers<[1], [0], [0], [1], [0, 0, 1, 1], [], []>} : vector<8x128xf32>, vector<128x384xf32>, vector<8x384xf32> -> vector<8x384xf32>
    %c0_110 = arith.constant 0 : index
    %c0_111 = arith.constant 0 : index
    %262 = vector.load %arg9[%c0_110, %c0_111] : memref<1x384xf32, #tpu.memory_space<vmem>>, vector<1x384xf32>
    %263 = vector.broadcast %262 : vector<1x384xf32> to vector<8x384xf32>
    %264 = arith.addf %261, %263 : vector<8x384xf32>
    %265 = vector.extract_strided_slice %259 {offsets = [0, 0], sizes = [8, 256], strides = [1, 1]} : vector<8x384xf32> to vector<8x256xf32>
    %266 = vector.extract_strided_slice %264 {offsets = [0, 0], sizes = [8, 256], strides = [1, 1]} : vector<8x384xf32> to vector<8x256xf32>
    %267 = arith.addf %265, %266 : vector<8x256xf32>
    %268 = arith.negf %267 : vector<8x256xf32>
    %269 = math.exp %268 : vector<8x256xf32>
    %cst_112 = arith.constant 1.000000e+00 : f32
    %270 = vector.broadcast %cst_112 : f32 to vector<8x256xf32>
    %271 = arith.addf %270, %269 : vector<8x256xf32>
    %272 = arith.divf %270, %271 : vector<8x256xf32>
    %273 = vector.extract_strided_slice %272 {offsets = [0, 0], sizes = [8, 128], strides = [1, 1]} : vector<8x256xf32> to vector<8x128xf32>
    %274 = vector.extract_strided_slice %272 {offsets = [0, 128], sizes = [8, 128], strides = [1, 1]} : vector<8x256xf32> to vector<8x128xf32>
    %275 = vector.extract_strided_slice %259 {offsets = [0, 256], sizes = [8, 128], strides = [1, 1]} : vector<8x384xf32> to vector<8x128xf32>
    %276 = vector.extract_strided_slice %264 {offsets = [0, 256], sizes = [8, 128], strides = [1, 1]} : vector<8x384xf32> to vector<8x128xf32>
    %277 = arith.mulf %273, %276 : vector<8x128xf32>
    %278 = arith.addf %275, %277 : vector<8x128xf32>
    %279 = math.tanh %278 : vector<8x128xf32>
    %cst_113 = arith.constant 1.000000e+00 : f32
    %280 = vector.broadcast %cst_113 : f32 to vector<8x128xf32>
    %281 = arith.subf %280, %274 : vector<8x128xf32>
    %282 = arith.mulf %281, %279 : vector<8x128xf32>
    %283 = arith.mulf %274, %212 : vector<8x128xf32>
    %284 = arith.addf %282, %283 : vector<8x128xf32>
    %c0_114 = arith.constant 0 : index
    %c0_115 = arith.constant 0 : index
    %285 = vector.load %arg10[%c0_114, %c0_115] : memref<128x128xf32, #tpu.memory_space<vmem>>, vector<128x128xf32>
    %cst_116 = arith.constant dense<0.000000e+00> : vector<8x128xf32>
    %286 = tpu.matmul %284, %285, %cst_116 {dimension_numbers = #tpu.dot_dimension_numbers<[1], [0], [0], [1], [0, 0, 1, 1], [], []>} : vector<8x128xf32>, vector<128x128xf32>, vector<8x128xf32> -> vector<8x128xf32>
    %c0_117 = arith.constant 0 : index
    %c0_118 = arith.constant 0 : index
    %287 = vector.load %arg11[%c0_117, %c0_118] : memref<1x128xf32, #tpu.memory_space<vmem>>, vector<1x128xf32>
    %288 = vector.broadcast %287 : vector<1x128xf32> to vector<8x128xf32>
    %289 = arith.addf %286, %288 : vector<8x128xf32>
    %cst_119 = arith.constant 0.000000e+00 : f32
    %290 = vector.broadcast %cst_119 : f32 to vector<8x128xf32>
    %291 = arith.maximumf %289, %290 : vector<8x128xf32>
    %292 = arith.index_cast %254 : i32 to index
    %293 = memref.load %arg12[%292] : memref<8xf32, #tpu.memory_space<smem>>
    %294 = vector.broadcast %293 : f32 to vector<8x128xf32>
    %295 = arith.mulf %291, %294 : vector<8x128xf32>
    %296 = arith.addf %224, %295 : vector<8x128xf32>
    %c8_i32_120 = arith.constant 8 : i32
    %297 = arith.muli %c4_i32, %c8_i32_120 : i32
    %298 = tpu.assume_multiple %297, 8 : i32
    %299 = arith.index_cast %298 : i32 to index
    %c0_121 = arith.constant 0 : index
    %300 = vector.load %arg15[%299, %c0_121] : memref<64x384xf32, #tpu.memory_space<vmem>>, vector<8x384xf32>
    %c0_122 = arith.constant 0 : index
    %c0_123 = arith.constant 0 : index
    %301 = vector.load %arg4[%c0_122, %c0_123] : memref<128x384xf32, #tpu.memory_space<vmem>>, vector<128x384xf32>
    %cst_124 = arith.constant dense<0.000000e+00> : vector<8x384xf32>
    %302 = tpu.matmul %253, %301, %cst_124 {dimension_numbers = #tpu.dot_dimension_numbers<[1], [0], [0], [1], [0, 0, 1, 1], [], []>} : vector<8x128xf32>, vector<128x384xf32>, vector<8x384xf32> -> vector<8x384xf32>
    %c0_125 = arith.constant 0 : index
    %c0_126 = arith.constant 0 : index
    %303 = vector.load %arg5[%c0_125, %c0_126] : memref<1x384xf32, #tpu.memory_space<vmem>>, vector<1x384xf32>
    %304 = vector.broadcast %303 : vector<1x384xf32> to vector<8x384xf32>
    %305 = arith.addf %302, %304 : vector<8x384xf32>
    %306 = vector.extract_strided_slice %300 {offsets = [0, 0], sizes = [8, 256], strides = [1, 1]} : vector<8x384xf32> to vector<8x256xf32>
    %307 = vector.extract_strided_slice %305 {offsets = [0, 0], sizes = [8, 256], strides = [1, 1]} : vector<8x384xf32> to vector<8x256xf32>
    %308 = arith.addf %306, %307 : vector<8x256xf32>
    %309 = arith.negf %308 : vector<8x256xf32>
    %310 = math.exp %309 : vector<8x256xf32>
    %cst_127 = arith.constant 1.000000e+00 : f32
    %311 = vector.broadcast %cst_127 : f32 to vector<8x256xf32>
    %312 = arith.addf %311, %310 : vector<8x256xf32>
    %313 = arith.divf %311, %312 : vector<8x256xf32>
    %314 = vector.extract_strided_slice %313 {offsets = [0, 0], sizes = [8, 128], strides = [1, 1]} : vector<8x256xf32> to vector<8x128xf32>
    %315 = vector.extract_strided_slice %313 {offsets = [0, 128], sizes = [8, 128], strides = [1, 1]} : vector<8x256xf32> to vector<8x128xf32>
    %316 = vector.extract_strided_slice %300 {offsets = [0, 256], sizes = [8, 128], strides = [1, 1]} : vector<8x384xf32> to vector<8x128xf32>
    %317 = vector.extract_strided_slice %305 {offsets = [0, 256], sizes = [8, 128], strides = [1, 1]} : vector<8x384xf32> to vector<8x128xf32>
    %318 = arith.mulf %314, %317 : vector<8x128xf32>
    %319 = arith.addf %316, %318 : vector<8x128xf32>
    %320 = math.tanh %319 : vector<8x128xf32>
    %cst_128 = arith.constant 1.000000e+00 : f32
    %321 = vector.broadcast %cst_128 : f32 to vector<8x128xf32>
    %322 = arith.subf %321, %315 : vector<8x128xf32>
    %323 = arith.mulf %322, %320 : vector<8x128xf32>
    %324 = arith.mulf %315, %253 : vector<8x128xf32>
    %325 = arith.addf %323, %324 : vector<8x128xf32>
    %c5_i32 = arith.constant 5 : i32
    %c1_i32_129 = arith.constant 1 : i32
    %326 = arith.subi %c5_i32, %c1_i32_129 : i32
    %c0_130 = arith.constant 0 : index
    %c0_131 = arith.constant 0 : index
    %327 = vector.load %arg6[%c0_130, %c0_131] : memref<128x384xf32, #tpu.memory_space<vmem>>, vector<128x384xf32>
    %cst_132 = arith.constant dense<0.000000e+00> : vector<8x384xf32>
    %328 = tpu.matmul %325, %327, %cst_132 {dimension_numbers = #tpu.dot_dimension_numbers<[1], [0], [0], [1], [0, 0, 1, 1], [], []>} : vector<8x128xf32>, vector<128x384xf32>, vector<8x384xf32> -> vector<8x384xf32>
    %c0_133 = arith.constant 0 : index
    %c0_134 = arith.constant 0 : index
    %329 = vector.load %arg7[%c0_133, %c0_134] : memref<1x384xf32, #tpu.memory_space<vmem>>, vector<1x384xf32>
    %330 = vector.broadcast %329 : vector<1x384xf32> to vector<8x384xf32>
    %331 = arith.addf %328, %330 : vector<8x384xf32>
    %c0_135 = arith.constant 0 : index
    %c0_136 = arith.constant 0 : index
    %332 = vector.load %arg8[%c0_135, %c0_136] : memref<128x384xf32, #tpu.memory_space<vmem>>, vector<128x384xf32>
    %cst_137 = arith.constant dense<0.000000e+00> : vector<8x384xf32>
    %333 = tpu.matmul %284, %332, %cst_137 {dimension_numbers = #tpu.dot_dimension_numbers<[1], [0], [0], [1], [0, 0, 1, 1], [], []>} : vector<8x128xf32>, vector<128x384xf32>, vector<8x384xf32> -> vector<8x384xf32>
    %c0_138 = arith.constant 0 : index
    %c0_139 = arith.constant 0 : index
    %334 = vector.load %arg9[%c0_138, %c0_139] : memref<1x384xf32, #tpu.memory_space<vmem>>, vector<1x384xf32>
    %335 = vector.broadcast %334 : vector<1x384xf32> to vector<8x384xf32>
    %336 = arith.addf %333, %335 : vector<8x384xf32>
    %337 = vector.extract_strided_slice %331 {offsets = [0, 0], sizes = [8, 256], strides = [1, 1]} : vector<8x384xf32> to vector<8x256xf32>
    %338 = vector.extract_strided_slice %336 {offsets = [0, 0], sizes = [8, 256], strides = [1, 1]} : vector<8x384xf32> to vector<8x256xf32>
    %339 = arith.addf %337, %338 : vector<8x256xf32>
    %340 = arith.negf %339 : vector<8x256xf32>
    %341 = math.exp %340 : vector<8x256xf32>
    %cst_140 = arith.constant 1.000000e+00 : f32
    %342 = vector.broadcast %cst_140 : f32 to vector<8x256xf32>
    %343 = arith.addf %342, %341 : vector<8x256xf32>
    %344 = arith.divf %342, %343 : vector<8x256xf32>
    %345 = vector.extract_strided_slice %344 {offsets = [0, 0], sizes = [8, 128], strides = [1, 1]} : vector<8x256xf32> to vector<8x128xf32>
    %346 = vector.extract_strided_slice %344 {offsets = [0, 128], sizes = [8, 128], strides = [1, 1]} : vector<8x256xf32> to vector<8x128xf32>
    %347 = vector.extract_strided_slice %331 {offsets = [0, 256], sizes = [8, 128], strides = [1, 1]} : vector<8x384xf32> to vector<8x128xf32>
    %348 = vector.extract_strided_slice %336 {offsets = [0, 256], sizes = [8, 128], strides = [1, 1]} : vector<8x384xf32> to vector<8x128xf32>
    %349 = arith.mulf %345, %348 : vector<8x128xf32>
    %350 = arith.addf %347, %349 : vector<8x128xf32>
    %351 = math.tanh %350 : vector<8x128xf32>
    %cst_141 = arith.constant 1.000000e+00 : f32
    %352 = vector.broadcast %cst_141 : f32 to vector<8x128xf32>
    %353 = arith.subf %352, %346 : vector<8x128xf32>
    %354 = arith.mulf %353, %351 : vector<8x128xf32>
    %355 = arith.mulf %346, %284 : vector<8x128xf32>
    %356 = arith.addf %354, %355 : vector<8x128xf32>
    %c0_142 = arith.constant 0 : index
    %c0_143 = arith.constant 0 : index
    %357 = vector.load %arg10[%c0_142, %c0_143] : memref<128x128xf32, #tpu.memory_space<vmem>>, vector<128x128xf32>
    %cst_144 = arith.constant dense<0.000000e+00> : vector<8x128xf32>
    %358 = tpu.matmul %356, %357, %cst_144 {dimension_numbers = #tpu.dot_dimension_numbers<[1], [0], [0], [1], [0, 0, 1, 1], [], []>} : vector<8x128xf32>, vector<128x128xf32>, vector<8x128xf32> -> vector<8x128xf32>
    %c0_145 = arith.constant 0 : index
    %c0_146 = arith.constant 0 : index
    %359 = vector.load %arg11[%c0_145, %c0_146] : memref<1x128xf32, #tpu.memory_space<vmem>>, vector<1x128xf32>
    %360 = vector.broadcast %359 : vector<1x128xf32> to vector<8x128xf32>
    %361 = arith.addf %358, %360 : vector<8x128xf32>
    %cst_147 = arith.constant 0.000000e+00 : f32
    %362 = vector.broadcast %cst_147 : f32 to vector<8x128xf32>
    %363 = arith.maximumf %361, %362 : vector<8x128xf32>
    %364 = arith.index_cast %326 : i32 to index
    %365 = memref.load %arg12[%364] : memref<8xf32, #tpu.memory_space<smem>>
    %366 = vector.broadcast %365 : f32 to vector<8x128xf32>
    %367 = arith.mulf %363, %366 : vector<8x128xf32>
    %368 = arith.addf %296, %367 : vector<8x128xf32>
    %c8_i32_148 = arith.constant 8 : i32
    %369 = arith.muli %c5_i32, %c8_i32_148 : i32
    %370 = tpu.assume_multiple %369, 8 : i32
    %371 = arith.index_cast %370 : i32 to index
    %c0_149 = arith.constant 0 : index
    %372 = vector.load %arg15[%371, %c0_149] : memref<64x384xf32, #tpu.memory_space<vmem>>, vector<8x384xf32>
    %c0_150 = arith.constant 0 : index
    %c0_151 = arith.constant 0 : index
    %373 = vector.load %arg4[%c0_150, %c0_151] : memref<128x384xf32, #tpu.memory_space<vmem>>, vector<128x384xf32>
    %cst_152 = arith.constant dense<0.000000e+00> : vector<8x384xf32>
    %374 = tpu.matmul %325, %373, %cst_152 {dimension_numbers = #tpu.dot_dimension_numbers<[1], [0], [0], [1], [0, 0, 1, 1], [], []>} : vector<8x128xf32>, vector<128x384xf32>, vector<8x384xf32> -> vector<8x384xf32>
    %c0_153 = arith.constant 0 : index
    %c0_154 = arith.constant 0 : index
    %375 = vector.load %arg5[%c0_153, %c0_154] : memref<1x384xf32, #tpu.memory_space<vmem>>, vector<1x384xf32>
    %376 = vector.broadcast %375 : vector<1x384xf32> to vector<8x384xf32>
    %377 = arith.addf %374, %376 : vector<8x384xf32>
    %378 = vector.extract_strided_slice %372 {offsets = [0, 0], sizes = [8, 256], strides = [1, 1]} : vector<8x384xf32> to vector<8x256xf32>
    %379 = vector.extract_strided_slice %377 {offsets = [0, 0], sizes = [8, 256], strides = [1, 1]} : vector<8x384xf32> to vector<8x256xf32>
    %380 = arith.addf %378, %379 : vector<8x256xf32>
    %381 = arith.negf %380 : vector<8x256xf32>
    %382 = math.exp %381 : vector<8x256xf32>
    %cst_155 = arith.constant 1.000000e+00 : f32
    %383 = vector.broadcast %cst_155 : f32 to vector<8x256xf32>
    %384 = arith.addf %383, %382 : vector<8x256xf32>
    %385 = arith.divf %383, %384 : vector<8x256xf32>
    %386 = vector.extract_strided_slice %385 {offsets = [0, 0], sizes = [8, 128], strides = [1, 1]} : vector<8x256xf32> to vector<8x128xf32>
    %387 = vector.extract_strided_slice %385 {offsets = [0, 128], sizes = [8, 128], strides = [1, 1]} : vector<8x256xf32> to vector<8x128xf32>
    %388 = vector.extract_strided_slice %372 {offsets = [0, 256], sizes = [8, 128], strides = [1, 1]} : vector<8x384xf32> to vector<8x128xf32>
    %389 = vector.extract_strided_slice %377 {offsets = [0, 256], sizes = [8, 128], strides = [1, 1]} : vector<8x384xf32> to vector<8x128xf32>
    %390 = arith.mulf %386, %389 : vector<8x128xf32>
    %391 = arith.addf %388, %390 : vector<8x128xf32>
    %392 = math.tanh %391 : vector<8x128xf32>
    %cst_156 = arith.constant 1.000000e+00 : f32
    %393 = vector.broadcast %cst_156 : f32 to vector<8x128xf32>
    %394 = arith.subf %393, %387 : vector<8x128xf32>
    %395 = arith.mulf %394, %392 : vector<8x128xf32>
    %396 = arith.mulf %387, %325 : vector<8x128xf32>
    %397 = arith.addf %395, %396 : vector<8x128xf32>
    %c6_i32 = arith.constant 6 : i32
    %c1_i32_157 = arith.constant 1 : i32
    %398 = arith.subi %c6_i32, %c1_i32_157 : i32
    %c0_158 = arith.constant 0 : index
    %c0_159 = arith.constant 0 : index
    %399 = vector.load %arg6[%c0_158, %c0_159] : memref<128x384xf32, #tpu.memory_space<vmem>>, vector<128x384xf32>
    %cst_160 = arith.constant dense<0.000000e+00> : vector<8x384xf32>
    %400 = tpu.matmul %397, %399, %cst_160 {dimension_numbers = #tpu.dot_dimension_numbers<[1], [0], [0], [1], [0, 0, 1, 1], [], []>} : vector<8x128xf32>, vector<128x384xf32>, vector<8x384xf32> -> vector<8x384xf32>
    %c0_161 = arith.constant 0 : index
    %c0_162 = arith.constant 0 : index
    %401 = vector.load %arg7[%c0_161, %c0_162] : memref<1x384xf32, #tpu.memory_space<vmem>>, vector<1x384xf32>
    %402 = vector.broadcast %401 : vector<1x384xf32> to vector<8x384xf32>
    %403 = arith.addf %400, %402 : vector<8x384xf32>
    %c0_163 = arith.constant 0 : index
    %c0_164 = arith.constant 0 : index
    %404 = vector.load %arg8[%c0_163, %c0_164] : memref<128x384xf32, #tpu.memory_space<vmem>>, vector<128x384xf32>
    %cst_165 = arith.constant dense<0.000000e+00> : vector<8x384xf32>
    %405 = tpu.matmul %356, %404, %cst_165 {dimension_numbers = #tpu.dot_dimension_numbers<[1], [0], [0], [1], [0, 0, 1, 1], [], []>} : vector<8x128xf32>, vector<128x384xf32>, vector<8x384xf32> -> vector<8x384xf32>
    %c0_166 = arith.constant 0 : index
    %c0_167 = arith.constant 0 : index
    %406 = vector.load %arg9[%c0_166, %c0_167] : memref<1x384xf32, #tpu.memory_space<vmem>>, vector<1x384xf32>
    %407 = vector.broadcast %406 : vector<1x384xf32> to vector<8x384xf32>
    %408 = arith.addf %405, %407 : vector<8x384xf32>
    %409 = vector.extract_strided_slice %403 {offsets = [0, 0], sizes = [8, 256], strides = [1, 1]} : vector<8x384xf32> to vector<8x256xf32>
    %410 = vector.extract_strided_slice %408 {offsets = [0, 0], sizes = [8, 256], strides = [1, 1]} : vector<8x384xf32> to vector<8x256xf32>
    %411 = arith.addf %409, %410 : vector<8x256xf32>
    %412 = arith.negf %411 : vector<8x256xf32>
    %413 = math.exp %412 : vector<8x256xf32>
    %cst_168 = arith.constant 1.000000e+00 : f32
    %414 = vector.broadcast %cst_168 : f32 to vector<8x256xf32>
    %415 = arith.addf %414, %413 : vector<8x256xf32>
    %416 = arith.divf %414, %415 : vector<8x256xf32>
    %417 = vector.extract_strided_slice %416 {offsets = [0, 0], sizes = [8, 128], strides = [1, 1]} : vector<8x256xf32> to vector<8x128xf32>
    %418 = vector.extract_strided_slice %416 {offsets = [0, 128], sizes = [8, 128], strides = [1, 1]} : vector<8x256xf32> to vector<8x128xf32>
    %419 = vector.extract_strided_slice %403 {offsets = [0, 256], sizes = [8, 128], strides = [1, 1]} : vector<8x384xf32> to vector<8x128xf32>
    %420 = vector.extract_strided_slice %408 {offsets = [0, 256], sizes = [8, 128], strides = [1, 1]} : vector<8x384xf32> to vector<8x128xf32>
    %421 = arith.mulf %417, %420 : vector<8x128xf32>
    %422 = arith.addf %419, %421 : vector<8x128xf32>
    %423 = math.tanh %422 : vector<8x128xf32>
    %cst_169 = arith.constant 1.000000e+00 : f32
    %424 = vector.broadcast %cst_169 : f32 to vector<8x128xf32>
    %425 = arith.subf %424, %418 : vector<8x128xf32>
    %426 = arith.mulf %425, %423 : vector<8x128xf32>
    %427 = arith.mulf %418, %356 : vector<8x128xf32>
    %428 = arith.addf %426, %427 : vector<8x128xf32>
    %c0_170 = arith.constant 0 : index
    %c0_171 = arith.constant 0 : index
    %429 = vector.load %arg10[%c0_170, %c0_171] : memref<128x128xf32, #tpu.memory_space<vmem>>, vector<128x128xf32>
    %cst_172 = arith.constant dense<0.000000e+00> : vector<8x128xf32>
    %430 = tpu.matmul %428, %429, %cst_172 {dimension_numbers = #tpu.dot_dimension_numbers<[1], [0], [0], [1], [0, 0, 1, 1], [], []>} : vector<8x128xf32>, vector<128x128xf32>, vector<8x128xf32> -> vector<8x128xf32>
    %c0_173 = arith.constant 0 : index
    %c0_174 = arith.constant 0 : index
    %431 = vector.load %arg11[%c0_173, %c0_174] : memref<1x128xf32, #tpu.memory_space<vmem>>, vector<1x128xf32>
    %432 = vector.broadcast %431 : vector<1x128xf32> to vector<8x128xf32>
    %433 = arith.addf %430, %432 : vector<8x128xf32>
    %cst_175 = arith.constant 0.000000e+00 : f32
    %434 = vector.broadcast %cst_175 : f32 to vector<8x128xf32>
    %435 = arith.maximumf %433, %434 : vector<8x128xf32>
    %436 = arith.index_cast %398 : i32 to index
    %437 = memref.load %arg12[%436] : memref<8xf32, #tpu.memory_space<smem>>
    %438 = vector.broadcast %437 : f32 to vector<8x128xf32>
    %439 = arith.mulf %435, %438 : vector<8x128xf32>
    %440 = arith.addf %368, %439 : vector<8x128xf32>
    %c8_i32_176 = arith.constant 8 : i32
    %441 = arith.muli %c6_i32, %c8_i32_176 : i32
    %442 = tpu.assume_multiple %441, 8 : i32
    %443 = arith.index_cast %442 : i32 to index
    %c0_177 = arith.constant 0 : index
    %444 = vector.load %arg15[%443, %c0_177] : memref<64x384xf32, #tpu.memory_space<vmem>>, vector<8x384xf32>
    %c0_178 = arith.constant 0 : index
    %c0_179 = arith.constant 0 : index
    %445 = vector.load %arg4[%c0_178, %c0_179] : memref<128x384xf32, #tpu.memory_space<vmem>>, vector<128x384xf32>
    %cst_180 = arith.constant dense<0.000000e+00> : vector<8x384xf32>
    %446 = tpu.matmul %397, %445, %cst_180 {dimension_numbers = #tpu.dot_dimension_numbers<[1], [0], [0], [1], [0, 0, 1, 1], [], []>} : vector<8x128xf32>, vector<128x384xf32>, vector<8x384xf32> -> vector<8x384xf32>
    %c0_181 = arith.constant 0 : index
    %c0_182 = arith.constant 0 : index
    %447 = vector.load %arg5[%c0_181, %c0_182] : memref<1x384xf32, #tpu.memory_space<vmem>>, vector<1x384xf32>
    %448 = vector.broadcast %447 : vector<1x384xf32> to vector<8x384xf32>
    %449 = arith.addf %446, %448 : vector<8x384xf32>
    %450 = vector.extract_strided_slice %444 {offsets = [0, 0], sizes = [8, 256], strides = [1, 1]} : vector<8x384xf32> to vector<8x256xf32>
    %451 = vector.extract_strided_slice %449 {offsets = [0, 0], sizes = [8, 256], strides = [1, 1]} : vector<8x384xf32> to vector<8x256xf32>
    %452 = arith.addf %450, %451 : vector<8x256xf32>
    %453 = arith.negf %452 : vector<8x256xf32>
    %454 = math.exp %453 : vector<8x256xf32>
    %cst_183 = arith.constant 1.000000e+00 : f32
    %455 = vector.broadcast %cst_183 : f32 to vector<8x256xf32>
    %456 = arith.addf %455, %454 : vector<8x256xf32>
    %457 = arith.divf %455, %456 : vector<8x256xf32>
    %458 = vector.extract_strided_slice %457 {offsets = [0, 0], sizes = [8, 128], strides = [1, 1]} : vector<8x256xf32> to vector<8x128xf32>
    %459 = vector.extract_strided_slice %457 {offsets = [0, 128], sizes = [8, 128], strides = [1, 1]} : vector<8x256xf32> to vector<8x128xf32>
    %460 = vector.extract_strided_slice %444 {offsets = [0, 256], sizes = [8, 128], strides = [1, 1]} : vector<8x384xf32> to vector<8x128xf32>
    %461 = vector.extract_strided_slice %449 {offsets = [0, 256], sizes = [8, 128], strides = [1, 1]} : vector<8x384xf32> to vector<8x128xf32>
    %462 = arith.mulf %458, %461 : vector<8x128xf32>
    %463 = arith.addf %460, %462 : vector<8x128xf32>
    %464 = math.tanh %463 : vector<8x128xf32>
    %cst_184 = arith.constant 1.000000e+00 : f32
    %465 = vector.broadcast %cst_184 : f32 to vector<8x128xf32>
    %466 = arith.subf %465, %459 : vector<8x128xf32>
    %467 = arith.mulf %466, %464 : vector<8x128xf32>
    %468 = arith.mulf %459, %397 : vector<8x128xf32>
    %469 = arith.addf %467, %468 : vector<8x128xf32>
    %c7_i32 = arith.constant 7 : i32
    %c1_i32_185 = arith.constant 1 : i32
    %470 = arith.subi %c7_i32, %c1_i32_185 : i32
    %c0_186 = arith.constant 0 : index
    %c0_187 = arith.constant 0 : index
    %471 = vector.load %arg6[%c0_186, %c0_187] : memref<128x384xf32, #tpu.memory_space<vmem>>, vector<128x384xf32>
    %cst_188 = arith.constant dense<0.000000e+00> : vector<8x384xf32>
    %472 = tpu.matmul %469, %471, %cst_188 {dimension_numbers = #tpu.dot_dimension_numbers<[1], [0], [0], [1], [0, 0, 1, 1], [], []>} : vector<8x128xf32>, vector<128x384xf32>, vector<8x384xf32> -> vector<8x384xf32>
    %c0_189 = arith.constant 0 : index
    %c0_190 = arith.constant 0 : index
    %473 = vector.load %arg7[%c0_189, %c0_190] : memref<1x384xf32, #tpu.memory_space<vmem>>, vector<1x384xf32>
    %474 = vector.broadcast %473 : vector<1x384xf32> to vector<8x384xf32>
    %475 = arith.addf %472, %474 : vector<8x384xf32>
    %c0_191 = arith.constant 0 : index
    %c0_192 = arith.constant 0 : index
    %476 = vector.load %arg8[%c0_191, %c0_192] : memref<128x384xf32, #tpu.memory_space<vmem>>, vector<128x384xf32>
    %cst_193 = arith.constant dense<0.000000e+00> : vector<8x384xf32>
    %477 = tpu.matmul %428, %476, %cst_193 {dimension_numbers = #tpu.dot_dimension_numbers<[1], [0], [0], [1], [0, 0, 1, 1], [], []>} : vector<8x128xf32>, vector<128x384xf32>, vector<8x384xf32> -> vector<8x384xf32>
    %c0_194 = arith.constant 0 : index
    %c0_195 = arith.constant 0 : index
    %478 = vector.load %arg9[%c0_194, %c0_195] : memref<1x384xf32, #tpu.memory_space<vmem>>, vector<1x384xf32>
    %479 = vector.broadcast %478 : vector<1x384xf32> to vector<8x384xf32>
    %480 = arith.addf %477, %479 : vector<8x384xf32>
    %481 = vector.extract_strided_slice %475 {offsets = [0, 0], sizes = [8, 256], strides = [1, 1]} : vector<8x384xf32> to vector<8x256xf32>
    %482 = vector.extract_strided_slice %480 {offsets = [0, 0], sizes = [8, 256], strides = [1, 1]} : vector<8x384xf32> to vector<8x256xf32>
    %483 = arith.addf %481, %482 : vector<8x256xf32>
    %484 = arith.negf %483 : vector<8x256xf32>
    %485 = math.exp %484 : vector<8x256xf32>
    %cst_196 = arith.constant 1.000000e+00 : f32
    %486 = vector.broadcast %cst_196 : f32 to vector<8x256xf32>
    %487 = arith.addf %486, %485 : vector<8x256xf32>
    %488 = arith.divf %486, %487 : vector<8x256xf32>
    %489 = vector.extract_strided_slice %488 {offsets = [0, 0], sizes = [8, 128], strides = [1, 1]} : vector<8x256xf32> to vector<8x128xf32>
    %490 = vector.extract_strided_slice %488 {offsets = [0, 128], sizes = [8, 128], strides = [1, 1]} : vector<8x256xf32> to vector<8x128xf32>
    %491 = vector.extract_strided_slice %475 {offsets = [0, 256], sizes = [8, 128], strides = [1, 1]} : vector<8x384xf32> to vector<8x128xf32>
    %492 = vector.extract_strided_slice %480 {offsets = [0, 256], sizes = [8, 128], strides = [1, 1]} : vector<8x384xf32> to vector<8x128xf32>
    %493 = arith.mulf %489, %492 : vector<8x128xf32>
    %494 = arith.addf %491, %493 : vector<8x128xf32>
    %495 = math.tanh %494 : vector<8x128xf32>
    %cst_197 = arith.constant 1.000000e+00 : f32
    %496 = vector.broadcast %cst_197 : f32 to vector<8x128xf32>
    %497 = arith.subf %496, %490 : vector<8x128xf32>
    %498 = arith.mulf %497, %495 : vector<8x128xf32>
    %499 = arith.mulf %490, %428 : vector<8x128xf32>
    %500 = arith.addf %498, %499 : vector<8x128xf32>
    %c0_198 = arith.constant 0 : index
    %c0_199 = arith.constant 0 : index
    %501 = vector.load %arg10[%c0_198, %c0_199] : memref<128x128xf32, #tpu.memory_space<vmem>>, vector<128x128xf32>
    %cst_200 = arith.constant dense<0.000000e+00> : vector<8x128xf32>
    %502 = tpu.matmul %500, %501, %cst_200 {dimension_numbers = #tpu.dot_dimension_numbers<[1], [0], [0], [1], [0, 0, 1, 1], [], []>} : vector<8x128xf32>, vector<128x128xf32>, vector<8x128xf32> -> vector<8x128xf32>
    %c0_201 = arith.constant 0 : index
    %c0_202 = arith.constant 0 : index
    %503 = vector.load %arg11[%c0_201, %c0_202] : memref<1x128xf32, #tpu.memory_space<vmem>>, vector<1x128xf32>
    %504 = vector.broadcast %503 : vector<1x128xf32> to vector<8x128xf32>
    %505 = arith.addf %502, %504 : vector<8x128xf32>
    %cst_203 = arith.constant 0.000000e+00 : f32
    %506 = vector.broadcast %cst_203 : f32 to vector<8x128xf32>
    %507 = arith.maximumf %505, %506 : vector<8x128xf32>
    %508 = arith.index_cast %470 : i32 to index
    %509 = memref.load %arg12[%508] : memref<8xf32, #tpu.memory_space<smem>>
    %510 = vector.broadcast %509 : f32 to vector<8x128xf32>
    %511 = arith.mulf %507, %510 : vector<8x128xf32>
    %512 = arith.addf %440, %511 : vector<8x128xf32>
    %c8_i32_204 = arith.constant 8 : i32
    %513 = arith.muli %c7_i32, %c8_i32_204 : i32
    %514 = tpu.assume_multiple %513, 8 : i32
    %515 = arith.index_cast %514 : i32 to index
    %c0_205 = arith.constant 0 : index
    %516 = vector.load %arg15[%515, %c0_205] : memref<64x384xf32, #tpu.memory_space<vmem>>, vector<8x384xf32>
    %c0_206 = arith.constant 0 : index
    %c0_207 = arith.constant 0 : index
    %517 = vector.load %arg4[%c0_206, %c0_207] : memref<128x384xf32, #tpu.memory_space<vmem>>, vector<128x384xf32>
    %cst_208 = arith.constant dense<0.000000e+00> : vector<8x384xf32>
    %518 = tpu.matmul %469, %517, %cst_208 {dimension_numbers = #tpu.dot_dimension_numbers<[1], [0], [0], [1], [0, 0, 1, 1], [], []>} : vector<8x128xf32>, vector<128x384xf32>, vector<8x384xf32> -> vector<8x384xf32>
    %c0_209 = arith.constant 0 : index
    %c0_210 = arith.constant 0 : index
    %519 = vector.load %arg5[%c0_209, %c0_210] : memref<1x384xf32, #tpu.memory_space<vmem>>, vector<1x384xf32>
    %520 = vector.broadcast %519 : vector<1x384xf32> to vector<8x384xf32>
    %521 = arith.addf %518, %520 : vector<8x384xf32>
    %522 = vector.extract_strided_slice %516 {offsets = [0, 0], sizes = [8, 256], strides = [1, 1]} : vector<8x384xf32> to vector<8x256xf32>
    %523 = vector.extract_strided_slice %521 {offsets = [0, 0], sizes = [8, 256], strides = [1, 1]} : vector<8x384xf32> to vector<8x256xf32>
    %524 = arith.addf %522, %523 : vector<8x256xf32>
    %525 = arith.negf %524 : vector<8x256xf32>
    %526 = math.exp %525 : vector<8x256xf32>
    %cst_211 = arith.constant 1.000000e+00 : f32
    %527 = vector.broadcast %cst_211 : f32 to vector<8x256xf32>
    %528 = arith.addf %527, %526 : vector<8x256xf32>
    %529 = arith.divf %527, %528 : vector<8x256xf32>
    %530 = vector.extract_strided_slice %529 {offsets = [0, 0], sizes = [8, 128], strides = [1, 1]} : vector<8x256xf32> to vector<8x128xf32>
    %531 = vector.extract_strided_slice %529 {offsets = [0, 128], sizes = [8, 128], strides = [1, 1]} : vector<8x256xf32> to vector<8x128xf32>
    %532 = vector.extract_strided_slice %516 {offsets = [0, 256], sizes = [8, 128], strides = [1, 1]} : vector<8x384xf32> to vector<8x128xf32>
    %533 = vector.extract_strided_slice %521 {offsets = [0, 256], sizes = [8, 128], strides = [1, 1]} : vector<8x384xf32> to vector<8x128xf32>
    %534 = arith.mulf %530, %533 : vector<8x128xf32>
    %535 = arith.addf %532, %534 : vector<8x128xf32>
    %536 = math.tanh %535 : vector<8x128xf32>
    %cst_212 = arith.constant 1.000000e+00 : f32
    %537 = vector.broadcast %cst_212 : f32 to vector<8x128xf32>
    %538 = arith.subf %537, %531 : vector<8x128xf32>
    %539 = arith.mulf %538, %536 : vector<8x128xf32>
    %540 = arith.mulf %531, %469 : vector<8x128xf32>
    %541 = arith.addf %539, %540 : vector<8x128xf32>
    %c7_i32_213 = arith.constant 7 : i32
    %c0_214 = arith.constant 0 : index
    %c0_215 = arith.constant 0 : index
    %542 = vector.load %arg6[%c0_214, %c0_215] : memref<128x384xf32, #tpu.memory_space<vmem>>, vector<128x384xf32>
    %cst_216 = arith.constant dense<0.000000e+00> : vector<8x384xf32>
    %543 = tpu.matmul %541, %542, %cst_216 {dimension_numbers = #tpu.dot_dimension_numbers<[1], [0], [0], [1], [0, 0, 1, 1], [], []>} : vector<8x128xf32>, vector<128x384xf32>, vector<8x384xf32> -> vector<8x384xf32>
    %c0_217 = arith.constant 0 : index
    %c0_218 = arith.constant 0 : index
    %544 = vector.load %arg7[%c0_217, %c0_218] : memref<1x384xf32, #tpu.memory_space<vmem>>, vector<1x384xf32>
    %545 = vector.broadcast %544 : vector<1x384xf32> to vector<8x384xf32>
    %546 = arith.addf %543, %545 : vector<8x384xf32>
    %c0_219 = arith.constant 0 : index
    %c0_220 = arith.constant 0 : index
    %547 = vector.load %arg8[%c0_219, %c0_220] : memref<128x384xf32, #tpu.memory_space<vmem>>, vector<128x384xf32>
    %cst_221 = arith.constant dense<0.000000e+00> : vector<8x384xf32>
    %548 = tpu.matmul %500, %547, %cst_221 {dimension_numbers = #tpu.dot_dimension_numbers<[1], [0], [0], [1], [0, 0, 1, 1], [], []>} : vector<8x128xf32>, vector<128x384xf32>, vector<8x384xf32> -> vector<8x384xf32>
    %c0_222 = arith.constant 0 : index
    %c0_223 = arith.constant 0 : index
    %549 = vector.load %arg9[%c0_222, %c0_223] : memref<1x384xf32, #tpu.memory_space<vmem>>, vector<1x384xf32>
    %550 = vector.broadcast %549 : vector<1x384xf32> to vector<8x384xf32>
    %551 = arith.addf %548, %550 : vector<8x384xf32>
    %552 = vector.extract_strided_slice %546 {offsets = [0, 0], sizes = [8, 256], strides = [1, 1]} : vector<8x384xf32> to vector<8x256xf32>
    %553 = vector.extract_strided_slice %551 {offsets = [0, 0], sizes = [8, 256], strides = [1, 1]} : vector<8x384xf32> to vector<8x256xf32>
    %554 = arith.addf %552, %553 : vector<8x256xf32>
    %555 = arith.negf %554 : vector<8x256xf32>
    %556 = math.exp %555 : vector<8x256xf32>
    %cst_224 = arith.constant 1.000000e+00 : f32
    %557 = vector.broadcast %cst_224 : f32 to vector<8x256xf32>
    %558 = arith.addf %557, %556 : vector<8x256xf32>
    %559 = arith.divf %557, %558 : vector<8x256xf32>
    %560 = vector.extract_strided_slice %559 {offsets = [0, 0], sizes = [8, 128], strides = [1, 1]} : vector<8x256xf32> to vector<8x128xf32>
    %561 = vector.extract_strided_slice %559 {offsets = [0, 128], sizes = [8, 128], strides = [1, 1]} : vector<8x256xf32> to vector<8x128xf32>
    %562 = vector.extract_strided_slice %546 {offsets = [0, 256], sizes = [8, 128], strides = [1, 1]} : vector<8x384xf32> to vector<8x128xf32>
    %563 = vector.extract_strided_slice %551 {offsets = [0, 256], sizes = [8, 128], strides = [1, 1]} : vector<8x384xf32> to vector<8x128xf32>
    %564 = arith.mulf %560, %563 : vector<8x128xf32>
    %565 = arith.addf %562, %564 : vector<8x128xf32>
    %566 = math.tanh %565 : vector<8x128xf32>
    %cst_225 = arith.constant 1.000000e+00 : f32
    %567 = vector.broadcast %cst_225 : f32 to vector<8x128xf32>
    %568 = arith.subf %567, %561 : vector<8x128xf32>
    %569 = arith.mulf %568, %566 : vector<8x128xf32>
    %570 = arith.mulf %561, %500 : vector<8x128xf32>
    %571 = arith.addf %569, %570 : vector<8x128xf32>
    %c0_226 = arith.constant 0 : index
    %c0_227 = arith.constant 0 : index
    %572 = vector.load %arg10[%c0_226, %c0_227] : memref<128x128xf32, #tpu.memory_space<vmem>>, vector<128x128xf32>
    %cst_228 = arith.constant dense<0.000000e+00> : vector<8x128xf32>
    %573 = tpu.matmul %571, %572, %cst_228 {dimension_numbers = #tpu.dot_dimension_numbers<[1], [0], [0], [1], [0, 0, 1, 1], [], []>} : vector<8x128xf32>, vector<128x128xf32>, vector<8x128xf32> -> vector<8x128xf32>
    %c0_229 = arith.constant 0 : index
    %c0_230 = arith.constant 0 : index
    %574 = vector.load %arg11[%c0_229, %c0_230] : memref<1x128xf32, #tpu.memory_space<vmem>>, vector<1x128xf32>
    %575 = vector.broadcast %574 : vector<1x128xf32> to vector<8x128xf32>
    %576 = arith.addf %573, %575 : vector<8x128xf32>
    %cst_231 = arith.constant 0.000000e+00 : f32
    %577 = vector.broadcast %cst_231 : f32 to vector<8x128xf32>
    %578 = arith.maximumf %576, %577 : vector<8x128xf32>
    %c7 = arith.constant 7 : index
    %579 = memref.load %arg12[%c7] : memref<8xf32, #tpu.memory_space<smem>>
    %580 = vector.broadcast %579 : f32 to vector<8x128xf32>
    %581 = arith.mulf %578, %580 : vector<8x128xf32>
    %582 = arith.addf %512, %581 : vector<8x128xf32>
    %c0_232 = arith.constant 0 : index
    %583 = memref.load %arg13[%c0_232] : memref<1xf32, #tpu.memory_space<smem>>
    %584 = vector.broadcast %583 : f32 to vector<8x128xf32>
    %585 = arith.addf %582, %584 : vector<8x128xf32>
    %cst_233 = arith.constant 0.000000e+00 : f32
    %586 = vector.broadcast %cst_233 : f32 to vector<8x128xf32>
    %587 = arith.maximumf %585, %586 : vector<8x128xf32>
    %c0_234 = arith.constant 0 : index
    %c0_235 = arith.constant 0 : index
    %588 = vector.load %arg14[%c0_234, %c0_235] : memref<8x128xf32, #tpu.memory_space<vmem>>, vector<8x128xf32>
    tpu.vector_store %arg14[%c0_234, %c0_235], %587 {strides = array<i32>} : memref<8x128xf32, #tpu.memory_space<vmem>>, vector<8x128xf32>,
    return
  }
  func.func @transform_0(%arg0: i32) -> (i32, i32, i32) {
    %c0_i32 = arith.constant 0 : i32
    %c0_i32_0 = arith.constant 0 : i32
    %c0_i32_1 = arith.constant 0 : i32
    return %arg0, %c0_i32, %c0_i32_0 : i32, i32, i32
  }
  func.func @transform_1(%arg0: i32) -> (i32, i32) {
    %c0_i32 = arith.constant 0 : i32
    %c0_i32_0 = arith.constant 0 : i32
    %c0_i32_1 = arith.constant 0 : i32
    return %c0_i32, %c0_i32_0 : i32, i32
  }
  func.func @transform_2(%arg0: i32) -> (i32, i32) {
    %c0_i32 = arith.constant 0 : i32
    %c0_i32_0 = arith.constant 0 : i32
    %c0_i32_1 = arith.constant 0 : i32
    return %c0_i32, %c0_i32_0 : i32, i32
  }
  func.func @transform_3(%arg0: i32) -> (i32, i32) {
    %c0_i32 = arith.constant 0 : i32
    %c0_i32_0 = arith.constant 0 : i32
    %c0_i32_1 = arith.constant 0 : i32
    return %c0_i32, %c0_i32_0 : i32, i32
  }
  func.func @transform_4(%arg0: i32) -> (i32, i32) {
    %c0_i32 = arith.constant 0 : i32
    %c0_i32_0 = arith.constant 0 : i32
    %c0_i32_1 = arith.constant 0 : i32
    return %c0_i32, %c0_i32_0 : i32, i32
  }
  func.func @transform_5(%arg0: i32) -> (i32, i32) {
    %c0_i32 = arith.constant 0 : i32
    %c0_i32_0 = arith.constant 0 : i32
    %c0_i32_1 = arith.constant 0 : i32
    return %c0_i32, %c0_i32_0 : i32, i32
  }
  func.func @transform_6(%arg0: i32) -> (i32, i32) {
    %c0_i32 = arith.constant 0 : i32
    %c0_i32_0 = arith.constant 0 : i32
    %c0_i32_1 = arith.constant 0 : i32
    return %c0_i32, %c0_i32_0 : i32, i32
  }
  func.func @transform_7(%arg0: i32) -> (i32, i32) {
    %c0_i32 = arith.constant 0 : i32
    %c0_i32_0 = arith.constant 0 : i32
    %c0_i32_1 = arith.constant 0 : i32
    return %c0_i32, %c0_i32_0 : i32, i32
  }
  func.func @transform_8(%arg0: i32) -> (i32, i32) {
    %c0_i32 = arith.constant 0 : i32
    %c0_i32_0 = arith.constant 0 : i32
    %c0_i32_1 = arith.constant 0 : i32
    return %c0_i32, %c0_i32_0 : i32, i32
  }
  func.func @transform_9(%arg0: i32) -> (i32, i32) {
    %c0_i32 = arith.constant 0 : i32
    %c0_i32_0 = arith.constant 0 : i32
    %c0_i32_1 = arith.constant 0 : i32
    return %c0_i32, %c0_i32_0 : i32, i32
  }
  func.func @transform_10(%arg0: i32) -> (i32, i32) {
    %c0_i32 = arith.constant 0 : i32
    %c0_i32_0 = arith.constant 0 : i32
    %c0_i32_1 = arith.constant 0 : i32
    return %c0_i32, %c0_i32_0 : i32, i32
  }
  func.func @transform_11(%arg0: i32) -> i32 {
    %c0_i32 = arith.constant 0 : i32
    %c0_i32_0 = arith.constant 0 : i32
    return %c0_i32 : i32
  }
  func.func @transform_12(%arg0: i32) -> i32 {
    %c0_i32 = arith.constant 0 : i32
    %c0_i32_0 = arith.constant 0 : i32
    return %c0_i32 : i32
  }
  func.func @transform_13(%arg0: i32) -> (i32, i32) {
    %c0_i32 = arith.constant 0 : i32
    %c0_i32_0 = arith.constant 0 : i32
    return %arg0, %c0_i32 : i32, i32
  }
}

</mosaic_0001>

<llo_original>
// kernel: grunet_forward.1
$region0: #{grunet_forward.1}
  #allocation0 [shape = 'u32[]', space=smem, size = 0x4, offset = 0x4, fixed_abs, tag = 'smem constant byte address 0x4 - core index']
  #allocation1 [shape = 'u32[144,128]{1,0:T(1,128)}', space=vmem, size = 0x12000, scoped, tag = 'internal scratch']
  #allocation2 [shape = 'f32[64,384]{1,0:T(8,128)}', space=vmem, size = 0x18000, scoped, tag = 'scratch operand']
  #allocation3 [shape = 'f32[1]{0:T(128)S(6)}', space=smem, size = 0x200, scoped, tag = 'scoped memory for grunet_forward.1']
  %s0 = inlined_call_operand.vmem [shape: f32[1,64,64], index: 0, kind: input, shape index: {}]
  %s1 = inlined_call_operand.vmem [shape: f32[64,384], index: 1, kind: input, shape index: {}]
  %s2 = inlined_call_operand.vmem [shape: f32[1,384], index: 2, kind: input, shape index: {}]
  %s3 = inlined_call_operand.vmem [shape: f32[128,384], index: 3, kind: input, shape index: {}]
  %s4 = inlined_call_operand.vmem [shape: f32[1,384], index: 4, kind: input, shape index: {}]
  %s5 = inlined_call_operand.vmem [shape: f32[128,384], index: 5, kind: input, shape index: {}]
  %s6 = inlined_call_operand.vmem [shape: f32[1,384], index: 6, kind: input, shape index: {}]
  %s7 = inlined_call_operand.vmem [shape: f32[128,384], index: 7, kind: input, shape index: {}]
  %s8 = inlined_call_operand.vmem [shape: f32[1,384], index: 8, kind: input, shape index: {}]
  %s9 = inlined_call_operand.vmem [shape: f32[128,128], index: 9, kind: input, shape index: {}]
  %s10 = inlined_call_operand.vmem [shape: f32[1,128], index: 10, kind: input, shape index: {}]
  %s11 = inlined_call_operand.vmem [shape: f32[8], index: 11, kind: input, shape index: {}]
  %s12 = inlined_call_operand.<no memory space> [shape: f32[1], index: 12, kind: input, shape index: {}]
  %s13 = inlined_call_operand.vmem [shape: f32[8,128], index: 13, kind: output, shape index: {}]
  %s14 = sld [smem:[#allocation0]]
  $region66: #{grunet_forward.1} parent=0
    _
  %s16 = ssub.s32 1, %s14
  %s17 = scalar_select 0, %s16, %s14
  %18 = sst [smem:[#allocation3]] %s12
  $region1: #{grunet_forward.1} parent=0
    #allocation4 [shape = 'u8[512]{0}', space=smem, size = 0x200, scoped, tag = 'input window, operand 11, single buffered']
    #allocation5 [shape = 's32[1]{0}', space=sflag, size = 0x4, scoped, tag = 'scoped memory for grunet_forward.1']
    %19 = vsyncpa [#allocation5], 0
    // Predicated region
    $region2: #{grunet_forward.1} parent=1 // pred_check
      _
    $region3: #{grunet_forward.1} parent=1 // pred_check_branch
      %21 = sbr.rel (0) target = $region5
    $region4: #{grunet_forward.1} parent=1 // pred_region
      _
    $region5: #{grunet_forward.1} parent=1 // pred_fallthru
      _
    // Predicated region
    $region6: #{grunet_forward.1} parent=1 // pred_check
      _
    $region7: #{grunet_forward.1} parent=1 // pred_check_branch
      %23 = sbr.rel (0) target = $region9
    $region8: #{grunet_forward.1} parent=1 // pred_region
      _
    $region9: #{grunet_forward.1} parent=1 // pred_fallthru
      _
    // Predicated region
    $region10: #{grunet_forward.1} parent=1 // pred_check
      _
    $region11: #{grunet_forward.1} parent=1 // pred_check_branch
      %25 = sbr.rel (0) target = $region13
    $region12: #{grunet_forward.1} parent=1 // pred_region
      _
    $region13: #{grunet_forward.1} parent=1 // pred_fallthru
      _
    // Predicated region
    $region14: #{grunet_forward.1} parent=1 // pred_check
      _
    $region15: #{grunet_forward.1} parent=1 // pred_check_branch
      %27 = sbr.rel (0) target = $region17
    $region16: #{grunet_forward.1} parent=1 // pred_region
      _
    $region17: #{grunet_forward.1} parent=1 // pred_fallthru
      _
    // Predicated region
    $region18: #{grunet_forward.1} parent=1 // pred_check
      _
    $region19: #{grunet_forward.1} parent=1 // pred_check_branch
      %29 = sbr.rel (0) target = $region21
    $region20: #{grunet_forward.1} parent=1 // pred_region
      _
    $region21: #{grunet_forward.1} parent=1 // pred_fallthru
      _
    // Predicated region
    $region22: #{grunet_forward.1} parent=1 // pred_check
      _
    $region23: #{grunet_forward.1} parent=1 // pred_check_branch
      %31 = sbr.rel (0) target = $region25
    $region24: #{grunet_forward.1} parent=1 // pred_region
      _
    $region25: #{grunet_forward.1} parent=1 // pred_fallthru
      _
    // Predicated region
    $region26: #{grunet_forward.1} parent=1 // pred_check
      _
    $region27: #{grunet_forward.1} parent=1 // pred_check_branch
      %33 = sbr.rel (0) target = $region29
    $region28: #{grunet_forward.1} parent=1 // pred_region
      _
    $region29: #{grunet_forward.1} parent=1 // pred_fallthru
      _
    // Predicated region
    $region30: #{grunet_forward.1} parent=1 // pred_check
      _
    $region31: #{grunet_forward.1} parent=1 // pred_check_branch
      %35 = sbr.rel (0) target = $region33
    $region32: #{grunet_forward.1} parent=1 // pred_region
      _
    $region33: #{grunet_forward.1} parent=1 // pred_fallthru
      _
    // Predicated region
    $region34: #{grunet_forward.1} parent=1 // pred_check
      _
    $region35: #{grunet_forward.1} parent=1 // pred_check_branch
      %37 = sbr.rel (0) target = $region37
    $region36: #{grunet_forward.1} parent=1 // pred_region
      _
    $region37: #{grunet_forward.1} parent=1 // pred_fallthru
      _
    // Predicated region
    $region38: #{grunet_forward.1} parent=1 // pred_check
      _
    $region39: #{grunet_forward.1} parent=1 // pred_check_branch
      %39 = sbr.rel (0) target = $region41
    $region40: #{grunet_forward.1} parent=1 // pred_region
      _
    $region41: #{grunet_forward.1} parent=1 // pred_fallthru
      _
    // Predicated region
    $region42: #{grunet_forward.1} parent=1 // pred_check
      _
    $region43: #{grunet_forward.1} parent=1 // pred_check_branch
      %41 = sbr.rel (0) target = $region45
    $region44: #{grunet_forward.1} parent=1 // pred_region
      _
    $region45: #{grunet_forward.1} parent=1 // pred_fallthru
      _
    // Predicated region
    $region46: #{grunet_forward.1} parent=1 // pred_check
      _
    $region47: #{grunet_forward.1} parent=1 // pred_check_branch
      %43 = sbr.rel (0) target = $region49
    $region48: #{grunet_forward.1} parent=1 // pred_region
      %s45 = ssub.s32 16, 16
      %46 = vsyncadd [#allocation5], %s45
      %s48 = sshll.u32 %s11, 4
      %s49 = int_to_ptr.vmem [resolvable:$true] %s48
      %51 = dma.vmem_to_smem %s49, 16, [#allocation4], [#allocation5]
    $region49: #{grunet_forward.1} parent=1 // pred_fallthru
      _
    // Predicated region
    $region50: #{grunet_forward.1} parent=1 // pred_check
      _
    $region51: #{grunet_forward.1} parent=1 // pred_check_branch
      %53 = sbr.rel (0) target = $region53
    $region52: #{grunet_forward.1} parent=1 // pred_region
      _
    $region53: #{grunet_forward.1} parent=1 // pred_fallthru
      _
    // Predicated region
    $region54: #{grunet_forward.1} parent=1 // pred_check
      _
    $region55: #{grunet_forward.1} parent=1 // pred_check_branch
      %55 = sbr.rel (0) target = $region57
    $region56: #{grunet_forward.1} parent=1 // pred_region
      %56 = dma.done [#allocation5], 16
    $region57: #{grunet_forward.1} parent=1 // pred_fallthru
      _
    %57 = sfence
    %v58 = vld [vmem:[%s0] sm:$0xff]
    %v59 = vld [vmem:[%s0 + $0x8] sm:$0xff]
    %v60 = vld [vmem:[%s0 + $0x10] sm:$0xff]
    %v61 = vld [vmem:[%s0 + $0x18] sm:$0xff]
    %v62 = vld [vmem:[%s0 + $0x20] sm:$0xff]
    %v63 = vld [vmem:[%s0 + $0x28] sm:$0xff]
    %v64 = vld [vmem:[%s0 + $0x30] sm:$0xff]
    %v65 = vld [vmem:[%s0 + $0x38] sm:$0xff]
    %v66 = vld [vmem:[%s1] sm:$0xff]
    %v67 = vld [vmem:[%s1 + $0x8] sm:$0xff]
    %v68 = vld [vmem:[%s1 + $0x10] sm:$0xff]
    %v69 = vld [vmem:[%s1 + $0x18] sm:$0xff]
    %v70 = vld [vmem:[%s1 + $0x20] sm:$0xff]
    %v71 = vld [vmem:[%s1 + $0x28] sm:$0xff]
    %v72 = vld [vmem:[%s1 + $0x30] sm:$0xff]
    %v73 = vld [vmem:[%s1 + $0x38] sm:$0xff]
    %v74 = vld [vmem:[%s1 + $0x40] sm:$0xff]
    %v75 = vld [vmem:[%s1 + $0x48] sm:$0xff]
    %v76 = vld [vmem:[%s1 + $0x50] sm:$0xff]
    %v77 = vld [vmem:[%s1 + $0x58] sm:$0xff]
    %v78 = vld [vmem:[%s1 + $0x60] sm:$0xff]
    %v79 = vld [vmem:[%s1 + $0x68] sm:$0xff]
    %v80 = vld [vmem:[%s1 + $0x70] sm:$0xff]
    %v81 = vld [vmem:[%s1 + $0x78] sm:$0xff]
    %v82 = vld [vmem:[%s1 + $0x80] sm:$0xff]
    %v83 = vld [vmem:[%s1 + $0x88] sm:$0xff]
    %v84 = vld [vmem:[%s1 + $0x90] sm:$0xff]
    %v85 = vld [vmem:[%s1 + $0x98] sm:$0xff]
    %v86 = vld [vmem:[%s1 + $0xa0] sm:$0xff]
    %v87 = vld [vmem:[%s1 + $0xa8] sm:$0xff]
    %v88 = vld [vmem:[%s1 + $0xb0] sm:$0xff]
    %v89 = vld [vmem:[%s1 + $0xb8] sm:$0xff]
    %v90 = vld [vmem:[%s2] sm:$0x7]
    %v92 = vlaneseq
    %v93 = vshrl.u32 %v92, 7
    %v94 = vsub.s32 0, %v93
    %v95 = vrot.slane %v90, %v94
    %v96 = vlaneseq
    %v97 = vshrl.u32 %v96, 7
    %v98 = vsub.s32 1, %v97
    %v99 = vrot.slane %v90, %v98
    %v100 = vlaneseq
    %v101 = vshrl.u32 %v100, 7
    %v102 = vsub.s32 2, %v101
    %v103 = vrot.slane %v90, %v102
    %vm107 = vcmask 523264
    %v109 = vsel %vm107, %v58, 0
    %v112 = vsel %vm107, %v59, 0
    %v115 = vsel %vm107, %v60, 0
    %v118 = vsel %vm107, %v61, 0
    %v121 = vsel %vm107, %v62, 0
    %v124 = vsel %vm107, %v63, 0
    %v127 = vsel %vm107, %v64, 0
    %v130 = vsel %vm107, %v65, 0
    %132 = vmatprep.subr.mxu0 %v67
    %133 = vmatpush1.msra.mxu0 %v66
    %134 = vmatprep.subr.mxu0 %v70
    %135 = vmatpush1.msra.mxu0 %v69
    %136 = vmatprep.subr.mxu0 %v73
    %137 = vmatpush1.msra.mxu0 %v72
    %138 = vmatprep.subr.mxu0 %v76
    %139 = vmatpush1.msra.mxu0 %v75
    %140 = vmatprep.subr.mxu0 %v79
    %141 = vmatpush1.msra.mxu0 %v78
    %142 = vmatprep.subr.mxu0 %v82
    %143 = vmatpush1.msra.mxu0 %v81
    %144 = vmatprep.subr.mxu0 %v85
    %145 = vmatpush1.msra.mxu0 %v84
    %146 = vmatprep.subr.mxu0 %v88
    %147 = vmatpush1.msra.mxu0 %v87
    %148 = vmatprep.subr.mxu0 0.0
    %149 = vmatpush1.msra.mxu0 0.0
    %150 = vmatprep.subr.mxu0 0.0
    %151 = vmatpush1.msra.mxu0 0.0
    %152 = vmatprep.subr.mxu0 0.0
    %153 = vmatpush1.msra.mxu0 0.0
    %154 = vmatprep.subr.mxu0 0.0
    %155 = vmatpush1.msra.mxu0 0.0
    %156 = vmatprep.subr.mxu0 0.0
    %157 = vmatpush1.msra.mxu0 0.0
    %158 = vmatprep.subr.mxu0 0.0
    %159 = vmatpush1.msra.mxu0 0.0
    %160 = vmatprep.subr.mxu0 0.0
    %161 = vmatpush1.msra.mxu0 0.0
    %162 = vmatprep.subr.mxu0 0.0
    %163 = vmatpush1.msra.mxu0 0.0
    %164 = vmatprep.subr.mxu0 0.0
    %165 = vmatpush1.msra.mxu0 0.0
    %166 = vmatprep.subr.mxu0 0.0
    %167 = vmatpush1.msra.mxu0 0.0
    %168 = vmatprep.subr.mxu0 0.0
    %169 = vmatpush1.msra.mxu0 0.0
    %170 = vmatprep.subr.mxu0 0.0
    %171 = vmatpush1.msra.mxu0 0.0
    %172 = vmatprep.subr.mxu0 0.0
    %173 = vmatpush1.msra.mxu0 0.0
    %174 = vmatprep.subr.mxu0 0.0
    %175 = vmatpush1.msra.mxu0 0.0
    %176 = vmatprep.subr.mxu0 0.0
    %177 = vmatpush1.msra.mxu0 0.0
    %178 = vmatprep.subr.mxu0 0.0
    %179 = vmatpush1.msra.mxu0 0.0
    %180 = vmatprep.subr.mxu0 0.0
    %181 = vmatpush1.msra.mxu0 0.0
    %182 = vmatprep.subr.mxu0 0.0
    %183 = vmatpush1.msra.mxu0 0.0
    %184 = vmatprep.subr.mxu0 0.0
    %185 = vmatpush1.msra.mxu0 0.0
    %186 = vmatprep.subr.mxu0 0.0
    %187 = vmatpush1.msra.mxu0 0.0
    %188 = vmatprep.subr.mxu0 0.0
    %189 = vmatpush1.msra.mxu0 0.0
    %190 = vmatprep.subr.mxu0 0.0
    %191 = vmatpush1.msra.mxu0 0.0
    %192 = vmatprep.subr.mxu0 0.0
    %193 = vmatpush1.msra.mxu0 0.0
    %194 = vmatprep.subr.mxu0 0.0
    %195 = vmatpush1.msra.mxu0 0.0
    %196 = vmatprep.mubr.f32.mxu0 0.0
    %197 = vmatmul.mubr.f32.gmra.mrb[0].mxu0 %v109
    %v198 = vpop.f32.mrb[0].mxu0
    %v199 = vadd.f32 %v95, %v198
    %v200 = vpop.f32.mrb[0].mxu0
    %v201 = vadd.f32 %v99, %v200
    %202 = vmatprep.mubr.f32.mxu0 0.0
    %203 = vmatmul.mubr.f32.gmra.mrb[0].mxu0 %v112
    %v204 = vpop.f32.mrb[0].mxu0
    %v205 = vadd.f32 %v95, %v204
    %v206 = vpop.f32.mrb[0].mxu0
    %v207 = vadd.f32 %v99, %v206
    %208 = vmatprep.mubr.f32.mxu0 0.0
    %209 = vmatmul.mubr.f32.gmra.mrb[0].mxu0 %v115
    %v210 = vpop.f32.mrb[0].mxu0
    %v211 = vadd.f32 %v95, %v210
    %v212 = vpop.f32.mrb[0].mxu0
    %v213 = vadd.f32 %v99, %v212
    %214 = vmatprep.mubr.f32.mxu0 0.0
    %215 = vmatmul.mubr.f32.gmra.mrb[0].mxu0 %v118
    %v216 = vpop.f32.mrb[0].mxu0
    %v217 = vadd.f32 %v95, %v216
    %v218 = vpop.f32.mrb[0].mxu0
    %v219 = vadd.f32 %v99, %v218
    %220 = vmatprep.mubr.f32.mxu0 0.0
    %221 = vmatmul.mubr.f32.gmra.mrb[0].mxu0 %v121
    %v222 = vpop.f32.mrb[0].mxu0
    %v223 = vadd.f32 %v95, %v222
    %v224 = vpop.f32.mrb[0].mxu0
    %v225 = vadd.f32 %v99, %v224
    %226 = vmatprep.mubr.f32.mxu0 0.0
    %227 = vmatmul.mubr.f32.gmra.mrb[0].mxu0 %v124
    %v228 = vpop.f32.mrb[0].mxu0
    %v229 = vadd.f32 %v95, %v228
    %v230 = vpop.f32.mrb[0].mxu0
    %v231 = vadd.f32 %v99, %v230
    %232 = vmatprep.mubr.f32.mxu0 0.0
    %233 = vmatmul.mubr.f32.gmra.mrb[0].mxu0 %v127
    %v234 = vpop.f32.mrb[0].mxu0
    %v235 = vadd.f32 %v95, %v234
    %v236 = vpop.f32.mrb[0].mxu0
    %v237 = vadd.f32 %v99, %v236
    %238 = vmatprep.mubr.f32.mxu0 0.0
    %239 = vmatmul.mubr.f32.gmra.mrb[0].mxu0 %v130
    %v240 = vpop.f32.mrb[0].mxu0
    %v241 = vadd.f32 %v95, %v240
    %v242 = vpop.f32.mrb[0].mxu0
    %v243 = vadd.f32 %v99, %v242
    %244 = vdwg.mxu0
    %245 = vmatprep.subr.mxu0 0.0
    %246 = vmatpush1.msra.mxu0 %v68
    %247 = vmatprep.subr.mxu0 0.0
    %248 = vmatpush1.msra.mxu0 %v71
    %249 = vmatprep.subr.mxu0 0.0
    %250 = vmatpush1.msra.mxu0 %v74
    %251 = vmatprep.subr.mxu0 0.0
    %252 = vmatpush1.msra.mxu0 %v77
    %253 = vmatprep.subr.mxu0 0.0
    %254 = vmatpush1.msra.mxu0 %v80
    %255 = vmatprep.subr.mxu0 0.0
    %256 = vmatpush1.msra.mxu0 %v83
    %257 = vmatprep.subr.mxu0 0.0
    %258 = vmatpush1.msra.mxu0 %v86
    %259 = vmatprep.subr.mxu0 0.0
    %260 = vmatpush1.msra.mxu0 %v89
    %261 = vmatprep.subr.mxu0 0.0
    %262 = vmatpush1.msra.mxu0 0.0
    %263 = vmatprep.subr.mxu0 0.0
    %264 = vmatpush1.msra.mxu0 0.0
    %265 = vmatprep.subr.mxu0 0.0
    %266 = vmatpush1.msra.mxu0 0.0
    %267 = vmatprep.subr.mxu0 0.0
    %268 = vmatpush1.msra.mxu0 0.0
    %269 = vmatprep.subr.mxu0 0.0
    %270 = vmatpush1.msra.mxu0 0.0
    %271 = vmatprep.subr.mxu0 0.0
    %272 = vmatpush1.msra.mxu0 0.0
    %273 = vmatprep.subr.mxu0 0.0
    %274 = vmatpush1.msra.mxu0 0.0
    %275 = vmatprep.subr.mxu0 0.0
    %276 = vmatpush1.msra.mxu0 0.0
    %277 = vmatprep.subr.mxu0 0.0
    %278 = vmatpush1.msra.mxu0 0.0
    %279 = vmatprep.subr.mxu0 0.0
    %280 = vmatpush1.msra.mxu0 0.0
    %281 = vmatprep.subr.mxu0 0.0
    %282 = vmatpush1.msra.mxu0 0.0
    %283 = vmatprep.subr.mxu0 0.0
    %284 = vmatpush1.msra.mxu0 0.0
    %285 = vmatprep.subr.mxu0 0.0
    %286 = vmatpush1.msra.mxu0 0.0
    %287 = vmatprep.subr.mxu0 0.0
    %288 = vmatpush1.msra.mxu0 0.0
    %289 = vmatprep.subr.mxu0 0.0
    %290 = vmatpush1.msra.mxu0 0.0
    %291 = vmatprep.subr.mxu0 0.0
    %292 = vmatpush1.msra.mxu0 0.0
    %293 = vmatprep.subr.mxu0 0.0
    %294 = vmatpush1.msra.mxu0 0.0
    %295 = vmatprep.subr.mxu0 0.0
    %296 = vmatpush1.msra.mxu0 0.0
    %297 = vmatprep.subr.mxu0 0.0
    %298 = vmatpush1.msra.mxu0 0.0
    %299 = vmatprep.subr.mxu0 0.0
    %300 = vmatpush1.msra.mxu0 0.0
    %301 = vmatprep.subr.mxu0 0.0
    %302 = vmatpush1.msra.mxu0 0.0
    %303 = vmatprep.subr.mxu0 0.0
    %304 = vmatpush1.msra.mxu0 0.0
    %305 = vmatprep.subr.mxu0 0.0
    %306 = vmatpush1.msra.mxu0 0.0
    %307 = vmatprep.subr.mxu0 0.0
    %308 = vmatpush1.msra.mxu0 0.0
    %309 = vmatprep.mubr.f32.mxu0 0.0
    %310 = vmatmul.mubr.f32.gmra.mrb[0].mxu0 %v109
    %v311 = vpop.f32.mrb[0].mxu0
    %v312 = vadd.f32 %v103, %v311
    %v313 = vpop.f32.mrb[0].mxu0
    %314 = vmatprep.mubr.f32.mxu0 0.0
    %315 = vmatmul.mubr.f32.gmra.mrb[0].mxu0 %v112
    %v316 = vpop.f32.mrb[0].mxu0
    %v317 = vadd.f32 %v103, %v316
    %v318 = vpop.f32.mrb[0].mxu0
    %319 = vmatprep.mubr.f32.mxu0 0.0
    %320 = vmatmul.mubr.f32.gmra.mrb[0].mxu0 %v115
    %v321 = vpop.f32.mrb[0].mxu0
    %v322 = vadd.f32 %v103, %v321
    %v323 = vpop.f32.mrb[0].mxu0
    %324 = vmatprep.mubr.f32.mxu0 0.0
    %325 = vmatmul.mubr.f32.gmra.mrb[0].mxu0 %v118
    %v326 = vpop.f32.mrb[0].mxu0
    %v327 = vadd.f32 %v103, %v326
    %v328 = vpop.f32.mrb[0].mxu0
    %329 = vmatprep.mubr.f32.mxu0 0.0
    %330 = vmatmul.mubr.f32.gmra.mrb[0].mxu0 %v121
    %v331 = vpop.f32.mrb[0].mxu0
    %v332 = vadd.f32 %v103, %v331
    %v333 = vpop.f32.mrb[0].mxu0
    %334 = vmatprep.mubr.f32.mxu0 0.0
    %335 = vmatmul.mubr.f32.gmra.mrb[0].mxu0 %v124
    %v336 = vpop.f32.mrb[0].mxu0
    %v337 = vadd.f32 %v103, %v336
    %v338 = vpop.f32.mrb[0].mxu0
    %339 = vmatprep.mubr.f32.mxu0 0.0
    %340 = vmatmul.mubr.f32.gmra.mrb[0].mxu0 %v127
    %v341 = vpop.f32.mrb[0].mxu0
    %v342 = vadd.f32 %v103, %v341
    %v343 = vpop.f32.mrb[0].mxu0
    %344 = vmatprep.mubr.f32.mxu0 0.0
    %345 = vmatmul.mubr.f32.gmra.mrb[0].mxu0 %v130
    %v346 = vpop.f32.mrb[0].mxu0
    %v347 = vadd.f32 %v103, %v346
    %v348 = vpop.f32.mrb[0].mxu0
    %349 = vdwg.mxu0
    %350 = vst [vmem:[#allocation2] sm:$0xff] %v199
    %351 = vst [vmem:[#allocation2 + $0x8] sm:$0xff] %v201
    %352 = vst [vmem:[#allocation2 + $0x10] sm:$0xff] %v312
    %353 = vst [vmem:[#allocation2 + $0x18] sm:$0xff] %v205
    %354 = vst [vmem:[#allocation2 + $0x20] sm:$0xff] %v207
    %355 = vst [vmem:[#allocation2 + $0x28] sm:$0xff] %v317
    %356 = vst [vmem:[#allocation2 + $0x30] sm:$0xff] %v211
    %357 = vst [vmem:[#allocation2 + $0x38] sm:$0xff] %v213
    %358 = vst [vmem:[#allocation2 + $0x40] sm:$0xff] %v322
    %359 = vst [vmem:[#allocation2 + $0x48] sm:$0xff] %v217
    %360 = vst [vmem:[#allocation2 + $0x50] sm:$0xff] %v219
    %361 = vst [vmem:[#allocation2 + $0x58] sm:$0xff] %v327
    %362 = vst [vmem:[#allocation2 + $0x60] sm:$0xff] %v223
    %363 = vst [vmem:[#allocation2 + $0x68] sm:$0xff] %v225
    %364 = vst [vmem:[#allocation2 + $0x70] sm:$0xff] %v332
    %365 = vst [vmem:[#allocation2 + $0x78] sm:$0xff] %v229
    %366 = vst [vmem:[#allocation2 + $0x80] sm:$0xff] %v231
    %367 = vst [vmem:[#allocation2 + $0x88] sm:$0xff] %v337
    %368 = vst [vmem:[#allocation2 + $0x90] sm:$0xff] %v235
    %369 = vst [vmem:[#allocation2 + $0x98] sm:$0xff] %v237
    %370 = vst [vmem:[#allocation2 + $0xa0] sm:$0xff] %v342
    %371 = vst [vmem:[#allocation2 + $0xa8] sm:$0xff] %v241
    %372 = vst [vmem:[#allocation2 + $0xb0] sm:$0xff] %v243
    %373 = vst [vmem:[#allocation2 + $0xb8] sm:$0xff] %v347
    %s374 = smul.u32 0, 3
    %s375 = smul.addr %s374, 8
    %s376 = scalar_lea.vmem [#allocation2], %s375
    %v377 = vld [vmem:[%s376] sm:$0xff]
    %v378 = vld [vmem:[%s376 + $0x8] sm:$0xff]
    %v379 = vld [vmem:[%s376 + $0x10] sm:$0xff]
    %v380 = vld [vmem:[%s3] sm:$0xff]
    %v381 = vld [vmem:[%s3 + $0x8] sm:$0xff]
    %v382 = vld [vmem:[%s3 + $0x10] sm:$0xff]
    %v383 = vld [vmem:[%s3 + $0x18] sm:$0xff]
    %v384 = vld [vmem:[%s3 + $0x20] sm:$0xff]
    %v385 = vld [vmem:[%s3 + $0x28] sm:$0xff]
    %v386 = vld [vmem:[%s3 + $0x30] sm:$0xff]
    %v387 = vld [vmem:[%s3 + $0x38] sm:$0xff]
    %v388 = vld [vmem:[%s3 + $0x40] sm:$0xff]
    %v389 = vld [vmem:[%s3 + $0x48] sm:$0xff]
    %v390 = vld [vmem:[%s3 + $0x50] sm:$0xff]
    %v391 = vld [vmem:[%s3 + $0x58] sm:$0xff]
    %v392 = vld [vmem:[%s3 + $0x60] sm:$0xff]
    %v393 = vld [vmem:[%s3 + $0x68] sm:$0xff]
    %v394 = vld [vmem:[%s3 + $0x70] sm:$0xff]
    %v395 = vld [vmem:[%s3 + $0x78] sm:$0xff]
    %v396 = vld [vmem:[%s3 + $0x80] sm:$0xff]
    %v397 = vld [vmem:[%s3 + $0x88] sm:$0xff]
    %v398 = vld [vmem:[%s3 + $0x90] sm:$0xff]
    %v399 = vld [vmem:[%s3 + $0x98] sm:$0xff]
    %v400 = vld [vmem:[%s3 + $0xa0] sm:$0xff]
    %v401 = vld [vmem:[%s3 + $0xa8] sm:$0xff]
    %v402 = vld [vmem:[%s3 + $0xb0] sm:$0xff]
    %v403 = vld [vmem:[%s3 + $0xb8] sm:$0xff]
    %v404 = vld [vmem:[%s3 + $0xc0] sm:$0xff]
    %v405 = vld [vmem:[%s3 + $0xc8] sm:$0xff]
    %v406 = vld [vmem:[%s3 + $0xd0] sm:$0xff]
    %v407 = vld [vmem:[%s3 + $0xd8] sm:$0xff]
    %v408 = vld [vmem:[%s3 + $0xe0] sm:$0xff]
    %v409 = vld [vmem:[%s3 + $0xe8] sm:$0xff]
    %v410 = vld [vmem:[%s3 + $0xf0] sm:$0xff]
    %v411 = vld [vmem:[%s3 + $0xf8] sm:$0xff]
    %v412 = vld [vmem:[%s3 + $0x100] sm:$0xff]
    %v413 = vld [vmem:[%s3 + $0x108] sm:$0xff]
    %v414 = vld [vmem:[%s3 + $0x110] sm:$0xff]
    %v415 = vld [vmem:[%s3 + $0x118] sm:$0xff]
    %v416 = vld [vmem:[%s3 + $0x120] sm:$0xff]
    %v417 = vld [vmem:[%s3 + $0x128] sm:$0xff]
    %v418 = vld [vmem:[%s3 + $0x130] sm:$0xff]
    %v419 = vld [vmem:[%s3 + $0x138] sm:$0xff]
    %v420 = vld [vmem:[%s3 + $0x140] sm:$0xff]
    %v421 = vld [vmem:[%s3 + $0x148] sm:$0xff]
    %v422 = vld [vmem:[%s3 + $0x150] sm:$0xff]
    %v423 = vld [vmem:[%s3 + $0x158] sm:$0xff]
    %v424 = vld [vmem:[%s3 + $0x160] sm:$0xff]
    %v425 = vld [vmem:[%s3 + $0x168] sm:$0xff]
    %v426 = vld [vmem:[%s3 + $0x170] sm:$0xff]
    %v427 = vld [vmem:[%s3 + $0x178] sm:$0xff]
    %v428 = vld [vmem:[%s4] sm:$0x7]
    %v430 = vlaneseq
    %v431 = vshrl.u32 %v430, 7
    %v432 = vsub.s32 0, %v431
    %v433 = vrot.slane %v428, %v432
    %v434 = vlaneseq
    %v435 = vshrl.u32 %v434, 7
    %v436 = vsub.s32 1, %v435
    %v437 = vrot.slane %v428, %v436
    %v438 = vlaneseq
    %v439 = vshrl.u32 %v438, 7
    %v440 = vsub.s32 2, %v439
    %v441 = vrot.slane %v428, %v440
    %445 = vmatprep.subr.mxu0 %v381
    %446 = vmatpush1.msra.mxu0 %v380
    %447 = vmatprep.subr.mxu0 %v384
    %448 = vmatpush1.msra.mxu0 %v383
    %449 = vmatprep.subr.mxu0 %v387
    %450 = vmatpush1.msra.mxu0 %v386
    %451 = vmatprep.subr.mxu0 %v390
    %452 = vmatpush1.msra.mxu0 %v389
    %453 = vmatprep.subr.mxu0 %v393
    %454 = vmatpush1.msra.mxu0 %v392
    %455 = vmatprep.subr.mxu0 %v396
    %456 = vmatpush1.msra.mxu0 %v395
    %457 = vmatprep.subr.mxu0 %v399
    %458 = vmatpush1.msra.mxu0 %v398
    %459 = vmatprep.subr.mxu0 %v402
    %460 = vmatpush1.msra.mxu0 %v401
    %461 = vmatprep.subr.mxu0 %v405
    %462 = vmatpush1.msra.mxu0 %v404
    %463 = vmatprep.subr.mxu0 %v408
    %464 = vmatpush1.msra.mxu0 %v407
    %465 = vmatprep.subr.mxu0 %v411
    %466 = vmatpush1.msra.mxu0 %v410
    %467 = vmatprep.subr.mxu0 %v414
    %468 = vmatpush1.msra.mxu0 %v413
    %469 = vmatprep.subr.mxu0 %v417
    %470 = vmatpush1.msra.mxu0 %v416
    %471 = vmatprep.subr.mxu0 %v420
    %472 = vmatpush1.msra.mxu0 %v419
    %473 = vmatprep.subr.mxu0 %v423
    %474 = vmatpush1.msra.mxu0 %v422
    %475 = vmatprep.subr.mxu0 %v426
    %476 = vmatpush1.msra.mxu0 %v425
    %477 = vmatprep.subr.mxu0 0.0
    %478 = vmatpush1.msra.mxu0 0.0
    %479 = vmatprep.subr.mxu0 0.0
    %480 = vmatpush1.msra.mxu0 0.0
    %481 = vmatprep.subr.mxu0 0.0
    %482 = vmatpush1.msra.mxu0 0.0
    %483 = vmatprep.subr.mxu0 0.0
    %484 = vmatpush1.msra.mxu0 0.0
    %485 = vmatprep.subr.mxu0 0.0
    %486 = vmatpush1.msra.mxu0 0.0
    %487 = vmatprep.subr.mxu0 0.0
    %488 = vmatpush1.msra.mxu0 0.0
    %489 = vmatprep.subr.mxu0 0.0
    %490 = vmatpush1.msra.mxu0 0.0
    %491 = vmatprep.subr.mxu0 0.0
    %492 = vmatpush1.msra.mxu0 0.0
    %493 = vmatprep.subr.mxu0 0.0
    %494 = vmatpush1.msra.mxu0 0.0
    %495 = vmatprep.subr.mxu0 0.0
    %496 = vmatpush1.msra.mxu0 0.0
    %497 = vmatprep.subr.mxu0 0.0
    %498 = vmatpush1.msra.mxu0 0.0
    %499 = vmatprep.subr.mxu0 0.0
    %500 = vmatpush1.msra.mxu0 0.0
    %501 = vmatprep.subr.mxu0 0.0
    %502 = vmatpush1.msra.mxu0 0.0
    %503 = vmatprep.subr.mxu0 0.0
    %504 = vmatpush1.msra.mxu0 0.0
    %505 = vmatprep.subr.mxu0 0.0
    %506 = vmatpush1.msra.mxu0 0.0
    %507 = vmatprep.subr.mxu0 0.0
    %508 = vmatpush1.msra.mxu0 0.0
    %509 = vmatprep.mubr.f32.mxu0 0.0
    %510 = vmatmul.mubr.f32.gmra.mrb[0].mxu0 0.0
    %v511 = vpop.f32.mrb[0].mxu0
    %v512 = vadd.f32 %v433, %v511
    %v513 = vpop.f32.mrb[0].mxu0
    %v514 = vadd.f32 %v437, %v513
    %515 = vdwg.mxu0
    %516 = vmatprep.subr.mxu0 0.0
    %517 = vmatpush1.msra.mxu0 %v382
    %518 = vmatprep.subr.mxu0 0.0
    %519 = vmatpush1.msra.mxu0 %v385
    %520 = vmatprep.subr.mxu0 0.0
    %521 = vmatpush1.msra.mxu0 %v388
    %522 = vmatprep.subr.mxu0 0.0
    %523 = vmatpush1.msra.mxu0 %v391
    %524 = vmatprep.subr.mxu0 0.0
    %525 = vmatpush1.msra.mxu0 %v394
    %526 = vmatprep.subr.mxu0 0.0
    %527 = vmatpush1.msra.mxu0 %v397
    %528 = vmatprep.subr.mxu0 0.0
    %529 = vmatpush1.msra.mxu0 %v400
    %530 = vmatprep.subr.mxu0 0.0
    %531 = vmatpush1.msra.mxu0 %v403
    %532 = vmatprep.subr.mxu0 0.0
    %533 = vmatpush1.msra.mxu0 %v406
    %534 = vmatprep.subr.mxu0 0.0
    %535 = vmatpush1.msra.mxu0 %v409
    %536 = vmatprep.subr.mxu0 0.0
    %537 = vmatpush1.msra.mxu0 %v412
    %538 = vmatprep.subr.mxu0 0.0
    %539 = vmatpush1.msra.mxu0 %v415
    %540 = vmatprep.subr.mxu0 0.0
    %541 = vmatpush1.msra.mxu0 %v418
    %542 = vmatprep.subr.mxu0 0.0
    %543 = vmatpush1.msra.mxu0 %v421
    %544 = vmatprep.subr.mxu0 0.0
    %545 = vmatpush1.msra.mxu0 %v424
    %546 = vmatprep.subr.mxu0 0.0
    %547 = vmatpush1.msra.mxu0 %v427
    %548 = vmatprep.subr.mxu0 0.0
    %549 = vmatpush1.msra.mxu0 0.0
    %550 = vmatprep.subr.mxu0 0.0
    %551 = vmatpush1.msra.mxu0 0.0
    %552 = vmatprep.subr.mxu0 0.0
    %553 = vmatpush1.msra.mxu0 0.0
    %554 = vmatprep.subr.mxu0 0.0
    %555 = vmatpush1.msra.mxu0 0.0
    %556 = vmatprep.subr.mxu0 0.0
    %557 = vmatpush1.msra.mxu0 0.0
    %558 = vmatprep.subr.mxu0 0.0
    %559 = vmatpush1.msra.mxu0 0.0
    %560 = vmatprep.subr.mxu0 0.0
    %561 = vmatpush1.msra.mxu0 0.0
    %562 = vmatprep.subr.mxu0 0.0
    %563 = vmatpush1.msra.mxu0 0.0
    %564 = vmatprep.subr.mxu0 0.0
    %565 = vmatpush1.msra.mxu0 0.0
    %566 = vmatprep.subr.mxu0 0.0
    %567 = vmatpush1.msra.mxu0 0.0
    %568 = vmatprep.subr.mxu0 0.0
    %569 = vmatpush1.msra.mxu0 0.0
    %570 = vmatprep.subr.mxu0 0.0
    %571 = vmatpush1.msra.mxu0 0.0
    %572 = vmatprep.subr.mxu0 0.0
    %573 = vmatpush1.msra.mxu0 0.0
    %574 = vmatprep.subr.mxu0 0.0
    %575 = vmatpush1.msra.mxu0 0.0
    %576 = vmatprep.subr.mxu0 0.0
    %577 = vmatpush1.msra.mxu0 0.0
    %578 = vmatprep.subr.mxu0 0.0
    %579 = vmatpush1.msra.mxu0 0.0
    %580 = vmatprep.mubr.f32.mxu0 0.0
    %581 = vmatmul.mubr.f32.gmra.mrb[0].mxu0 0.0
    %v582 = vpop.f32.mrb[0].mxu0
    %v583 = vadd.f32 %v441, %v582
    %v584 = vpop.f32.mrb[0].mxu0
    %585 = vdwg.mxu0
    %v586 = vadd.f32 %v377, %v512
    %v587 = vadd.f32 %v378, %v514
    %v588 = vxor.u32 %v586, 2147483648
    %v589 = vxor.u32 %v587, 2147483648
    %v590 = vmul.f32 %v588, 1.442695
    %v591 = vpow.pop %v590
    %v592 = vmul.f32 %v589, 1.442695
    %v593 = vpow.pop %v592
    %v594 = vadd.f32 %v591, 1.0
    %v595 = vadd.f32 %v593, 1.0
    %v596 = vrcp.pop %v594
    %v597 = vmul.f32 1.0, %v596
    %v598 = vrcp.pop %v595
    %v599 = vmul.f32 1.0, %v598
    %v600 = vmul.f32 %v597, %v583
    %v601 = vadd.f32 %v379, %v600
    %v602 = vtanh.pop %v601
    %v603 = vsub.f32 1.0, %v599
    %v604 = vmul.f32 %v603, %v602
    %v605 = vmul.f32 %v599, 0.0
    %v606 = vadd.f32 %v604, %v605
    %v607 = vld [vmem:[%s5] sm:$0xff]
    %v608 = vld [vmem:[%s5 + $0x8] sm:$0xff]
    %v609 = vld [vmem:[%s5 + $0x10] sm:$0xff]
    %v610 = vld [vmem:[%s5 + $0x18] sm:$0xff]
    %v611 = vld [vmem:[%s5 + $0x20] sm:$0xff]
    %v612 = vld [vmem:[%s5 + $0x28] sm:$0xff]
    %v613 = vld [vmem:[%s5 + $0x30] sm:$0xff]
    %v614 = vld [vmem:[%s5 + $0x38] sm:$0xff]
    %v615 = vld [vmem:[%s5 + $0x40] sm:$0xff]
    %v616 = vld [vmem:[%s5 + $0x48] sm:$0xff]
    %v617 = vld [vmem:[%s5 + $0x50] sm:$0xff]
    %v618 = vld [vmem:[%s5 + $0x58] sm:$0xff]
    %v619 = vld [vmem:[%s5 + $0x60] sm:$0xff]
    %v620 = vld [vmem:[%s5 + $0x68] sm:$0xff]
    %v621 = vld [vmem:[%s5 + $0x70] sm:$0xff]
    %v622 = vld [vmem:[%s5 + $0x78] sm:$0xff]
    %v623 = vld [vmem:[%s5 + $0x80] sm:$0xff]
    %v624 = vld [vmem:[%s5 + $0x88] sm:$0xff]
    %v625 = vld [vmem:[%s5 + $0x90] sm:$0xff]
    %v626 = vld [vmem:[%s5 + $0x98] sm:$0xff]
    %v627 = vld [vmem:[%s5 + $0xa0] sm:$0xff]
    %v628 = vld [vmem:[%s5 + $0xa8] sm:$0xff]
    %v629 = vld [vmem:[%s5 + $0xb0] sm:$0xff]
    %v630 = vld [vmem:[%s5 + $0xb8] sm:$0xff]
    %v631 = vld [vmem:[%s5 + $0xc0] sm:$0xff]
    %v632 = vld [vmem:[%s5 + $0xc8] sm:$0xff]
    %v633 = vld [vmem:[%s5 + $0xd0] sm:$0xff]
    %v634 = vld [vmem:[%s5 + $0xd8] sm:$0xff]
    %v635 = vld [vmem:[%s5 + $0xe0] sm:$0xff]
    %v636 = vld [vmem:[%s5 + $0xe8] sm:$0xff]
    %v637 = vld [vmem:[%s5 + $0xf0] sm:$0xff]
    %v638 = vld [vmem:[%s5 + $0xf8] sm:$0xff]
    %v639 = vld [vmem:[%s5 + $0x100] sm:$0xff]
    %v640 = vld [vmem:[%s5 + $0x108] sm:$0xff]
    %v641 = vld [vmem:[%s5 + $0x110] sm:$0xff]
    %v642 = vld [vmem:[%s5 + $0x118] sm:$0xff]
    %v643 = vld [vmem:[%s5 + $0x120] sm:$0xff]
    %v644 = vld [vmem:[%s5 + $0x128] sm:$0xff]
    %v645 = vld [vmem:[%s5 + $0x130] sm:$0xff]
    %v646 = vld [vmem:[%s5 + $0x138] sm:$0xff]
    %v647 = vld [vmem:[%s5 + $0x140] sm:$0xff]
    %v648 = vld [vmem:[%s5 + $0x148] sm:$0xff]
    %v649 = vld [vmem:[%s5 + $0x150] sm:$0xff]
    %v650 = vld [vmem:[%s5 + $0x158] sm:$0xff]
    %v651 = vld [vmem:[%s5 + $0x160] sm:$0xff]
    %v652 = vld [vmem:[%s5 + $0x168] sm:$0xff]
    %v653 = vld [vmem:[%s5 + $0x170] sm:$0xff]
    %v654 = vld [vmem:[%s5 + $0x178] sm:$0xff]
    %v655 = vld [vmem:[%s6] sm:$0x7]
    %v657 = vlaneseq
    %v658 = vshrl.u32 %v657, 7
    %v659 = vsub.s32 0, %v658
    %v660 = vrot.slane %v655, %v659
    %v661 = vlaneseq
    %v662 = vshrl.u32 %v661, 7
    %v663 = vsub.s32 1, %v662
    %v664 = vrot.slane %v655, %v663
    %v665 = vlaneseq
    %v666 = vshrl.u32 %v665, 7
    %v667 = vsub.s32 2, %v666
    %v668 = vrot.slane %v655, %v667
    %672 = vmatprep.subr.mxu0 %v608
    %673 = vmatpush1.msra.mxu0 %v607
    %674 = vmatprep.subr.mxu0 %v611
    %675 = vmatpush1.msra.mxu0 %v610
    %676 = vmatprep.subr.mxu0 %v614
    %677 = vmatpush1.msra.mxu0 %v613
    %678 = vmatprep.subr.mxu0 %v617
    %679 = vmatpush1.msra.mxu0 %v616
    %680 = vmatprep.subr.mxu0 %v620
    %681 = vmatpush1.msra.mxu0 %v619
    %682 = vmatprep.subr.mxu0 %v623
    %683 = vmatpush1.msra.mxu0 %v622
    %684 = vmatprep.subr.mxu0 %v626
    %685 = vmatpush1.msra.mxu0 %v625
    %686 = vmatprep.subr.mxu0 %v629
    %687 = vmatpush1.msra.mxu0 %v628
    %688 = vmatprep.subr.mxu0 %v632
    %689 = vmatpush1.msra.mxu0 %v631
    %690 = vmatprep.subr.mxu0 %v635
    %691 = vmatpush1.msra.mxu0 %v634
    %692 = vmatprep.subr.mxu0 %v638
    %693 = vmatpush1.msra.mxu0 %v637
    %694 = vmatprep.subr.mxu0 %v641
    %695 = vmatpush1.msra.mxu0 %v640
    %696 = vmatprep.subr.mxu0 %v644
    %697 = vmatpush1.msra.mxu0 %v643
    %698 = vmatprep.subr.mxu0 %v647
    %699 = vmatpush1.msra.mxu0 %v646
    %700 = vmatprep.subr.mxu0 %v650
    %701 = vmatpush1.msra.mxu0 %v649
    %702 = vmatprep.subr.mxu0 %v653
    %703 = vmatpush1.msra.mxu0 %v652
    %704 = vmatprep.subr.mxu0 0.0
    %705 = vmatpush1.msra.mxu0 0.0
    %706 = vmatprep.subr.mxu0 0.0
    %707 = vmatpush1.msra.mxu0 0.0
    %708 = vmatprep.subr.mxu0 0.0
    %709 = vmatpush1.msra.mxu0 0.0
    %710 = vmatprep.subr.mxu0 0.0
    %711 = vmatpush1.msra.mxu0 0.0
    %712 = vmatprep.subr.mxu0 0.0
    %713 = vmatpush1.msra.mxu0 0.0
    %714 = vmatprep.subr.mxu0 0.0
    %715 = vmatpush1.msra.mxu0 0.0
    %716 = vmatprep.subr.mxu0 0.0
    %717 = vmatpush1.msra.mxu0 0.0
    %718 = vmatprep.subr.mxu0 0.0
    %719 = vmatpush1.msra.mxu0 0.0
    %720 = vmatprep.subr.mxu0 0.0
    %721 = vmatpush1.msra.mxu0 0.0
    %722 = vmatprep.subr.mxu0 0.0
    %723 = vmatpush1.msra.mxu0 0.0
    %724 = vmatprep.subr.mxu0 0.0
    %725 = vmatpush1.msra.mxu0 0.0
    %726 = vmatprep.subr.mxu0 0.0
    %727 = vmatpush1.msra.mxu0 0.0
    %728 = vmatprep.subr.mxu0 0.0
    %729 = vmatpush1.msra.mxu0 0.0
    %730 = vmatprep.subr.mxu0 0.0
    %731 = vmatpush1.msra.mxu0 0.0
    %732 = vmatprep.subr.mxu0 0.0
    %733 = vmatpush1.msra.mxu0 0.0
    %734 = vmatprep.subr.mxu0 0.0
    %735 = vmatpush1.msra.mxu0 0.0
    %736 = vmatprep.mubr.f32.mxu0 0.0
    %737 = vmatmul.mubr.f32.gmra.mrb[0].mxu0 %v606
    %v738 = vpop.f32.mrb[0].mxu0
    %v739 = vadd.f32 %v660, %v738
    %v740 = vpop.f32.mrb[0].mxu0
    %v741 = vadd.f32 %v664, %v740
    %742 = vdwg.mxu0
    %743 = vmatprep.subr.mxu0 0.0
    %744 = vmatpush1.msra.mxu0 %v609
    %745 = vmatprep.subr.mxu0 0.0
    %746 = vmatpush1.msra.mxu0 %v612
    %747 = vmatprep.subr.mxu0 0.0
    %748 = vmatpush1.msra.mxu0 %v615
    %749 = vmatprep.subr.mxu0 0.0
    %750 = vmatpush1.msra.mxu0 %v618
    %751 = vmatprep.subr.mxu0 0.0
    %752 = vmatpush1.msra.mxu0 %v621
    %753 = vmatprep.subr.mxu0 0.0
    %754 = vmatpush1.msra.mxu0 %v624
    %755 = vmatprep.subr.mxu0 0.0
    %756 = vmatpush1.msra.mxu0 %v627
    %757 = vmatprep.subr.mxu0 0.0
    %758 = vmatpush1.msra.mxu0 %v630
    %759 = vmatprep.subr.mxu0 0.0
    %760 = vmatpush1.msra.mxu0 %v633
    %761 = vmatprep.subr.mxu0 0.0
    %762 = vmatpush1.msra.mxu0 %v636
    %763 = vmatprep.subr.mxu0 0.0
    %764 = vmatpush1.msra.mxu0 %v639
    %765 = vmatprep.subr.mxu0 0.0
    %766 = vmatpush1.msra.mxu0 %v642
    %767 = vmatprep.subr.mxu0 0.0
    %768 = vmatpush1.msra.mxu0 %v645
    %769 = vmatprep.subr.mxu0 0.0
    %770 = vmatpush1.msra.mxu0 %v648
    %771 = vmatprep.subr.mxu0 0.0
    %772 = vmatpush1.msra.mxu0 %v651
    %773 = vmatprep.subr.mxu0 0.0
    %774 = vmatpush1.msra.mxu0 %v654
    %775 = vmatprep.subr.mxu0 0.0
    %776 = vmatpush1.msra.mxu0 0.0
    %777 = vmatprep.subr.mxu0 0.0
    %778 = vmatpush1.msra.mxu0 0.0
    %779 = vmatprep.subr.mxu0 0.0
    %780 = vmatpush1.msra.mxu0 0.0
    %781 = vmatprep.subr.mxu0 0.0
    %782 = vmatpush1.msra.mxu0 0.0
    %783 = vmatprep.subr.mxu0 0.0
    %784 = vmatpush1.msra.mxu0 0.0
    %785 = vmatprep.subr.mxu0 0.0
    %786 = vmatpush1.msra.mxu0 0.0
    %787 = vmatprep.subr.mxu0 0.0
    %788 = vmatpush1.msra.mxu0 0.0
    %789 = vmatprep.subr.mxu0 0.0
    %790 = vmatpush1.msra.mxu0 0.0
    %791 = vmatprep.subr.mxu0 0.0
    %792 = vmatpush1.msra.mxu0 0.0
    %793 = vmatprep.subr.mxu0 0.0
    %794 = vmatpush1.msra.mxu0 0.0
    %795 = vmatprep.subr.mxu0 0.0
    %796 = vmatpush1.msra.mxu0 0.0
    %797 = vmatprep.subr.mxu0 0.0
    %798 = vmatpush1.msra.mxu0 0.0
    %799 = vmatprep.subr.mxu0 0.0
    %800 = vmatpush1.msra.mxu0 0.0
    %801 = vmatprep.subr.mxu0 0.0
    %802 = vmatpush1.msra.mxu0 0.0
    %803 = vmatprep.subr.mxu0 0.0
    %804 = vmatpush1.msra.mxu0 0.0
    %805 = vmatprep.subr.mxu0 0.0
    %806 = vmatpush1.msra.mxu0 0.0
    %807 = vmatprep.mubr.f32.mxu0 0.0
    %808 = vmatmul.mubr.f32.gmra.mrb[0].mxu0 %v606
    %v809 = vpop.f32.mrb[0].mxu0
    %v810 = vadd.f32 %v668, %v809
    %v811 = vpop.f32.mrb[0].mxu0
    %812 = vdwg.mxu0
    %v813 = vld [vmem:[%s7] sm:$0xff]
    %v814 = vld [vmem:[%s7 + $0x8] sm:$0xff]
    %v815 = vld [vmem:[%s7 + $0x10] sm:$0xff]
    %v816 = vld [vmem:[%s7 + $0x18] sm:$0xff]
    %v817 = vld [vmem:[%s7 + $0x20] sm:$0xff]
    %v818 = vld [vmem:[%s7 + $0x28] sm:$0xff]
    %v819 = vld [vmem:[%s7 + $0x30] sm:$0xff]
    %v820 = vld [vmem:[%s7 + $0x38] sm:$0xff]
    %v821 = vld [vmem:[%s7 + $0x40] sm:$0xff]
    %v822 = vld [vmem:[%s7 + $0x48] sm:$0xff]
    %v823 = vld [vmem:[%s7 + $0x50] sm:$0xff]
    %v824 = vld [vmem:[%s7 + $0x58] sm:$0xff]
    %v825 = vld [vmem:[%s7 + $0x60] sm:$0xff]
    %v826 = vld [vmem:[%s7 + $0x68] sm:$0xff]
    %v827 = vld [vmem:[%s7 + $0x70] sm:$0xff]
    %v828 = vld [vmem:[%s7 + $0x78] sm:$0xff]
    %v829 = vld [vmem:[%s7 + $0x80] sm:$0xff]
    %v830 = vld [vmem:[%s7 + $0x88] sm:$0xff]
    %v831 = vld [vmem:[%s7 + $0x90] sm:$0xff]
    %v832 = vld [vmem:[%s7 + $0x98] sm:$0xff]
    %v833 = vld [vmem:[%s7 + $0xa0] sm:$0xff]
    %v834 = vld [vmem:[%s7 + $0xa8] sm:$0xff]
    %v835 = vld [vmem:[%s7 + $0xb0] sm:$0xff]
    %v836 = vld [vmem:[%s7 + $0xb8] sm:$0xff]
    %v837 = vld [vmem:[%s7 + $0xc0] sm:$0xff]
    %v838 = vld [vmem:[%s7 + $0xc8] sm:$0xff]
    %v839 = vld [vmem:[%s7 + $0xd0] sm:$0xff]
    %v840 = vld [vmem:[%s7 + $0xd8] sm:$0xff]
    %v841 = vld [vmem:[%s7 + $0xe0] sm:$0xff]
    %v842 = vld [vmem:[%s7 + $0xe8] sm:$0xff]
    %v843 = vld [vmem:[%s7 + $0xf0] sm:$0xff]
    %v844 = vld [vmem:[%s7 + $0xf8] sm:$0xff]
    %v845 = vld [vmem:[%s7 + $0x100] sm:$0xff]
    %v846 = vld [vmem:[%s7 + $0x108] sm:$0xff]
    %v847 = vld [vmem:[%s7 + $0x110] sm:$0xff]
    %v848 = vld [vmem:[%s7 + $0x118] sm:$0xff]
    %v849 = vld [vmem:[%s7 + $0x120] sm:$0xff]
    %v850 = vld [vmem:[%s7 + $0x128] sm:$0xff]
    %v851 = vld [vmem:[%s7 + $0x130] sm:$0xff]
    %v852 = vld [vmem:[%s7 + $0x138] sm:$0xff]
    %v853 = vld [vmem:[%s7 + $0x140] sm:$0xff]
    %v854 = vld [vmem:[%s7 + $0x148] sm:$0xff]
    %v855 = vld [vmem:[%s7 + $0x150] sm:$0xff]
    %v856 = vld [vmem:[%s7 + $0x158] sm:$0xff]
    %v857 = vld [vmem:[%s7 + $0x160] sm:$0xff]
    %v858 = vld [vmem:[%s7 + $0x168] sm:$0xff]
    %v859 = vld [vmem:[%s7 + $0x170] sm:$0xff]
    %v860 = vld [vmem:[%s7 + $0x178] sm:$0xff]
    %v861 = vld [vmem:[%s8] sm:$0x7]
    %v863 = vlaneseq
    %v864 = vshrl.u32 %v863, 7
    %v865 = vsub.s32 0, %v864
    %v866 = vrot.slane %v861, %v865
    %v867 = vlaneseq
    %v868 = vshrl.u32 %v867, 7
    %v869 = vsub.s32 1, %v868
    %v870 = vrot.slane %v861, %v869
    %v871 = vlaneseq
    %v872 = vshrl.u32 %v871, 7
    %v873 = vsub.s32 2, %v872
    %v874 = vrot.slane %v861, %v873
    %878 = vmatprep.subr.mxu0 %v814
    %879 = vmatpush1.msra.mxu0 %v813
    %880 = vmatprep.subr.mxu0 %v817
    %881 = vmatpush1.msra.mxu0 %v816
    %882 = vmatprep.subr.mxu0 %v820
    %883 = vmatpush1.msra.mxu0 %v819
    %884 = vmatprep.subr.mxu0 %v823
    %885 = vmatpush1.msra.mxu0 %v822
    %886 = vmatprep.subr.mxu0 %v826
    %887 = vmatpush1.msra.mxu0 %v825
    %888 = vmatprep.subr.mxu0 %v829
    %889 = vmatpush1.msra.mxu0 %v828
    %890 = vmatprep.subr.mxu0 %v832
    %891 = vmatpush1.msra.mxu0 %v831
    %892 = vmatprep.subr.mxu0 %v835
    %893 = vmatpush1.msra.mxu0 %v834
    %894 = vmatprep.subr.mxu0 %v838
    %895 = vmatpush1.msra.mxu0 %v837
    %896 = vmatprep.subr.mxu0 %v841
    %897 = vmatpush1.msra.mxu0 %v840
    %898 = vmatprep.subr.mxu0 %v844
    %899 = vmatpush1.msra.mxu0 %v843
    %900 = vmatprep.subr.mxu0 %v847
    %901 = vmatpush1.msra.mxu0 %v846
    %902 = vmatprep.subr.mxu0 %v850
    %903 = vmatpush1.msra.mxu0 %v849
    %904 = vmatprep.subr.mxu0 %v853
    %905 = vmatpush1.msra.mxu0 %v852
    %906 = vmatprep.subr.mxu0 %v856
    %907 = vmatpush1.msra.mxu0 %v855
    %908 = vmatprep.subr.mxu0 %v859
    %909 = vmatpush1.msra.mxu0 %v858
    %910 = vmatprep.subr.mxu0 0.0
    %911 = vmatpush1.msra.mxu0 0.0
    %912 = vmatprep.subr.mxu0 0.0
    %913 = vmatpush1.msra.mxu0 0.0
    %914 = vmatprep.subr.mxu0 0.0
    %915 = vmatpush1.msra.mxu0 0.0
    %916 = vmatprep.subr.mxu0 0.0
    %917 = vmatpush1.msra.mxu0 0.0
    %918 = vmatprep.subr.mxu0 0.0
    %919 = vmatpush1.msra.mxu0 0.0
    %920 = vmatprep.subr.mxu0 0.0
    %921 = vmatpush1.msra.mxu0 0.0
    %922 = vmatprep.subr.mxu0 0.0
    %923 = vmatpush1.msra.mxu0 0.0
    %924 = vmatprep.subr.mxu0 0.0
    %925 = vmatpush1.msra.mxu0 0.0
    %926 = vmatprep.subr.mxu0 0.0
    %927 = vmatpush1.msra.mxu0 0.0
    %928 = vmatprep.subr.mxu0 0.0
    %929 = vmatpush1.msra.mxu0 0.0
    %930 = vmatprep.subr.mxu0 0.0
    %931 = vmatpush1.msra.mxu0 0.0
    %932 = vmatprep.subr.mxu0 0.0
    %933 = vmatpush1.msra.mxu0 0.0
    %934 = vmatprep.subr.mxu0 0.0
    %935 = vmatpush1.msra.mxu0 0.0
    %936 = vmatprep.subr.mxu0 0.0
    %937 = vmatpush1.msra.mxu0 0.0
    %938 = vmatprep.subr.mxu0 0.0
    %939 = vmatpush1.msra.mxu0 0.0
    %940 = vmatprep.subr.mxu0 0.0
    %941 = vmatpush1.msra.mxu0 0.0
    %942 = vmatprep.mubr.f32.mxu0 0.0
    %943 = vmatmul.mubr.f32.gmra.mrb[0].mxu0 0.0
    %v944 = vpop.f32.mrb[0].mxu0
    %v945 = vadd.f32 %v866, %v944
    %v946 = vpop.f32.mrb[0].mxu0
    %v947 = vadd.f32 %v870, %v946
    %948 = vdwg.mxu0
    %949 = vmatprep.subr.mxu0 0.0
    %950 = vmatpush1.msra.mxu0 %v815
    %951 = vmatprep.subr.mxu0 0.0
    %952 = vmatpush1.msra.mxu0 %v818
    %953 = vmatprep.subr.mxu0 0.0
    %954 = vmatpush1.msra.mxu0 %v821
    %955 = vmatprep.subr.mxu0 0.0
    %956 = vmatpush1.msra.mxu0 %v824
    %957 = vmatprep.subr.mxu0 0.0
    %958 = vmatpush1.msra.mxu0 %v827
    %959 = vmatprep.subr.mxu0 0.0
    %960 = vmatpush1.msra.mxu0 %v830
    %961 = vmatprep.subr.mxu0 0.0
    %962 = vmatpush1.msra.mxu0 %v833
    %963 = vmatprep.subr.mxu0 0.0
    %964 = vmatpush1.msra.mxu0 %v836
    %965 = vmatprep.subr.mxu0 0.0
    %966 = vmatpush1.msra.mxu0 %v839
    %967 = vmatprep.subr.mxu0 0.0
    %968 = vmatpush1.msra.mxu0 %v842
    %969 = vmatprep.subr.mxu0 0.0
    %970 = vmatpush1.msra.mxu0 %v845
    %971 = vmatprep.subr.mxu0 0.0
    %972 = vmatpush1.msra.mxu0 %v848
    %973 = vmatprep.subr.mxu0 0.0
    %974 = vmatpush1.msra.mxu0 %v851
    %975 = vmatprep.subr.mxu0 0.0
    %976 = vmatpush1.msra.mxu0 %v854
    %977 = vmatprep.subr.mxu0 0.0
    %978 = vmatpush1.msra.mxu0 %v857
    %979 = vmatprep.subr.mxu0 0.0
    %980 = vmatpush1.msra.mxu0 %v860
    %981 = vmatprep.subr.mxu0 0.0
    %982 = vmatpush1.msra.mxu0 0.0
    %983 = vmatprep.subr.mxu0 0.0
    %984 = vmatpush1.msra.mxu0 0.0
    %985 = vmatprep.subr.mxu0 0.0
    %986 = vmatpush1.msra.mxu0 0.0
    %987 = vmatprep.subr.mxu0 0.0
    %988 = vmatpush1.msra.mxu0 0.0
    %989 = vmatprep.subr.mxu0 0.0
    %990 = vmatpush1.msra.mxu0 0.0
    %991 = vmatprep.subr.mxu0 0.0
    %992 = vmatpush1.msra.mxu0 0.0
    %993 = vmatprep.subr.mxu0 0.0
    %994 = vmatpush1.msra.mxu0 0.0
    %995 = vmatprep.subr.mxu0 0.0
    %996 = vmatpush1.msra.mxu0 0.0
    %997 = vmatprep.subr.mxu0 0.0
    %998 = vmatpush1.msra.mxu0 0.0
    %999 = vmatprep.subr.mxu0 0.0
    %1000 = vmatpush1.msra.mxu0 0.0
    %1001 = vmatprep.subr.mxu0 0.0
    %1002 = vmatpush1.msra.mxu0 0.0
    %1003 = vmatprep.subr.mxu0 0.0
    %1004 = vmatpush1.msra.mxu0 0.0
    %1005 = vmatprep.subr.mxu0 0.0
    %1006 = vmatpush1.msra.mxu0 0.0
    %1007 = vmatprep.subr.mxu0 0.0
    %1008 = vmatpush1.msra.mxu0 0.0
    %1009 = vmatprep.subr.mxu0 0.0
    %1010 = vmatpush1.msra.mxu0 0.0
    %1011 = vmatprep.subr.mxu0 0.0
    %1012 = vmatpush1.msra.mxu0 0.0
    %1013 = vmatprep.mubr.f32.mxu0 0.0
    %1014 = vmatmul.mubr.f32.gmra.mrb[0].mxu0 0.0
    %v1015 = vpop.f32.mrb[0].mxu0
    %v1016 = vadd.f32 %v874, %v1015
    %v1017 = vpop.f32.mrb[0].mxu0
    %1018 = vdwg.mxu0
    %v1019 = vadd.f32 %v739, %v945
    %v1020 = vadd.f32 %v741, %v947
    %v1021 = vxor.u32 %v1019, 2147483648
    %v1022 = vxor.u32 %v1020, 2147483648
    %v1023 = vmul.f32 %v1021, 1.442695
    %v1024 = vpow.pop %v1023
    %v1025 = vmul.f32 %v1022, 1.442695
    %v1026 = vpow.pop %v1025
    %v1027 = vadd.f32 %v1024, 1.0
    %v1028 = vadd.f32 %v1026, 1.0
    %v1029 = vrcp.pop %v1027
    %v1030 = vmul.f32 1.0, %v1029
    %v1031 = vrcp.pop %v1028
    %v1032 = vmul.f32 1.0, %v1031
    %v1033 = vmul.f32 %v1030, %v1016
    %v1034 = vadd.f32 %v810, %v1033
    %v1035 = vtanh.pop %v1034
    %v1036 = vsub.f32 1.0, %v1032
    %v1037 = vmul.f32 %v1036, %v1035
    %v1038 = vmul.f32 %v1032, 0.0
    %v1039 = vadd.f32 %v1037, %v1038
    %v1040 = vld [vmem:[%s9] sm:$0xff]
    %v1041 = vld [vmem:[%s9 + $0x8] sm:$0xff]
    %v1042 = vld [vmem:[%s9 + $0x10] sm:$0xff]
    %v1043 = vld [vmem:[%s9 + $0x18] sm:$0xff]
    %v1044 = vld [vmem:[%s9 + $0x20] sm:$0xff]
    %v1045 = vld [vmem:[%s9 + $0x28] sm:$0xff]
    %v1046 = vld [vmem:[%s9 + $0x30] sm:$0xff]
    %v1047 = vld [vmem:[%s9 + $0x38] sm:$0xff]
    %v1048 = vld [vmem:[%s9 + $0x40] sm:$0xff]
    %v1049 = vld [vmem:[%s9 + $0x48] sm:$0xff]
    %v1050 = vld [vmem:[%s9 + $0x50] sm:$0xff]
    %v1051 = vld [vmem:[%s9 + $0x58] sm:$0xff]
    %v1052 = vld [vmem:[%s9 + $0x60] sm:$0xff]
    %v1053 = vld [vmem:[%s9 + $0x68] sm:$0xff]
    %v1054 = vld [vmem:[%s9 + $0x70] sm:$0xff]
    %v1055 = vld [vmem:[%s9 + $0x78] sm:$0xff]
    %v1056 = vld [vmem:[%s10] sm:$0x1]
    %v1058 = vlaneseq
    %v1059 = vshrl.u32 %v1058, 7
    %v1060 = vsub.s32 0, %v1059
    %v1061 = vrot.slane %v1056, %v1060
    %1063 = vmatprep.subr.mxu0 0.0
    %1064 = vmatpush1.msra.mxu0 %v1040
    %1065 = vmatprep.subr.mxu0 0.0
    %1066 = vmatpush1.msra.mxu0 %v1041
    %1067 = vmatprep.subr.mxu0 0.0
    %1068 = vmatpush1.msra.mxu0 %v1042
    %1069 = vmatprep.subr.mxu0 0.0
    %1070 = vmatpush1.msra.mxu0 %v1043
    %1071 = vmatprep.subr.mxu0 0.0
    %1072 = vmatpush1.msra.mxu0 %v1044
    %1073 = vmatprep.subr.mxu0 0.0
    %1074 = vmatpush1.msra.mxu0 %v1045
    %1075 = vmatprep.subr.mxu0 0.0
    %1076 = vmatpush1.msra.mxu0 %v1046
    %1077 = vmatprep.subr.mxu0 0.0
    %1078 = vmatpush1.msra.mxu0 %v1047
    %1079 = vmatprep.subr.mxu0 0.0
    %1080 = vmatpush1.msra.mxu0 %v1048
    %1081 = vmatprep.subr.mxu0 0.0
    %1082 = vmatpush1.msra.mxu0 %v1049
    %1083 = vmatprep.subr.mxu0 0.0
    %1084 = vmatpush1.msra.mxu0 %v1050
    %1085 = vmatprep.subr.mxu0 0.0
    %1086 = vmatpush1.msra.mxu0 %v1051
    %1087 = vmatprep.subr.mxu0 0.0
    %1088 = vmatpush1.msra.mxu0 %v1052
    %1089 = vmatprep.subr.mxu0 0.0
    %1090 = vmatpush1.msra.mxu0 %v1053
    %1091 = vmatprep.subr.mxu0 0.0
    %1092 = vmatpush1.msra.mxu0 %v1054
    %1093 = vmatprep.subr.mxu0 0.0
    %1094 = vmatpush1.msra.mxu0 %v1055
    %1095 = vmatprep.subr.mxu0 0.0
    %1096 = vmatpush1.msra.mxu0 0.0
    %1097 = vmatprep.subr.mxu0 0.0
    %1098 = vmatpush1.msra.mxu0 0.0
    %1099 = vmatprep.subr.mxu0 0.0
    %1100 = vmatpush1.msra.mxu0 0.0
    %1101 = vmatprep.subr.mxu0 0.0
    %1102 = vmatpush1.msra.mxu0 0.0
    %1103 = vmatprep.subr.mxu0 0.0
    %1104 = vmatpush1.msra.mxu0 0.0
    %1105 = vmatprep.subr.mxu0 0.0
    %1106 = vmatpush1.msra.mxu0 0.0
    %1107 = vmatprep.subr.mxu0 0.0
    %1108 = vmatpush1.msra.mxu0 0.0
    %1109 = vmatprep.subr.mxu0 0.0
    %1110 = vmatpush1.msra.mxu0 0.0
    %1111 = vmatprep.subr.mxu0 0.0
    %1112 = vmatpush1.msra.mxu0 0.0
    %1113 = vmatprep.subr.mxu0 0.0
    %1114 = vmatpush1.msra.mxu0 0.0
    %1115 = vmatprep.subr.mxu0 0.0
    %1116 = vmatpush1.msra.mxu0 0.0
    %1117 = vmatprep.subr.mxu0 0.0
    %1118 = vmatpush1.msra.mxu0 0.0
    %1119 = vmatprep.subr.mxu0 0.0
    %1120 = vmatpush1.msra.mxu0 0.0
    %1121 = vmatprep.subr.mxu0 0.0
    %1122 = vmatpush1.msra.mxu0 0.0
    %1123 = vmatprep.subr.mxu0 0.0
    %1124 = vmatpush1.msra.mxu0 0.0
    %1125 = vmatprep.subr.mxu0 0.0
    %1126 = vmatpush1.msra.mxu0 0.0
    %1127 = vmatprep.mubr.f32.mxu0 0.0
    %1128 = vmatmul.mubr.f32.gmra.mrb[0].mxu0 %v1039
    %v1129 = vpop.f32.mrb[0].mxu0
    %v1130 = vadd.f32 %v1061, %v1129
    %v1131 = vpop.f32.mrb[0].mxu0
    %1132 = vdwg.mxu0
    %v1133 = vmax.f32 %v1130, 0.0
    %s1134 = sld [smem:[#allocation4]]
    %v1135 = vstv %s1134
    %v1136 = vmul.f32 %v1133, %v1135
    %v1137 = vadd.f32 %v1136, 0.0
    %s1138 = smul.u32 1, 3
    %s1139 = smul.addr %s1138, 8
    %s1140 = scalar_lea.vmem [#allocation2], %s1139
    %v1141 = vld [vmem:[%s1140] sm:$0xff]
    %v1142 = vld [vmem:[%s1140 + $0x8] sm:$0xff]
    %v1143 = vld [vmem:[%s1140 + $0x10] sm:$0xff]
    %1144 = vmatprep.subr.mxu0 %v381
    %1145 = vmatpush1.msra.mxu0 %v380
    %1146 = vmatprep.subr.mxu0 %v384
    %1147 = vmatpush1.msra.mxu0 %v383
    %1148 = vmatprep.subr.mxu0 %v387
    %1149 = vmatpush1.msra.mxu0 %v386
    %1150 = vmatprep.subr.mxu0 %v390
    %1151 = vmatpush1.msra.mxu0 %v389
    %1152 = vmatprep.subr.mxu0 %v393
    %1153 = vmatpush1.msra.mxu0 %v392
    %1154 = vmatprep.subr.mxu0 %v396
    %1155 = vmatpush1.msra.mxu0 %v395
    %1156 = vmatprep.subr.mxu0 %v399
    %1157 = vmatpush1.msra.mxu0 %v398
    %1158 = vmatprep.subr.mxu0 %v402
    %1159 = vmatpush1.msra.mxu0 %v401
    %1160 = vmatprep.subr.mxu0 %v405
    %1161 = vmatpush1.msra.mxu0 %v404
    %1162 = vmatprep.subr.mxu0 %v408
    %1163 = vmatpush1.msra.mxu0 %v407
    %1164 = vmatprep.subr.mxu0 %v411
    %1165 = vmatpush1.msra.mxu0 %v410
    %1166 = vmatprep.subr.mxu0 %v414
    %1167 = vmatpush1.msra.mxu0 %v413
    %1168 = vmatprep.subr.mxu0 %v417
    %1169 = vmatpush1.msra.mxu0 %v416
    %1170 = vmatprep.subr.mxu0 %v420
    %1171 = vmatpush1.msra.mxu0 %v419
    %1172 = vmatprep.subr.mxu0 %v423
    %1173 = vmatpush1.msra.mxu0 %v422
    %1174 = vmatprep.subr.mxu0 %v426
    %1175 = vmatpush1.msra.mxu0 %v425
    %1176 = vmatprep.subr.mxu0 0.0
    %1177 = vmatpush1.msra.mxu0 0.0
    %1178 = vmatprep.subr.mxu0 0.0
    %1179 = vmatpush1.msra.mxu0 0.0
    %1180 = vmatprep.subr.mxu0 0.0
    %1181 = vmatpush1.msra.mxu0 0.0
    %1182 = vmatprep.subr.mxu0 0.0
    %1183 = vmatpush1.msra.mxu0 0.0
    %1184 = vmatprep.subr.mxu0 0.0
    %1185 = vmatpush1.msra.mxu0 0.0
    %1186 = vmatprep.subr.mxu0 0.0
    %1187 = vmatpush1.msra.mxu0 0.0
    %1188 = vmatprep.subr.mxu0 0.0
    %1189 = vmatpush1.msra.mxu0 0.0
    %1190 = vmatprep.subr.mxu0 0.0
    %1191 = vmatpush1.msra.mxu0 0.0
    %1192 = vmatprep.subr.mxu0 0.0
    %1193 = vmatpush1.msra.mxu0 0.0
    %1194 = vmatprep.subr.mxu0 0.0
    %1195 = vmatpush1.msra.mxu0 0.0
    %1196 = vmatprep.subr.mxu0 0.0
    %1197 = vmatpush1.msra.mxu0 0.0
    %1198 = vmatprep.subr.mxu0 0.0
    %1199 = vmatpush1.msra.mxu0 0.0
    %1200 = vmatprep.subr.mxu0 0.0
    %1201 = vmatpush1.msra.mxu0 0.0
    %1202 = vmatprep.subr.mxu0 0.0
    %1203 = vmatpush1.msra.mxu0 0.0
    %1204 = vmatprep.subr.mxu0 0.0
    %1205 = vmatpush1.msra.mxu0 0.0
    %1206 = vmatprep.subr.mxu0 0.0
    %1207 = vmatpush1.msra.mxu0 0.0
    %1208 = vmatprep.mubr.f32.mxu0 0.0
    %1209 = vmatmul.mubr.f32.gmra.mrb[0].mxu0 %v606
    %v1210 = vpop.f32.mrb[0].mxu0
    %v1211 = vadd.f32 %v433, %v1210
    %v1212 = vpop.f32.mrb[0].mxu0
    %v1213 = vadd.f32 %v437, %v1212
    %1214 = vdwg.mxu0
    %1215 = vmatprep.subr.mxu0 0.0
    %1216 = vmatpush1.msra.mxu0 %v382
    %1217 = vmatprep.subr.mxu0 0.0
    %1218 = vmatpush1.msra.mxu0 %v385
    %1219 = vmatprep.subr.mxu0 0.0
    %1220 = vmatpush1.msra.mxu0 %v388
    %1221 = vmatprep.subr.mxu0 0.0
    %1222 = vmatpush1.msra.mxu0 %v391
    %1223 = vmatprep.subr.mxu0 0.0
    %1224 = vmatpush1.msra.mxu0 %v394
    %1225 = vmatprep.subr.mxu0 0.0
    %1226 = vmatpush1.msra.mxu0 %v397
    %1227 = vmatprep.subr.mxu0 0.0
    %1228 = vmatpush1.msra.mxu0 %v400
    %1229 = vmatprep.subr.mxu0 0.0
    %1230 = vmatpush1.msra.mxu0 %v403
    %1231 = vmatprep.subr.mxu0 0.0
    %1232 = vmatpush1.msra.mxu0 %v406
    %1233 = vmatprep.subr.mxu0 0.0
    %1234 = vmatpush1.msra.mxu0 %v409
    %1235 = vmatprep.subr.mxu0 0.0
    %1236 = vmatpush1.msra.mxu0 %v412
    %1237 = vmatprep.subr.mxu0 0.0
    %1238 = vmatpush1.msra.mxu0 %v415
    %1239 = vmatprep.subr.mxu0 0.0
    %1240 = vmatpush1.msra.mxu0 %v418
    %1241 = vmatprep.subr.mxu0 0.0
    %1242 = vmatpush1.msra.mxu0 %v421
    %1243 = vmatprep.subr.mxu0 0.0
    %1244 = vmatpush1.msra.mxu0 %v424
    %1245 = vmatprep.subr.mxu0 0.0
    %1246 = vmatpush1.msra.mxu0 %v427
    %1247 = vmatprep.subr.mxu0 0.0
    %1248 = vmatpush1.msra.mxu0 0.0
    %1249 = vmatprep.subr.mxu0 0.0
    %1250 = vmatpush1.msra.mxu0 0.0
    %1251 = vmatprep.subr.mxu0 0.0
    %1252 = vmatpush1.msra.mxu0 0.0
    %1253 = vmatprep.subr.mxu0 0.0
    %1254 = vmatpush1.msra.mxu0 0.0
    %1255 = vmatprep.subr.mxu0 0.0
    %1256 = vmatpush1.msra.mxu0 0.0
    %1257 = vmatprep.subr.mxu0 0.0
    %1258 = vmatpush1.msra.mxu0 0.0
    %1259 = vmatprep.subr.mxu0 0.0
    %1260 = vmatpush1.msra.mxu0 0.0
    %1261 = vmatprep.subr.mxu0 0.0
    %1262 = vmatpush1.msra.mxu0 0.0
    %1263 = vmatprep.subr.mxu0 0.0
    %1264 = vmatpush1.msra.mxu0 0.0
    %1265 = vmatprep.subr.mxu0 0.0
    %1266 = vmatpush1.msra.mxu0 0.0
    %1267 = vmatprep.subr.mxu0 0.0
    %1268 = vmatpush1.msra.mxu0 0.0
    %1269 = vmatprep.subr.mxu0 0.0
    %1270 = vmatpush1.msra.mxu0 0.0
    %1271 = vmatprep.subr.mxu0 0.0
    %1272 = vmatpush1.msra.mxu0 0.0
    %1273 = vmatprep.subr.mxu0 0.0
    %1274 = vmatpush1.msra.mxu0 0.0
    %1275 = vmatprep.subr.mxu0 0.0
    %1276 = vmatpush1.msra.mxu0 0.0
    %1277 = vmatprep.subr.mxu0 0.0
    %1278 = vmatpush1.msra.mxu0 0.0
    %1279 = vmatprep.mubr.f32.mxu0 0.0
    %1280 = vmatmul.mubr.f32.gmra.mrb[0].mxu0 %v606
    %v1281 = vpop.f32.mrb[0].mxu0
    %v1282 = vadd.f32 %v441, %v1281
    %v1283 = vpop.f32.mrb[0].mxu0
    %1284 = vdwg.mxu0
    %v1285 = vadd.f32 %v1141, %v1211
    %v1286 = vadd.f32 %v1142, %v1213
    %v1287 = vxor.u32 %v1285, 2147483648
    %v1288 = vxor.u32 %v1286, 2147483648
    %v1289 = vmul.f32 %v1287, 1.442695
    %v1290 = vpow.pop %v1289
    %v1291 = vmul.f32 %v1288, 1.442695
    %v1292 = vpow.pop %v1291
    %v1293 = vadd.f32 %v1290, 1.0
    %v1294 = vadd.f32 %v1292, 1.0
    %v1295 = vrcp.pop %v1293
    %v1296 = vmul.f32 1.0, %v1295
    %v1297 = vrcp.pop %v1294
    %v1298 = vmul.f32 1.0, %v1297
    %v1299 = vmul.f32 %v1296, %v1282
    %v1300 = vadd.f32 %v1143, %v1299
    %v1301 = vtanh.pop %v1300
    %v1302 = vsub.f32 1.0, %v1298
    %v1303 = vmul.f32 %v1302, %v1301
    %v1304 = vmul.f32 %v1298, %v606
    %v1305 = vadd.f32 %v1303, %v1304
    %1306 = vmatprep.subr.mxu0 %v608
    %1307 = vmatpush1.msra.mxu0 %v607
    %1308 = vmatprep.subr.mxu0 %v611
    %1309 = vmatpush1.msra.mxu0 %v610
    %1310 = vmatprep.subr.mxu0 %v614
    %1311 = vmatpush1.msra.mxu0 %v613
    %1312 = vmatprep.subr.mxu0 %v617
    %1313 = vmatpush1.msra.mxu0 %v616
    %1314 = vmatprep.subr.mxu0 %v620
    %1315 = vmatpush1.msra.mxu0 %v619
    %1316 = vmatprep.subr.mxu0 %v623
    %1317 = vmatpush1.msra.mxu0 %v622
    %1318 = vmatprep.subr.mxu0 %v626
    %1319 = vmatpush1.msra.mxu0 %v625
    %1320 = vmatprep.subr.mxu0 %v629
    %1321 = vmatpush1.msra.mxu0 %v628
    %1322 = vmatprep.subr.mxu0 %v632
    %1323 = vmatpush1.msra.mxu0 %v631
    %1324 = vmatprep.subr.mxu0 %v635
    %1325 = vmatpush1.msra.mxu0 %v634
    %1326 = vmatprep.subr.mxu0 %v638
    %1327 = vmatpush1.msra.mxu0 %v637
    %1328 = vmatprep.subr.mxu0 %v641
    %1329 = vmatpush1.msra.mxu0 %v640
    %1330 = vmatprep.subr.mxu0 %v644
    %1331 = vmatpush1.msra.mxu0 %v643
    %1332 = vmatprep.subr.mxu0 %v647
    %1333 = vmatpush1.msra.mxu0 %v646
    %1334 = vmatprep.subr.mxu0 %v650
    %1335 = vmatpush1.msra.mxu0 %v649
    %1336 = vmatprep.subr.mxu0 %v653
    %1337 = vmatpush1.msra.mxu0 %v652
    %1338 = vmatprep.subr.mxu0 0.0
    %1339 = vmatpush1.msra.mxu0 0.0
    %1340 = vmatprep.subr.mxu0 0.0
    %1341 = vmatpush1.msra.mxu0 0.0
    %1342 = vmatprep.subr.mxu0 0.0
    %1343 = vmatpush1.msra.mxu0 0.0
    %1344 = vmatprep.subr.mxu0 0.0
    %1345 = vmatpush1.msra.mxu0 0.0
    %1346 = vmatprep.subr.mxu0 0.0
    %1347 = vmatpush1.msra.mxu0 0.0
    %1348 = vmatprep.subr.mxu0 0.0
    %1349 = vmatpush1.msra.mxu0 0.0
    %1350 = vmatprep.subr.mxu0 0.0
    %1351 = vmatpush1.msra.mxu0 0.0
    %1352 = vmatprep.subr.mxu0 0.0
    %1353 = vmatpush1.msra.mxu0 0.0
    %1354 = vmatprep.subr.mxu0 0.0
    %1355 = vmatpush1.msra.mxu0 0.0
    %1356 = vmatprep.subr.mxu0 0.0
    %1357 = vmatpush1.msra.mxu0 0.0
    %1358 = vmatprep.subr.mxu0 0.0
    %1359 = vmatpush1.msra.mxu0 0.0
    %1360 = vmatprep.subr.mxu0 0.0
    %1361 = vmatpush1.msra.mxu0 0.0
    %1362 = vmatprep.subr.mxu0 0.0
    %1363 = vmatpush1.msra.mxu0 0.0
    %1364 = vmatprep.subr.mxu0 0.0
    %1365 = vmatpush1.msra.mxu0 0.0
    %1366 = vmatprep.subr.mxu0 0.0
    %1367 = vmatpush1.msra.mxu0 0.0
    %1368 = vmatprep.subr.mxu0 0.0
    %1369 = vmatpush1.msra.mxu0 0.0
    %1370 = vmatprep.mubr.f32.mxu0 0.0
    %1371 = vmatmul.mubr.f32.gmra.mrb[0].mxu0 %v1305
    %v1372 = vpop.f32.mrb[0].mxu0
    %v1373 = vadd.f32 %v660, %v1372
    %v1374 = vpop.f32.mrb[0].mxu0
    %v1375 = vadd.f32 %v664, %v1374
    %1376 = vdwg.mxu0
    %1377 = vmatprep.subr.mxu0 0.0
    %1378 = vmatpush1.msra.mxu0 %v609
    %1379 = vmatprep.subr.mxu0 0.0
    %1380 = vmatpush1.msra.mxu0 %v612
    %1381 = vmatprep.subr.mxu0 0.0
    %1382 = vmatpush1.msra.mxu0 %v615
    %1383 = vmatprep.subr.mxu0 0.0
    %1384 = vmatpush1.msra.mxu0 %v618
    %1385 = vmatprep.subr.mxu0 0.0
    %1386 = vmatpush1.msra.mxu0 %v621
    %1387 = vmatprep.subr.mxu0 0.0
    %1388 = vmatpush1.msra.mxu0 %v624
    %1389 = vmatprep.subr.mxu0 0.0
    %1390 = vmatpush1.msra.mxu0 %v627
    %1391 = vmatprep.subr.mxu0 0.0
    %1392 = vmatpush1.msra.mxu0 %v630
    %1393 = vmatprep.subr.mxu0 0.0
    %1394 = vmatpush1.msra.mxu0 %v633
    %1395 = vmatprep.subr.mxu0 0.0
    %1396 = vmatpush1.msra.mxu0 %v636
    %1397 = vmatprep.subr.mxu0 0.0
    %1398 = vmatpush1.msra.mxu0 %v639
    %1399 = vmatprep.subr.mxu0 0.0
    %1400 = vmatpush1.msra.mxu0 %v642
    %1401 = vmatprep.subr.mxu0 0.0
    %1402 = vmatpush1.msra.mxu0 %v645
    %1403 = vmatprep.subr.mxu0 0.0
    %1404 = vmatpush1.msra.mxu0 %v648
    %1405 = vmatprep.subr.mxu0 0.0
    %1406 = vmatpush1.msra.mxu0 %v651
    %1407 = vmatprep.subr.mxu0 0.0
    %1408 = vmatpush1.msra.mxu0 %v654
    %1409 = vmatprep.subr.mxu0 0.0
    %1410 = vmatpush1.msra.mxu0 0.0
    %1411 = vmatprep.subr.mxu0 0.0
    %1412 = vmatpush1.msra.mxu0 0.0
    %1413 = vmatprep.subr.mxu0 0.0
    %1414 = vmatpush1.msra.mxu0 0.0
    %1415 = vmatprep.subr.mxu0 0.0
    %1416 = vmatpush1.msra.mxu0 0.0
    %1417 = vmatprep.subr.mxu0 0.0
    %1418 = vmatpush1.msra.mxu0 0.0
    %1419 = vmatprep.subr.mxu0 0.0
    %1420 = vmatpush1.msra.mxu0 0.0
    %1421 = vmatprep.subr.mxu0 0.0
    %1422 = vmatpush1.msra.mxu0 0.0
    %1423 = vmatprep.subr.mxu0 0.0
    %1424 = vmatpush1.msra.mxu0 0.0
    %1425 = vmatprep.subr.mxu0 0.0
    %1426 = vmatpush1.msra.mxu0 0.0
    %1427 = vmatprep.subr.mxu0 0.0
    %1428 = vmatpush1.msra.mxu0 0.0
    %1429 = vmatprep.subr.mxu0 0.0
    %1430 = vmatpush1.msra.mxu0 0.0
    %1431 = vmatprep.subr.mxu0 0.0
    %1432 = vmatpush1.msra.mxu0 0.0
    %1433 = vmatprep.subr.mxu0 0.0
    %1434 = vmatpush1.msra.mxu0 0.0
    %1435 = vmatprep.subr.mxu0 0.0
    %1436 = vmatpush1.msra.mxu0 0.0
    %1437 = vmatprep.subr.mxu0 0.0
    %1438 = vmatpush1.msra.mxu0 0.0
    %1439 = vmatprep.subr.mxu0 0.0
    %1440 = vmatpush1.msra.mxu0 0.0
    %1441 = vmatprep.mubr.f32.mxu0 0.0
    %1442 = vmatmul.mubr.f32.gmra.mrb[0].mxu0 %v1305
    %v1443 = vpop.f32.mrb[0].mxu0
    %v1444 = vadd.f32 %v668, %v1443
    %v1445 = vpop.f32.mrb[0].mxu0
    %1446 = vdwg.mxu0
    %1447 = vmatprep.subr.mxu0 %v814
    %1448 = vmatpush1.msra.mxu0 %v813
    %1449 = vmatprep.subr.mxu0 %v817
    %1450 = vmatpush1.msra.mxu0 %v816
    %1451 = vmatprep.subr.mxu0 %v820
    %1452 = vmatpush1.msra.mxu0 %v819
    %1453 = vmatprep.subr.mxu0 %v823
    %1454 = vmatpush1.msra.mxu0 %v822
    %1455 = vmatprep.subr.mxu0 %v826
    %1456 = vmatpush1.msra.mxu0 %v825
    %1457 = vmatprep.subr.mxu0 %v829
    %1458 = vmatpush1.msra.mxu0 %v828
    %1459 = vmatprep.subr.mxu0 %v832
    %1460 = vmatpush1.msra.mxu0 %v831
    %1461 = vmatprep.subr.mxu0 %v835
    %1462 = vmatpush1.msra.mxu0 %v834
    %1463 = vmatprep.subr.mxu0 %v838
    %1464 = vmatpush1.msra.mxu0 %v837
    %1465 = vmatprep.subr.mxu0 %v841
    %1466 = vmatpush1.msra.mxu0 %v840
    %1467 = vmatprep.subr.mxu0 %v844
    %1468 = vmatpush1.msra.mxu0 %v843
    %1469 = vmatprep.subr.mxu0 %v847
    %1470 = vmatpush1.msra.mxu0 %v846
    %1471 = vmatprep.subr.mxu0 %v850
    %1472 = vmatpush1.msra.mxu0 %v849
    %1473 = vmatprep.subr.mxu0 %v853
    %1474 = vmatpush1.msra.mxu0 %v852
    %1475 = vmatprep.subr.mxu0 %v856
    %1476 = vmatpush1.msra.mxu0 %v855
    %1477 = vmatprep.subr.mxu0 %v859
    %1478 = vmatpush1.msra.mxu0 %v858
    %1479 = vmatprep.subr.mxu0 0.0
    %1480 = vmatpush1.msra.mxu0 0.0
    %1481 = vmatprep.subr.mxu0 0.0
    %1482 = vmatpush1.msra.mxu0 0.0
    %1483 = vmatprep.subr.mxu0 0.0
    %1484 = vmatpush1.msra.mxu0 0.0
    %1485 = vmatprep.subr.mxu0 0.0
    %1486 = vmatpush1.msra.mxu0 0.0
    %1487 = vmatprep.subr.mxu0 0.0
    %1488 = vmatpush1.msra.mxu0 0.0
    %1489 = vmatprep.subr.mxu0 0.0
    %1490 = vmatpush1.msra.mxu0 0.0
    %1491 = vmatprep.subr.mxu0 0.0
    %1492 = vmatpush1.msra.mxu0 0.0
    %1493 = vmatprep.subr.mxu0 0.0
    %1494 = vmatpush1.msra.mxu0 0.0
    %1495 = vmatprep.subr.mxu0 0.0
    %1496 = vmatpush1.msra.mxu0 0.0
    %1497 = vmatprep.subr.mxu0 0.0
    %1498 = vmatpush1.msra.mxu0 0.0
    %1499 = vmatprep.subr.mxu0 0.0
    %1500 = vmatpush1.msra.mxu0 0.0
    %1501 = vmatprep.subr.mxu0 0.0
    %1502 = vmatpush1.msra.mxu0 0.0
    %1503 = vmatprep.subr.mxu0 0.0
    %1504 = vmatpush1.msra.mxu0 0.0
    %1505 = vmatprep.subr.mxu0 0.0
    %1506 = vmatpush1.msra.mxu0 0.0
    %1507 = vmatprep.subr.mxu0 0.0
    %1508 = vmatpush1.msra.mxu0 0.0
    %1509 = vmatprep.subr.mxu0 0.0
    %1510 = vmatpush1.msra.mxu0 0.0
    %1511 = vmatprep.mubr.f32.mxu0 0.0
    %1512 = vmatmul.mubr.f32.gmra.mrb[0].mxu0 %v1039
    %v1513 = vpop.f32.mrb[0].mxu0
    %v1514 = vadd.f32 %v866, %v1513
    %v1515 = vpop.f32.mrb[0].mxu0
    %v1516 = vadd.f32 %v870, %v1515
    %1517 = vdwg.mxu0
    %1518 = vmatprep.subr.mxu0 0.0
    %1519 = vmatpush1.msra.mxu0 %v815
    %1520 = vmatprep.subr.mxu0 0.0
    %1521 = vmatpush1.msra.mxu0 %v818
    %1522 = vmatprep.subr.mxu0 0.0
    %1523 = vmatpush1.msra.mxu0 %v821
    %1524 = vmatprep.subr.mxu0 0.0
    %1525 = vmatpush1.msra.mxu0 %v824
    %1526 = vmatprep.subr.mxu0 0.0
    %1527 = vmatpush1.msra.mxu0 %v827
    %1528 = vmatprep.subr.mxu0 0.0
    %1529 = vmatpush1.msra.mxu0 %v830
    %1530 = vmatprep.subr.mxu0 0.0
    %1531 = vmatpush1.msra.mxu0 %v833
    %1532 = vmatprep.subr.mxu0 0.0
    %1533 = vmatpush1.msra.mxu0 %v836
    %1534 = vmatprep.subr.mxu0 0.0
    %1535 = vmatpush1.msra.mxu0 %v839
    %1536 = vmatprep.subr.mxu0 0.0
    %1537 = vmatpush1.msra.mxu0 %v842
    %1538 = vmatprep.subr.mxu0 0.0
    %1539 = vmatpush1.msra.mxu0 %v845
    %1540 = vmatprep.subr.mxu0 0.0
    %1541 = vmatpush1.msra.mxu0 %v848
    %1542 = vmatprep.subr.mxu0 0.0
    %1543 = vmatpush1.msra.mxu0 %v851
    %1544 = vmatprep.subr.mxu0 0.0
    %1545 = vmatpush1.msra.mxu0 %v854
    %1546 = vmatprep.subr.mxu0 0.0
    %1547 = vmatpush1.msra.mxu0 %v857
    %1548 = vmatprep.subr.mxu0 0.0
    %1549 = vmatpush1.msra.mxu0 %v860
    %1550 = vmatprep.subr.mxu0 0.0
    %1551 = vmatpush1.msra.mxu0 0.0
    %1552 = vmatprep.subr.mxu0 0.0
    %1553 = vmatpush1.msra.mxu0 0.0
    %1554 = vmatprep.subr.mxu0 0.0
    %1555 = vmatpush1.msra.mxu0 0.0
    %1556 = vmatprep.subr.mxu0 0.0
    %1557 = vmatpush1.msra.mxu0 0.0
    %1558 = vmatprep.subr.mxu0 0.0
    %1559 = vmatpush1.msra.mxu0 0.0
    %1560 = vmatprep.subr.mxu0 0.0
    %1561 = vmatpush1.msra.mxu0 0.0
    %1562 = vmatprep.subr.mxu0 0.0
    %1563 = vmatpush1.msra.mxu0 0.0
    %1564 = vmatprep.subr.mxu0 0.0
    %1565 = vmatpush1.msra.mxu0 0.0
    %1566 = vmatprep.subr.mxu0 0.0
    %1567 = vmatpush1.msra.mxu0 0.0
    %1568 = vmatprep.subr.mxu0 0.0
    %1569 = vmatpush1.msra.mxu0 0.0
    %1570 = vmatprep.subr.mxu0 0.0
    %1571 = vmatpush1.msra.mxu0 0.0
    %1572 = vmatprep.subr.mxu0 0.0
    %1573 = vmatpush1.msra.mxu0 0.0
    %1574 = vmatprep.subr.mxu0 0.0
    %1575 = vmatpush1.msra.mxu0 0.0
    %1576 = vmatprep.subr.mxu0 0.0
    %1577 = vmatpush1.msra.mxu0 0.0
    %1578 = vmatprep.subr.mxu0 0.0
    %1579 = vmatpush1.msra.mxu0 0.0
    %1580 = vmatprep.subr.mxu0 0.0
    %1581 = vmatpush1.msra.mxu0 0.0
    %1582 = vmatprep.mubr.f32.mxu0 0.0
    %1583 = vmatmul.mubr.f32.gmra.mrb[0].mxu0 %v1039
    %v1584 = vpop.f32.mrb[0].mxu0
    %v1585 = vadd.f32 %v874, %v1584
    %v1586 = vpop.f32.mrb[0].mxu0
    %1587 = vdwg.mxu0
    %v1588 = vadd.f32 %v1373, %v1514
    %v1589 = vadd.f32 %v1375, %v1516
    %v1590 = vxor.u32 %v1588, 2147483648
    %v1591 = vxor.u32 %v1589, 2147483648
    %v1592 = vmul.f32 %v1590, 1.442695
    %v1593 = vpow.pop %v1592
    %v1594 = vmul.f32 %v1591, 1.442695
    %v1595 = vpow.pop %v1594
    %v1596 = vadd.f32 %v1593, 1.0
    %v1597 = vadd.f32 %v1595, 1.0
    %v1598 = vrcp.pop %v1596
    %v1599 = vmul.f32 1.0, %v1598
    %v1600 = vrcp.pop %v1597
    %v1601 = vmul.f32 1.0, %v1600
    %v1602 = vmul.f32 %v1599, %v1585
    %v1603 = vadd.f32 %v1444, %v1602
    %v1604 = vtanh.pop %v1603
    %v1605 = vsub.f32 1.0, %v1601
    %v1606 = vmul.f32 %v1605, %v1604
    %v1607 = vmul.f32 %v1601, %v1039
    %v1608 = vadd.f32 %v1606, %v1607
    %1609 = vmatprep.subr.mxu0 0.0
    %1610 = vmatpush1.msra.mxu0 %v1040
    %1611 = vmatprep.subr.mxu0 0.0
    %1612 = vmatpush1.msra.mxu0 %v1041
    %1613 = vmatprep.subr.mxu0 0.0
    %1614 = vmatpush1.msra.mxu0 %v1042
    %1615 = vmatprep.subr.mxu0 0.0
    %1616 = vmatpush1.msra.mxu0 %v1043
    %1617 = vmatprep.subr.mxu0 0.0
    %1618 = vmatpush1.msra.mxu0 %v1044
    %1619 = vmatprep.subr.mxu0 0.0
    %1620 = vmatpush1.msra.mxu0 %v1045
    %1621 = vmatprep.subr.mxu0 0.0
    %1622 = vmatpush1.msra.mxu0 %v1046
    %1623 = vmatprep.subr.mxu0 0.0
    %1624 = vmatpush1.msra.mxu0 %v1047
    %1625 = vmatprep.subr.mxu0 0.0
    %1626 = vmatpush1.msra.mxu0 %v1048
    %1627 = vmatprep.subr.mxu0 0.0
    %1628 = vmatpush1.msra.mxu0 %v1049
    %1629 = vmatprep.subr.mxu0 0.0
    %1630 = vmatpush1.msra.mxu0 %v1050
    %1631 = vmatprep.subr.mxu0 0.0
    %1632 = vmatpush1.msra.mxu0 %v1051
    %1633 = vmatprep.subr.mxu0 0.0
    %1634 = vmatpush1.msra.mxu0 %v1052
    %1635 = vmatprep.subr.mxu0 0.0
    %1636 = vmatpush1.msra.mxu0 %v1053
    %1637 = vmatprep.subr.mxu0 0.0
    %1638 = vmatpush1.msra.mxu0 %v1054
    %1639 = vmatprep.subr.mxu0 0.0
    %1640 = vmatpush1.msra.mxu0 %v1055
    %1641 = vmatprep.subr.mxu0 0.0
    %1642 = vmatpush1.msra.mxu0 0.0
    %1643 = vmatprep.subr.mxu0 0.0
    %1644 = vmatpush1.msra.mxu0 0.0
    %1645 = vmatprep.subr.mxu0 0.0
    %1646 = vmatpush1.msra.mxu0 0.0
    %1647 = vmatprep.subr.mxu0 0.0
    %1648 = vmatpush1.msra.mxu0 0.0
    %1649 = vmatprep.subr.mxu0 0.0
    %1650 = vmatpush1.msra.mxu0 0.0
    %1651 = vmatprep.subr.mxu0 0.0
    %1652 = vmatpush1.msra.mxu0 0.0
    %1653 = vmatprep.subr.mxu0 0.0
    %1654 = vmatpush1.msra.mxu0 0.0
    %1655 = vmatprep.subr.mxu0 0.0
    %1656 = vmatpush1.msra.mxu0 0.0
    %1657 = vmatprep.subr.mxu0 0.0
    %1658 = vmatpush1.msra.mxu0 0.0
    %1659 = vmatprep.subr.mxu0 0.0
    %1660 = vmatpush1.msra.mxu0 0.0
    %1661 = vmatprep.subr.mxu0 0.0
    %1662 = vmatpush1.msra.mxu0 0.0
    %1663 = vmatprep.subr.mxu0 0.0
    %1664 = vmatpush1.msra.mxu0 0.0
    %1665 = vmatprep.subr.mxu0 0.0
    %1666 = vmatpush1.msra.mxu0 0.0
    %1667 = vmatprep.subr.mxu0 0.0
    %1668 = vmatpush1.msra.mxu0 0.0
    %1669 = vmatprep.subr.mxu0 0.0
    %1670 = vmatpush1.msra.mxu0 0.0
    %1671 = vmatprep.subr.mxu0 0.0
    %1672 = vmatpush1.msra.mxu0 0.0
    %1673 = vmatprep.mubr.f32.mxu0 0.0
    %1674 = vmatmul.mubr.f32.gmra.mrb[0].mxu0 %v1608
    %v1675 = vpop.f32.mrb[0].mxu0
    %v1676 = vadd.f32 %v1061, %v1675
    %v1677 = vpop.f32.mrb[0].mxu0
    %1678 = vdwg.mxu0
    %v1679 = vmax.f32 %v1676, 0.0
    %s1680 = sld [smem:[#allocation4 + $0x1]]
    %v1681 = vstv %s1680
    %v1682 = vmul.f32 %v1679, %v1681
    %v1683 = vadd.f32 %v1137, %v1682
    %s1684 = smul.u32 2, 3
    %s1685 = smul.addr %s1684, 8
    %s1686 = scalar_lea.vmem [#allocation2], %s1685
    %v1687 = vld [vmem:[%s1686] sm:$0xff]
    %v1688 = vld [vmem:[%s1686 + $0x8] sm:$0xff]
    %v1689 = vld [vmem:[%s1686 + $0x10] sm:$0xff]
    %1690 = vmatprep.subr.mxu0 %v381
    %1691 = vmatpush1.msra.mxu0 %v380
    %1692 = vmatprep.subr.mxu0 %v384
    %1693 = vmatpush1.msra.mxu0 %v383
    %1694 = vmatprep.subr.mxu0 %v387
    %1695 = vmatpush1.msra.mxu0 %v386
    %1696 = vmatprep.subr.mxu0 %v390
    %1697 = vmatpush1.msra.mxu0 %v389
    %1698 = vmatprep.subr.mxu0 %v393
    %1699 = vmatpush1.msra.mxu0 %v392
    %1700 = vmatprep.subr.mxu0 %v396
    %1701 = vmatpush1.msra.mxu0 %v395
    %1702 = vmatprep.subr.mxu0 %v399
    %1703 = vmatpush1.msra.mxu0 %v398
    %1704 = vmatprep.subr.mxu0 %v402
    %1705 = vmatpush1.msra.mxu0 %v401
    %1706 = vmatprep.subr.mxu0 %v405
    %1707 = vmatpush1.msra.mxu0 %v404
    %1708 = vmatprep.subr.mxu0 %v408
    %1709 = vmatpush1.msra.mxu0 %v407
    %1710 = vmatprep.subr.mxu0 %v411
    %1711 = vmatpush1.msra.mxu0 %v410
    %1712 = vmatprep.subr.mxu0 %v414
    %1713 = vmatpush1.msra.mxu0 %v413
    %1714 = vmatprep.subr.mxu0 %v417
    %1715 = vmatpush1.msra.mxu0 %v416
    %1716 = vmatprep.subr.mxu0 %v420
    %1717 = vmatpush1.msra.mxu0 %v419
    %1718 = vmatprep.subr.mxu0 %v423
    %1719 = vmatpush1.msra.mxu0 %v422
    %1720 = vmatprep.subr.mxu0 %v426
    %1721 = vmatpush1.msra.mxu0 %v425
    %1722 = vmatprep.subr.mxu0 0.0
    %1723 = vmatpush1.msra.mxu0 0.0
    %1724 = vmatprep.subr.mxu0 0.0
    %1725 = vmatpush1.msra.mxu0 0.0
    %1726 = vmatprep.subr.mxu0 0.0
    %1727 = vmatpush1.msra.mxu0 0.0
    %1728 = vmatprep.subr.mxu0 0.0
    %1729 = vmatpush1.msra.mxu0 0.0
    %1730 = vmatprep.subr.mxu0 0.0
    %1731 = vmatpush1.msra.mxu0 0.0
    %1732 = vmatprep.subr.mxu0 0.0
    %1733 = vmatpush1.msra.mxu0 0.0
    %1734 = vmatprep.subr.mxu0 0.0
    %1735 = vmatpush1.msra.mxu0 0.0
    %1736 = vmatprep.subr.mxu0 0.0
    %1737 = vmatpush1.msra.mxu0 0.0
    %1738 = vmatprep.subr.mxu0 0.0
    %1739 = vmatpush1.msra.mxu0 0.0
    %1740 = vmatprep.subr.mxu0 0.0
    %1741 = vmatpush1.msra.mxu0 0.0
    %1742 = vmatprep.subr.mxu0 0.0
    %1743 = vmatpush1.msra.mxu0 0.0
    %1744 = vmatprep.subr.mxu0 0.0
    %1745 = vmatpush1.msra.mxu0 0.0
    %1746 = vmatprep.subr.mxu0 0.0
    %1747 = vmatpush1.msra.mxu0 0.0
    %1748 = vmatprep.subr.mxu0 0.0
    %1749 = vmatpush1.msra.mxu0 0.0
    %1750 = vmatprep.subr.mxu0 0.0
    %1751 = vmatpush1.msra.mxu0 0.0
    %1752 = vmatprep.subr.mxu0 0.0
    %1753 = vmatpush1.msra.mxu0 0.0
    %1754 = vmatprep.mubr.f32.mxu0 0.0
    %1755 = vmatmul.mubr.f32.gmra.mrb[0].mxu0 %v1305
    %v1756 = vpop.f32.mrb[0].mxu0
    %v1757 = vadd.f32 %v433, %v1756
    %v1758 = vpop.f32.mrb[0].mxu0
    %v1759 = vadd.f32 %v437, %v1758
    %1760 = vdwg.mxu0
    %1761 = vmatprep.subr.mxu0 0.0
    %1762 = vmatpush1.msra.mxu0 %v382
    %1763 = vmatprep.subr.mxu0 0.0
    %1764 = vmatpush1.msra.mxu0 %v385
    %1765 = vmatprep.subr.mxu0 0.0
    %1766 = vmatpush1.msra.mxu0 %v388
    %1767 = vmatprep.subr.mxu0 0.0
    %1768 = vmatpush1.msra.mxu0 %v391
    %1769 = vmatprep.subr.mxu0 0.0
    %1770 = vmatpush1.msra.mxu0 %v394
    %1771 = vmatprep.subr.mxu0 0.0
    %1772 = vmatpush1.msra.mxu0 %v397
    %1773 = vmatprep.subr.mxu0 0.0
    %1774 = vmatpush1.msra.mxu0 %v400
    %1775 = vmatprep.subr.mxu0 0.0
    %1776 = vmatpush1.msra.mxu0 %v403
    %1777 = vmatprep.subr.mxu0 0.0
    %1778 = vmatpush1.msra.mxu0 %v406
    %1779 = vmatprep.subr.mxu0 0.0
    %1780 = vmatpush1.msra.mxu0 %v409
    %1781 = vmatprep.subr.mxu0 0.0
    %1782 = vmatpush1.msra.mxu0 %v412
    %1783 = vmatprep.subr.mxu0 0.0
    %1784 = vmatpush1.msra.mxu0 %v415
    %1785 = vmatprep.subr.mxu0 0.0
    %1786 = vmatpush1.msra.mxu0 %v418
    %1787 = vmatprep.subr.mxu0 0.0
    %1788 = vmatpush1.msra.mxu0 %v421
    %1789 = vmatprep.subr.mxu0 0.0
    %1790 = vmatpush1.msra.mxu0 %v424
    %1791 = vmatprep.subr.mxu0 0.0
    %1792 = vmatpush1.msra.mxu0 %v427
    %1793 = vmatprep.subr.mxu0 0.0
    %1794 = vmatpush1.msra.mxu0 0.0
    %1795 = vmatprep.subr.mxu0 0.0
    %1796 = vmatpush1.msra.mxu0 0.0
    %1797 = vmatprep.subr.mxu0 0.0
    %1798 = vmatpush1.msra.mxu0 0.0
    %1799 = vmatprep.subr.mxu0 0.0
    %1800 = vmatpush1.msra.mxu0 0.0
    %1801 = vmatprep.subr.mxu0 0.0
    %1802 = vmatpush1.msra.mxu0 0.0
    %1803 = vmatprep.subr.mxu0 0.0
    %1804 = vmatpush1.msra.mxu0 0.0
    %1805 = vmatprep.subr.mxu0 0.0
    %1806 = vmatpush1.msra.mxu0 0.0
    %1807 = vmatprep.subr.mxu0 0.0
    %1808 = vmatpush1.msra.mxu0 0.0
    %1809 = vmatprep.subr.mxu0 0.0
    %1810 = vmatpush1.msra.mxu0 0.0
    %1811 = vmatprep.subr.mxu0 0.0
    %1812 = vmatpush1.msra.mxu0 0.0
    %1813 = vmatprep.subr.mxu0 0.0
    %1814 = vmatpush1.msra.mxu0 0.0
    %1815 = vmatprep.subr.mxu0 0.0
    %1816 = vmatpush1.msra.mxu0 0.0
    %1817 = vmatprep.subr.mxu0 0.0
    %1818 = vmatpush1.msra.mxu0 0.0
    %1819 = vmatprep.subr.mxu0 0.0
    %1820 = vmatpush1.msra.mxu0 0.0
    %1821 = vmatprep.subr.mxu0 0.0
    %1822 = vmatpush1.msra.mxu0 0.0
    %1823 = vmatprep.subr.mxu0 0.0
    %1824 = vmatpush1.msra.mxu0 0.0
    %1825 = vmatprep.mubr.f32.mxu0 0.0
    %1826 = vmatmul.mubr.f32.gmra.mrb[0].mxu0 %v1305
    %v1827 = vpop.f32.mrb[0].mxu0
    %v1828 = vadd.f32 %v441, %v1827
    %v1829 = vpop.f32.mrb[0].mxu0
    %1830 = vdwg.mxu0
    %v1831 = vadd.f32 %v1687, %v1757
    %v1832 = vadd.f32 %v1688, %v1759
    %v1833 = vxor.u32 %v1831, 2147483648
    %v1834 = vxor.u32 %v1832, 2147483648
    %v1835 = vmul.f32 %v1833, 1.442695
    %v1836 = vpow.pop %v1835
    %v1837 = vmul.f32 %v1834, 1.442695
    %v1838 = vpow.pop %v1837
    %v1839 = vadd.f32 %v1836, 1.0
    %v1840 = vadd.f32 %v1838, 1.0
    %v1841 = vrcp.pop %v1839
    %v1842 = vmul.f32 1.0, %v1841
    %v1843 = vrcp.pop %v1840
    %v1844 = vmul.f32 1.0, %v1843
    %v1845 = vmul.f32 %v1842, %v1828
    %v1846 = vadd.f32 %v1689, %v1845
    %v1847 = vtanh.pop %v1846
    %v1848 = vsub.f32 1.0, %v1844
    %v1849 = vmul.f32 %v1848, %v1847
    %v1850 = vmul.f32 %v1844, %v1305
    %v1851 = vadd.f32 %v1849, %v1850
    %1852 = vmatprep.subr.mxu0 %v608
    %1853 = vmatpush1.msra.mxu0 %v607
    %1854 = vmatprep.subr.mxu0 %v611
    %1855 = vmatpush1.msra.mxu0 %v610
    %1856 = vmatprep.subr.mxu0 %v614
    %1857 = vmatpush1.msra.mxu0 %v613
    %1858 = vmatprep.subr.mxu0 %v617
    %1859 = vmatpush1.msra.mxu0 %v616
    %1860 = vmatprep.subr.mxu0 %v620
    %1861 = vmatpush1.msra.mxu0 %v619
    %1862 = vmatprep.subr.mxu0 %v623
    %1863 = vmatpush1.msra.mxu0 %v622
    %1864 = vmatprep.subr.mxu0 %v626
    %1865 = vmatpush1.msra.mxu0 %v625
    %1866 = vmatprep.subr.mxu0 %v629
    %1867 = vmatpush1.msra.mxu0 %v628
    %1868 = vmatprep.subr.mxu0 %v632
    %1869 = vmatpush1.msra.mxu0 %v631
    %1870 = vmatprep.subr.mxu0 %v635
    %1871 = vmatpush1.msra.mxu0 %v634
    %1872 = vmatprep.subr.mxu0 %v638
    %1873 = vmatpush1.msra.mxu0 %v637
    %1874 = vmatprep.subr.mxu0 %v641
    %1875 = vmatpush1.msra.mxu0 %v640
    %1876 = vmatprep.subr.mxu0 %v644
    %1877 = vmatpush1.msra.mxu0 %v643
    %1878 = vmatprep.subr.mxu0 %v647
    %1879 = vmatpush1.msra.mxu0 %v646
    %1880 = vmatprep.subr.mxu0 %v650
    %1881 = vmatpush1.msra.mxu0 %v649
    %1882 = vmatprep.subr.mxu0 %v653
    %1883 = vmatpush1.msra.mxu0 %v652
    %1884 = vmatprep.subr.mxu0 0.0
    %1885 = vmatpush1.msra.mxu0 0.0
    %1886 = vmatprep.subr.mxu0 0.0
    %1887 = vmatpush1.msra.mxu0 0.0
    %1888 = vmatprep.subr.mxu0 0.0
    %1889 = vmatpush1.msra.mxu0 0.0
    %1890 = vmatprep.subr.mxu0 0.0
    %1891 = vmatpush1.msra.mxu0 0.0
    %1892 = vmatprep.subr.mxu0 0.0
    %1893 = vmatpush1.msra.mxu0 0.0
    %1894 = vmatprep.subr.mxu0 0.0
    %1895 = vmatpush1.msra.mxu0 0.0
    %1896 = vmatprep.subr.mxu0 0.0
    %1897 = vmatpush1.msra.mxu0 0.0
    %1898 = vmatprep.subr.mxu0 0.0
    %1899 = vmatpush1.msra.mxu0 0.0
    %1900 = vmatprep.subr.mxu0 0.0
    %1901 = vmatpush1.msra.mxu0 0.0
    %1902 = vmatprep.subr.mxu0 0.0
    %1903 = vmatpush1.msra.mxu0 0.0
    %1904 = vmatprep.subr.mxu0 0.0
    %1905 = vmatpush1.msra.mxu0 0.0
    %1906 = vmatprep.subr.mxu0 0.0
    %1907 = vmatpush1.msra.mxu0 0.0
    %1908 = vmatprep.subr.mxu0 0.0
    %1909 = vmatpush1.msra.mxu0 0.0
    %1910 = vmatprep.subr.mxu0 0.0
    %1911 = vmatpush1.msra.mxu0 0.0
    %1912 = vmatprep.subr.mxu0 0.0
    %1913 = vmatpush1.msra.mxu0 0.0
    %1914 = vmatprep.subr.mxu0 0.0
    %1915 = vmatpush1.msra.mxu0 0.0
    %1916 = vmatprep.mubr.f32.mxu0 0.0
    %1917 = vmatmul.mubr.f32.gmra.mrb[0].mxu0 %v1851
    %v1918 = vpop.f32.mrb[0].mxu0
    %v1919 = vadd.f32 %v660, %v1918
    %v1920 = vpop.f32.mrb[0].mxu0
    %v1921 = vadd.f32 %v664, %v1920
    %1922 = vdwg.mxu0
    %1923 = vmatprep.subr.mxu0 0.0
    %1924 = vmatpush1.msra.mxu0 %v609
    %1925 = vmatprep.subr.mxu0 0.0
    %1926 = vmatpush1.msra.mxu0 %v612
    %1927 = vmatprep.subr.mxu0 0.0
    %1928 = vmatpush1.msra.mxu0 %v615
    %1929 = vmatprep.subr.mxu0 0.0
    %1930 = vmatpush1.msra.mxu0 %v618
    %1931 = vmatprep.subr.mxu0 0.0
    %1932 = vmatpush1.msra.mxu0 %v621
    %1933 = vmatprep.subr.mxu0 0.0
    %1934 = vmatpush1.msra.mxu0 %v624
    %1935 = vmatprep.subr.mxu0 0.0
    %1936 = vmatpush1.msra.mxu0 %v627
    %1937 = vmatprep.subr.mxu0 0.0
    %1938 = vmatpush1.msra.mxu0 %v630
    %1939 = vmatprep.subr.mxu0 0.0
    %1940 = vmatpush1.msra.mxu0 %v633
    %1941 = vmatprep.subr.mxu0 0.0
    %1942 = vmatpush1.msra.mxu0 %v636
    %1943 = vmatprep.subr.mxu0 0.0
    %1944 = vmatpush1.msra.mxu0 %v639
    %1945 = vmatprep.subr.mxu0 0.0
    %1946 = vmatpush1.msra.mxu0 %v642
    %1947 = vmatprep.subr.mxu0 0.0
    %1948 = vmatpush1.msra.mxu0 %v645
    %1949 = vmatprep.subr.mxu0 0.0
    %1950 = vmatpush1.msra.mxu0 %v648
    %1951 = vmatprep.subr.mxu0 0.0
    %1952 = vmatpush1.msra.mxu0 %v651
    %1953 = vmatprep.subr.mxu0 0.0
    %1954 = vmatpush1.msra.mxu0 %v654
    %1955 = vmatprep.subr.mxu0 0.0
    %1956 = vmatpush1.msra.mxu0 0.0
    %1957 = vmatprep.subr.mxu0 0.0
    %1958 = vmatpush1.msra.mxu0 0.0
    %1959 = vmatprep.subr.mxu0 0.0
    %1960 = vmatpush1.msra.mxu0 0.0
    %1961 = vmatprep.subr.mxu0 0.0
    %1962 = vmatpush1.msra.mxu0 0.0
    %1963 = vmatprep.subr.mxu0 0.0
    %1964 = vmatpush1.msra.mxu0 0.0
    %1965 = vmatprep.subr.mxu0 0.0
    %1966 = vmatpush1.msra.mxu0 0.0
    %1967 = vmatprep.subr.mxu0 0.0
    %1968 = vmatpush1.msra.mxu0 0.0
    %1969 = vmatprep.subr.mxu0 0.0
    %1970 = vmatpush1.msra.mxu0 0.0
    %1971 = vmatprep.subr.mxu0 0.0
    %1972 = vmatpush1.msra.mxu0 0.0
    %1973 = vmatprep.subr.mxu0 0.0
    %1974 = vmatpush1.msra.mxu0 0.0
    %1975 = vmatprep.subr.mxu0 0.0
    %1976 = vmatpush1.msra.mxu0 0.0
    %1977 = vmatprep.subr.mxu0 0.0
    %1978 = vmatpush1.msra.mxu0 0.0
    %1979 = vmatprep.subr.mxu0 0.0
    %1980 = vmatpush1.msra.mxu0 0.0
    %1981 = vmatprep.subr.mxu0 0.0
    %1982 = vmatpush1.msra.mxu0 0.0
    %1983 = vmatprep.subr.mxu0 0.0
    %1984 = vmatpush1.msra.mxu0 0.0
    %1985 = vmatprep.subr.mxu0 0.0
    %1986 = vmatpush1.msra.mxu0 0.0
    %1987 = vmatprep.mubr.f32.mxu0 0.0
    %1988 = vmatmul.mubr.f32.gmra.mrb[0].mxu0 %v1851
    %v1989 = vpop.f32.mrb[0].mxu0
    %v1990 = vadd.f32 %v668, %v1989
    %v1991 = vpop.f32.mrb[0].mxu0
    %1992 = vdwg.mxu0
    %1993 = vmatprep.subr.mxu0 %v814
    %1994 = vmatpush1.msra.mxu0 %v813
    %1995 = vmatprep.subr.mxu0 %v817
    %1996 = vmatpush1.msra.mxu0 %v816
    %1997 = vmatprep.subr.mxu0 %v820
    %1998 = vmatpush1.msra.mxu0 %v819
    %1999 = vmatprep.subr.mxu0 %v823
    %2000 = vmatpush1.msra.mxu0 %v822
    %2001 = vmatprep.subr.mxu0 %v826
    %2002 = vmatpush1.msra.mxu0 %v825
    %2003 = vmatprep.subr.mxu0 %v829
    %2004 = vmatpush1.msra.mxu0 %v828
    %2005 = vmatprep.subr.mxu0 %v832
    %2006 = vmatpush1.msra.mxu0 %v831
    %2007 = vmatprep.subr.mxu0 %v835
    %2008 = vmatpush1.msra.mxu0 %v834
    %2009 = vmatprep.subr.mxu0 %v838
    %2010 = vmatpush1.msra.mxu0 %v837
    %2011 = vmatprep.subr.mxu0 %v841
    %2012 = vmatpush1.msra.mxu0 %v840
    %2013 = vmatprep.subr.mxu0 %v844
    %2014 = vmatpush1.msra.mxu0 %v843
    %2015 = vmatprep.subr.mxu0 %v847
    %2016 = vmatpush1.msra.mxu0 %v846
    %2017 = vmatprep.subr.mxu0 %v850
    %2018 = vmatpush1.msra.mxu0 %v849
    %2019 = vmatprep.subr.mxu0 %v853
    %2020 = vmatpush1.msra.mxu0 %v852
    %2021 = vmatprep.subr.mxu0 %v856
    %2022 = vmatpush1.msra.mxu0 %v855
    %2023 = vmatprep.subr.mxu0 %v859
    %2024 = vmatpush1.msra.mxu0 %v858
    %2025 = vmatprep.subr.mxu0 0.0
    %2026 = vmatpush1.msra.mxu0 0.0
    %2027 = vmatprep.subr.mxu0 0.0
    %2028 = vmatpush1.msra.mxu0 0.0
    %2029 = vmatprep.subr.mxu0 0.0
    %2030 = vmatpush1.msra.mxu0 0.0
    %2031 = vmatprep.subr.mxu0 0.0
    %2032 = vmatpush1.msra.mxu0 0.0
    %2033 = vmatprep.subr.mxu0 0.0
    %2034 = vmatpush1.msra.mxu0 0.0
    %2035 = vmatprep.subr.mxu0 0.0
    %2036 = vmatpush1.msra.mxu0 0.0
    %2037 = vmatprep.subr.mxu0 0.0
    %2038 = vmatpush1.msra.mxu0 0.0
    %2039 = vmatprep.subr.mxu0 0.0
    %2040 = vmatpush1.msra.mxu0 0.0
    %2041 = vmatprep.subr.mxu0 0.0
    %2042 = vmatpush1.msra.mxu0 0.0
    %2043 = vmatprep.subr.mxu0 0.0
    %2044 = vmatpush1.msra.mxu0 0.0
    %2045 = vmatprep.subr.mxu0 0.0
    %2046 = vmatpush1.msra.mxu0 0.0
    %2047 = vmatprep.subr.mxu0 0.0
    %2048 = vmatpush1.msra.mxu0 0.0
    %2049 = vmatprep.subr.mxu0 0.0
    %2050 = vmatpush1.msra.mxu0 0.0
    %2051 = vmatprep.subr.mxu0 0.0
    %2052 = vmatpush1.msra.mxu0 0.0
    %2053 = vmatprep.subr.mxu0 0.0
    %2054 = vmatpush1.msra.mxu0 0.0
    %2055 = vmatprep.subr.mxu0 0.0
    %2056 = vmatpush1.msra.mxu0 0.0
    %2057 = vmatprep.mubr.f32.mxu0 0.0
    %2058 = vmatmul.mubr.f32.gmra.mrb[0].mxu0 %v1608
    %v2059 = vpop.f32.mrb[0].mxu0
    %v2060 = vadd.f32 %v866, %v2059
    %v2061 = vpop.f32.mrb[0].mxu0
    %v2062 = vadd.f32 %v870, %v2061
    %2063 = vdwg.mxu0
    %2064 = vmatprep.subr.mxu0 0.0
    %2065 = vmatpush1.msra.mxu0 %v815
    %2066 = vmatprep.subr.mxu0 0.0
    %2067 = vmatpush1.msra.mxu0 %v818
    %2068 = vmatprep.subr.mxu0 0.0
    %2069 = vmatpush1.msra.mxu0 %v821
    %2070 = vmatprep.subr.mxu0 0.0
    %2071 = vmatpush1.msra.mxu0 %v824
    %2072 = vmatprep.subr.mxu0 0.0
    %2073 = vmatpush1.msra.mxu0 %v827
    %2074 = vmatprep.subr.mxu0 0.0
    %2075 = vmatpush1.msra.mxu0 %v830
    %2076 = vmatprep.subr.mxu0 0.0
    %2077 = vmatpush1.msra.mxu0 %v833
    %2078 = vmatprep.subr.mxu0 0.0
    %2079 = vmatpush1.msra.mxu0 %v836
    %2080 = vmatprep.subr.mxu0 0.0
    %2081 = vmatpush1.msra.mxu0 %v839
    %2082 = vmatprep.subr.mxu0 0.0
    %2083 = vmatpush1.msra.mxu0 %v842
    %2084 = vmatprep.subr.mxu0 0.0
    %2085 = vmatpush1.msra.mxu0 %v845
    %2086 = vmatprep.subr.mxu0 0.0
    %2087 = vmatpush1.msra.mxu0 %v848
    %2088 = vmatprep.subr.mxu0 0.0
    %2089 = vmatpush1.msra.mxu0 %v851
    %2090 = vmatprep.subr.mxu0 0.0
    %2091 = vmatpush1.msra.mxu0 %v854
    %2092 = vmatprep.subr.mxu0 0.0
    %2093 = vmatpush1.msra.mxu0 %v857
    %2094 = vmatprep.subr.mxu0 0.0
    %2095 = vmatpush1.msra.mxu0 %v860
    %2096 = vmatprep.subr.mxu0 0.0
    %2097 = vmatpush1.msra.mxu0 0.0
    %2098 = vmatprep.subr.mxu0 0.0
    %2099 = vmatpush1.msra.mxu0 0.0
    %2100 = vmatprep.subr.mxu0 0.0
    %2101 = vmatpush1.msra.mxu0 0.0
    %2102 = vmatprep.subr.mxu0 0.0
    %2103 = vmatpush1.msra.mxu0 0.0
    %2104 = vmatprep.subr.mxu0 0.0
    %2105 = vmatpush1.msra.mxu0 0.0
    %2106 = vmatprep.subr.mxu0 0.0
    %2107 = vmatpush1.msra.mxu0 0.0
    %2108 = vmatprep.subr.mxu0 0.0
    %2109 = vmatpush1.msra.mxu0 0.0
    %2110 = vmatprep.subr.mxu0 0.0
    %2111 = vmatpush1.msra.mxu0 0.0
    %2112 = vmatprep.subr.mxu0 0.0
    %2113 = vmatpush1.msra.mxu0 0.0
    %2114 = vmatprep.subr.mxu0 0.0
    %2115 = vmatpush1.msra.mxu0 0.0
    %2116 = vmatprep.subr.mxu0 0.0
    %2117 = vmatpush1.msra.mxu0 0.0
    %2118 = vmatprep.subr.mxu0 0.0
    %2119 = vmatpush1.msra.mxu0 0.0
    %2120 = vmatprep.subr.mxu0 0.0
    %2121 = vmatpush1.msra.mxu0 0.0
    %2122 = vmatprep.subr.mxu0 0.0
    %2123 = vmatpush1.msra.mxu0 0.0
    %2124 = vmatprep.subr.mxu0 0.0
    %2125 = vmatpush1.msra.mxu0 0.0
    %2126 = vmatprep.subr.mxu0 0.0
    %2127 = vmatpush1.msra.mxu0 0.0
    %2128 = vmatprep.mubr.f32.mxu0 0.0
    %2129 = vmatmul.mubr.f32.gmra.mrb[0].mxu0 %v1608
    %v2130 = vpop.f32.mrb[0].mxu0
    %v2131 = vadd.f32 %v874, %v2130
    %v2132 = vpop.f32.mrb[0].mxu0
    %2133 = vdwg.mxu0
    %v2134 = vadd.f32 %v1919, %v2060
    %v2135 = vadd.f32 %v1921, %v2062
    %v2136 = vxor.u32 %v2134, 2147483648
    %v2137 = vxor.u32 %v2135, 2147483648
    %v2138 = vmul.f32 %v2136, 1.442695
    %v2139 = vpow.pop %v2138
    %v2140 = vmul.f32 %v2137, 1.442695
    %v2141 = vpow.pop %v2140
    %v2142 = vadd.f32 %v2139, 1.0
    %v2143 = vadd.f32 %v2141, 1.0
    %v2144 = vrcp.pop %v2142
    %v2145 = vmul.f32 1.0, %v2144
    %v2146 = vrcp.pop %v2143
    %v2147 = vmul.f32 1.0, %v2146
    %v2148 = vmul.f32 %v2145, %v2131
    %v2149 = vadd.f32 %v1990, %v2148
    %v2150 = vtanh.pop %v2149
    %v2151 = vsub.f32 1.0, %v2147
    %v2152 = vmul.f32 %v2151, %v2150
    %v2153 = vmul.f32 %v2147, %v1608
    %v2154 = vadd.f32 %v2152, %v2153
    %2155 = vmatprep.subr.mxu0 0.0
    %2156 = vmatpush1.msra.mxu0 %v1040
    %2157 = vmatprep.subr.mxu0 0.0
    %2158 = vmatpush1.msra.mxu0 %v1041
    %2159 = vmatprep.subr.mxu0 0.0
    %2160 = vmatpush1.msra.mxu0 %v1042
    %2161 = vmatprep.subr.mxu0 0.0
    %2162 = vmatpush1.msra.mxu0 %v1043
    %2163 = vmatprep.subr.mxu0 0.0
    %2164 = vmatpush1.msra.mxu0 %v1044
    %2165 = vmatprep.subr.mxu0 0.0
    %2166 = vmatpush1.msra.mxu0 %v1045
    %2167 = vmatprep.subr.mxu0 0.0
    %2168 = vmatpush1.msra.mxu0 %v1046
    %2169 = vmatprep.subr.mxu0 0.0
    %2170 = vmatpush1.msra.mxu0 %v1047
    %2171 = vmatprep.subr.mxu0 0.0
    %2172 = vmatpush1.msra.mxu0 %v1048
    %2173 = vmatprep.subr.mxu0 0.0
    %2174 = vmatpush1.msra.mxu0 %v1049
    %2175 = vmatprep.subr.mxu0 0.0
    %2176 = vmatpush1.msra.mxu0 %v1050
    %2177 = vmatprep.subr.mxu0 0.0
    %2178 = vmatpush1.msra.mxu0 %v1051
    %2179 = vmatprep.subr.mxu0 0.0
    %2180 = vmatpush1.msra.mxu0 %v1052
    %2181 = vmatprep.subr.mxu0 0.0
    %2182 = vmatpush1.msra.mxu0 %v1053
    %2183 = vmatprep.subr.mxu0 0.0
    %2184 = vmatpush1.msra.mxu0 %v1054
    %2185 = vmatprep.subr.mxu0 0.0
    %2186 = vmatpush1.msra.mxu0 %v1055
    %2187 = vmatprep.subr.mxu0 0.0
    %2188 = vmatpush1.msra.mxu0 0.0
    %2189 = vmatprep.subr.mxu0 0.0
    %2190 = vmatpush1.msra.mxu0 0.0
    %2191 = vmatprep.subr.mxu0 0.0
    %2192 = vmatpush1.msra.mxu0 0.0
    %2193 = vmatprep.subr.mxu0 0.0
    %2194 = vmatpush1.msra.mxu0 0.0
    %2195 = vmatprep.subr.mxu0 0.0
    %2196 = vmatpush1.msra.mxu0 0.0
    %2197 = vmatprep.subr.mxu0 0.0
    %2198 = vmatpush1.msra.mxu0 0.0
    %2199 = vmatprep.subr.mxu0 0.0
    %2200 = vmatpush1.msra.mxu0 0.0
    %2201 = vmatprep.subr.mxu0 0.0
    %2202 = vmatpush1.msra.mxu0 0.0
    %2203 = vmatprep.subr.mxu0 0.0
    %2204 = vmatpush1.msra.mxu0 0.0
    %2205 = vmatprep.subr.mxu0 0.0
    %2206 = vmatpush1.msra.mxu0 0.0
    %2207 = vmatprep.subr.mxu0 0.0
    %2208 = vmatpush1.msra.mxu0 0.0
    %2209 = vmatprep.subr.mxu0 0.0
    %2210 = vmatpush1.msra.mxu0 0.0
    %2211 = vmatprep.subr.mxu0 0.0
    %2212 = vmatpush1.msra.mxu0 0.0
    %2213 = vmatprep.subr.mxu0 0.0
    %2214 = vmatpush1.msra.mxu0 0.0
    %2215 = vmatprep.subr.mxu0 0.0
    %2216 = vmatpush1.msra.mxu0 0.0
    %2217 = vmatprep.subr.mxu0 0.0
    %2218 = vmatpush1.msra.mxu0 0.0
    %2219 = vmatprep.mubr.f32.mxu0 0.0
    %2220 = vmatmul.mubr.f32.gmra.mrb[0].mxu0 %v2154
    %v2221 = vpop.f32.mrb[0].mxu0
    %v2222 = vadd.f32 %v1061, %v2221
    %v2223 = vpop.f32.mrb[0].mxu0
    %2224 = vdwg.mxu0
    %v2225 = vmax.f32 %v2222, 0.0
    %s2226 = sld [smem:[#allocation4 + $0x2]]
    %v2227 = vstv %s2226
    %v2228 = vmul.f32 %v2225, %v2227
    %v2229 = vadd.f32 %v1683, %v2228
    %s2230 = smul.u32 3, 3
    %s2231 = smul.addr %s2230, 8
    %s2232 = scalar_lea.vmem [#allocation2], %s2231
    %v2233 = vld [vmem:[%s2232] sm:$0xff]
    %v2234 = vld [vmem:[%s2232 + $0x8] sm:$0xff]
    %v2235 = vld [vmem:[%s2232 + $0x10] sm:$0xff]
    %2236 = vmatprep.subr.mxu0 %v381
    %2237 = vmatpush1.msra.mxu0 %v380
    %2238 = vmatprep.subr.mxu0 %v384
    %2239 = vmatpush1.msra.mxu0 %v383
    %2240 = vmatprep.subr.mxu0 %v387
    %2241 = vmatpush1.msra.mxu0 %v386
    %2242 = vmatprep.subr.mxu0 %v390
    %2243 = vmatpush1.msra.mxu0 %v389
    %2244 = vmatprep.subr.mxu0 %v393
    %2245 = vmatpush1.msra.mxu0 %v392
    %2246 = vmatprep.subr.mxu0 %v396
    %2247 = vmatpush1.msra.mxu0 %v395
    %2248 = vmatprep.subr.mxu0 %v399
    %2249 = vmatpush1.msra.mxu0 %v398
    %2250 = vmatprep.subr.mxu0 %v402
    %2251 = vmatpush1.msra.mxu0 %v401
    %2252 = vmatprep.subr.mxu0 %v405
    %2253 = vmatpush1.msra.mxu0 %v404
    %2254 = vmatprep.subr.mxu0 %v408
    %2255 = vmatpush1.msra.mxu0 %v407
    %2256 = vmatprep.subr.mxu0 %v411
    %2257 = vmatpush1.msra.mxu0 %v410
    %2258 = vmatprep.subr.mxu0 %v414
    %2259 = vmatpush1.msra.mxu0 %v413
    %2260 = vmatprep.subr.mxu0 %v417
    %2261 = vmatpush1.msra.mxu0 %v416
    %2262 = vmatprep.subr.mxu0 %v420
    %2263 = vmatpush1.msra.mxu0 %v419
    %2264 = vmatprep.subr.mxu0 %v423
    %2265 = vmatpush1.msra.mxu0 %v422
    %2266 = vmatprep.subr.mxu0 %v426
    %2267 = vmatpush1.msra.mxu0 %v425
    %2268 = vmatprep.subr.mxu0 0.0
    %2269 = vmatpush1.msra.mxu0 0.0
    %2270 = vmatprep.subr.mxu0 0.0
    %2271 = vmatpush1.msra.mxu0 0.0
    %2272 = vmatprep.subr.mxu0 0.0
    %2273 = vmatpush1.msra.mxu0 0.0
    %2274 = vmatprep.subr.mxu0 0.0
    %2275 = vmatpush1.msra.mxu0 0.0
    %2276 = vmatprep.subr.mxu0 0.0
    %2277 = vmatpush1.msra.mxu0 0.0
    %2278 = vmatprep.subr.mxu0 0.0
    %2279 = vmatpush1.msra.mxu0 0.0
    %2280 = vmatprep.subr.mxu0 0.0
    %2281 = vmatpush1.msra.mxu0 0.0
    %2282 = vmatprep.subr.mxu0 0.0
    %2283 = vmatpush1.msra.mxu0 0.0
    %2284 = vmatprep.subr.mxu0 0.0
    %2285 = vmatpush1.msra.mxu0 0.0
    %2286 = vmatprep.subr.mxu0 0.0
    %2287 = vmatpush1.msra.mxu0 0.0
    %2288 = vmatprep.subr.mxu0 0.0
    %2289 = vmatpush1.msra.mxu0 0.0
    %2290 = vmatprep.subr.mxu0 0.0
    %2291 = vmatpush1.msra.mxu0 0.0
    %2292 = vmatprep.subr.mxu0 0.0
    %2293 = vmatpush1.msra.mxu0 0.0
    %2294 = vmatprep.subr.mxu0 0.0
    %2295 = vmatpush1.msra.mxu0 0.0
    %2296 = vmatprep.subr.mxu0 0.0
    %2297 = vmatpush1.msra.mxu0 0.0
    %2298 = vmatprep.subr.mxu0 0.0
    %2299 = vmatpush1.msra.mxu0 0.0
    %2300 = vmatprep.mubr.f32.mxu0 0.0
    %2301 = vmatmul.mubr.f32.gmra.mrb[0].mxu0 %v1851
    %v2302 = vpop.f32.mrb[0].mxu0
    %v2303 = vadd.f32 %v433, %v2302
    %v2304 = vpop.f32.mrb[0].mxu0
    %v2305 = vadd.f32 %v437, %v2304
    %2306 = vdwg.mxu0
    %2307 = vmatprep.subr.mxu0 0.0
    %2308 = vmatpush1.msra.mxu0 %v382
    %2309 = vmatprep.subr.mxu0 0.0
    %2310 = vmatpush1.msra.mxu0 %v385
    %2311 = vmatprep.subr.mxu0 0.0
    %2312 = vmatpush1.msra.mxu0 %v388
    %2313 = vmatprep.subr.mxu0 0.0
    %2314 = vmatpush1.msra.mxu0 %v391
    %2315 = vmatprep.subr.mxu0 0.0
    %2316 = vmatpush1.msra.mxu0 %v394
    %2317 = vmatprep.subr.mxu0 0.0
    %2318 = vmatpush1.msra.mxu0 %v397
    %2319 = vmatprep.subr.mxu0 0.0
    %2320 = vmatpush1.msra.mxu0 %v400
    %2321 = vmatprep.subr.mxu0 0.0
    %2322 = vmatpush1.msra.mxu0 %v403
    %2323 = vmatprep.subr.mxu0 0.0
    %2324 = vmatpush1.msra.mxu0 %v406
    %2325 = vmatprep.subr.mxu0 0.0
    %2326 = vmatpush1.msra.mxu0 %v409
    %2327 = vmatprep.subr.mxu0 0.0
    %2328 = vmatpush1.msra.mxu0 %v412
    %2329 = vmatprep.subr.mxu0 0.0
    %2330 = vmatpush1.msra.mxu0 %v415
    %2331 = vmatprep.subr.mxu0 0.0
    %2332 = vmatpush1.msra.mxu0 %v418
    %2333 = vmatprep.subr.mxu0 0.0
    %2334 = vmatpush1.msra.mxu0 %v421
    %2335 = vmatprep.subr.mxu0 0.0
    %2336 = vmatpush1.msra.mxu0 %v424
    %2337 = vmatprep.subr.mxu0 0.0
    %2338 = vmatpush1.msra.mxu0 %v427
    %2339 = vmatprep.subr.mxu0 0.0
    %2340 = vmatpush1.msra.mxu0 0.0
    %2341 = vmatprep.subr.mxu0 0.0
    %2342 = vmatpush1.msra.mxu0 0.0
    %2343 = vmatprep.subr.mxu0 0.0
    %2344 = vmatpush1.msra.mxu0 0.0
    %2345 = vmatprep.subr.mxu0 0.0
    %2346 = vmatpush1.msra.mxu0 0.0
    %2347 = vmatprep.subr.mxu0 0.0
    %2348 = vmatpush1.msra.mxu0 0.0
    %2349 = vmatprep.subr.mxu0 0.0
    %2350 = vmatpush1.msra.mxu0 0.0
    %2351 = vmatprep.subr.mxu0 0.0
    %2352 = vmatpush1.msra.mxu0 0.0
    %2353 = vmatprep.subr.mxu0 0.0
    %2354 = vmatpush1.msra.mxu0 0.0
    %2355 = vmatprep.subr.mxu0 0.0
    %2356 = vmatpush1.msra.mxu0 0.0
    %2357 = vmatprep.subr.mxu0 0.0
    %2358 = vmatpush1.msra.mxu0 0.0
    %2359 = vmatprep.subr.mxu0 0.0
    %2360 = vmatpush1.msra.mxu0 0.0
    %2361 = vmatprep.subr.mxu0 0.0
    %2362 = vmatpush1.msra.mxu0 0.0
    %2363 = vmatprep.subr.mxu0 0.0
    %2364 = vmatpush1.msra.mxu0 0.0
    %2365 = vmatprep.subr.mxu0 0.0
    %2366 = vmatpush1.msra.mxu0 0.0
    %2367 = vmatprep.subr.mxu0 0.0
    %2368 = vmatpush1.msra.mxu0 0.0
    %2369 = vmatprep.subr.mxu0 0.0
    %2370 = vmatpush1.msra.mxu0 0.0
    %2371 = vmatprep.mubr.f32.mxu0 0.0
    %2372 = vmatmul.mubr.f32.gmra.mrb[0].mxu0 %v1851
    %v2373 = vpop.f32.mrb[0].mxu0
    %v2374 = vadd.f32 %v441, %v2373
    %v2375 = vpop.f32.mrb[0].mxu0
    %2376 = vdwg.mxu0
    %v2377 = vadd.f32 %v2233, %v2303
    %v2378 = vadd.f32 %v2234, %v2305
    %v2379 = vxor.u32 %v2377, 2147483648
    %v2380 = vxor.u32 %v2378, 2147483648
    %v2381 = vmul.f32 %v2379, 1.442695
    %v2382 = vpow.pop %v2381
    %v2383 = vmul.f32 %v2380, 1.442695
    %v2384 = vpow.pop %v2383
    %v2385 = vadd.f32 %v2382, 1.0
    %v2386 = vadd.f32 %v2384, 1.0
    %v2387 = vrcp.pop %v2385
    %v2388 = vmul.f32 1.0, %v2387
    %v2389 = vrcp.pop %v2386
    %v2390 = vmul.f32 1.0, %v2389
    %v2391 = vmul.f32 %v2388, %v2374
    %v2392 = vadd.f32 %v2235, %v2391
    %v2393 = vtanh.pop %v2392
    %v2394 = vsub.f32 1.0, %v2390
    %v2395 = vmul.f32 %v2394, %v2393
    %v2396 = vmul.f32 %v2390, %v1851
    %v2397 = vadd.f32 %v2395, %v2396
    %2398 = vmatprep.subr.mxu0 %v608
    %2399 = vmatpush1.msra.mxu0 %v607
    %2400 = vmatprep.subr.mxu0 %v611
    %2401 = vmatpush1.msra.mxu0 %v610
    %2402 = vmatprep.subr.mxu0 %v614
    %2403 = vmatpush1.msra.mxu0 %v613
    %2404 = vmatprep.subr.mxu0 %v617
    %2405 = vmatpush1.msra.mxu0 %v616
    %2406 = vmatprep.subr.mxu0 %v620
    %2407 = vmatpush1.msra.mxu0 %v619
    %2408 = vmatprep.subr.mxu0 %v623
    %2409 = vmatpush1.msra.mxu0 %v622
    %2410 = vmatprep.subr.mxu0 %v626
    %2411 = vmatpush1.msra.mxu0 %v625
    %2412 = vmatprep.subr.mxu0 %v629
    %2413 = vmatpush1.msra.mxu0 %v628
    %2414 = vmatprep.subr.mxu0 %v632
    %2415 = vmatpush1.msra.mxu0 %v631
    %2416 = vmatprep.subr.mxu0 %v635
    %2417 = vmatpush1.msra.mxu0 %v634
    %2418 = vmatprep.subr.mxu0 %v638
    %2419 = vmatpush1.msra.mxu0 %v637
    %2420 = vmatprep.subr.mxu0 %v641
    %2421 = vmatpush1.msra.mxu0 %v640
    %2422 = vmatprep.subr.mxu0 %v644
    %2423 = vmatpush1.msra.mxu0 %v643
    %2424 = vmatprep.subr.mxu0 %v647
    %2425 = vmatpush1.msra.mxu0 %v646
    %2426 = vmatprep.subr.mxu0 %v650
    %2427 = vmatpush1.msra.mxu0 %v649
    %2428 = vmatprep.subr.mxu0 %v653
    %2429 = vmatpush1.msra.mxu0 %v652
    %2430 = vmatprep.subr.mxu0 0.0
    %2431 = vmatpush1.msra.mxu0 0.0
    %2432 = vmatprep.subr.mxu0 0.0
    %2433 = vmatpush1.msra.mxu0 0.0
    %2434 = vmatprep.subr.mxu0 0.0
    %2435 = vmatpush1.msra.mxu0 0.0
    %2436 = vmatprep.subr.mxu0 0.0
    %2437 = vmatpush1.msra.mxu0 0.0
    %2438 = vmatprep.subr.mxu0 0.0
    %2439 = vmatpush1.msra.mxu0 0.0
    %2440 = vmatprep.subr.mxu0 0.0
    %2441 = vmatpush1.msra.mxu0 0.0
    %2442 = vmatprep.subr.mxu0 0.0
    %2443 = vmatpush1.msra.mxu0 0.0
    %2444 = vmatprep.subr.mxu0 0.0
    %2445 = vmatpush1.msra.mxu0 0.0
    %2446 = vmatprep.subr.mxu0 0.0
    %2447 = vmatpush1.msra.mxu0 0.0
    %2448 = vmatprep.subr.mxu0 0.0
    %2449 = vmatpush1.msra.mxu0 0.0
    %2450 = vmatprep.subr.mxu0 0.0
    %2451 = vmatpush1.msra.mxu0 0.0
    %2452 = vmatprep.subr.mxu0 0.0
    %2453 = vmatpush1.msra.mxu0 0.0
    %2454 = vmatprep.subr.mxu0 0.0
    %2455 = vmatpush1.msra.mxu0 0.0
    %2456 = vmatprep.subr.mxu0 0.0
    %2457 = vmatpush1.msra.mxu0 0.0
    %2458 = vmatprep.subr.mxu0 0.0
    %2459 = vmatpush1.msra.mxu0 0.0
    %2460 = vmatprep.subr.mxu0 0.0
    %2461 = vmatpush1.msra.mxu0 0.0
    %2462 = vmatprep.mubr.f32.mxu0 0.0
    %2463 = vmatmul.mubr.f32.gmra.mrb[0].mxu0 %v2397
    %v2464 = vpop.f32.mrb[0].mxu0
    %v2465 = vadd.f32 %v660, %v2464
    %v2466 = vpop.f32.mrb[0].mxu0
    %v2467 = vadd.f32 %v664, %v2466
    %2468 = vdwg.mxu0
    %2469 = vmatprep.subr.mxu0 0.0
    %2470 = vmatpush1.msra.mxu0 %v609
    %2471 = vmatprep.subr.mxu0 0.0
    %2472 = vmatpush1.msra.mxu0 %v612
    %2473 = vmatprep.subr.mxu0 0.0
    %2474 = vmatpush1.msra.mxu0 %v615
    %2475 = vmatprep.subr.mxu0 0.0
    %2476 = vmatpush1.msra.mxu0 %v618
    %2477 = vmatprep.subr.mxu0 0.0
    %2478 = vmatpush1.msra.mxu0 %v621
    %2479 = vmatprep.subr.mxu0 0.0
    %2480 = vmatpush1.msra.mxu0 %v624
    %2481 = vmatprep.subr.mxu0 0.0
    %2482 = vmatpush1.msra.mxu0 %v627
    %2483 = vmatprep.subr.mxu0 0.0
    %2484 = vmatpush1.msra.mxu0 %v630
    %2485 = vmatprep.subr.mxu0 0.0
    %2486 = vmatpush1.msra.mxu0 %v633
    %2487 = vmatprep.subr.mxu0 0.0
    %2488 = vmatpush1.msra.mxu0 %v636
    %2489 = vmatprep.subr.mxu0 0.0
    %2490 = vmatpush1.msra.mxu0 %v639
    %2491 = vmatprep.subr.mxu0 0.0
    %2492 = vmatpush1.msra.mxu0 %v642
    %2493 = vmatprep.subr.mxu0 0.0
    %2494 = vmatpush1.msra.mxu0 %v645
    %2495 = vmatprep.subr.mxu0 0.0
    %2496 = vmatpush1.msra.mxu0 %v648
    %2497 = vmatprep.subr.mxu0 0.0
    %2498 = vmatpush1.msra.mxu0 %v651
    %2499 = vmatprep.subr.mxu0 0.0
    %2500 = vmatpush1.msra.mxu0 %v654
    %2501 = vmatprep.subr.mxu0 0.0
    %2502 = vmatpush1.msra.mxu0 0.0
    %2503 = vmatprep.subr.mxu0 0.0
    %2504 = vmatpush1.msra.mxu0 0.0
    %2505 = vmatprep.subr.mxu0 0.0
    %2506 = vmatpush1.msra.mxu0 0.0
    %2507 = vmatprep.subr.mxu0 0.0
    %2508 = vmatpush1.msra.mxu0 0.0
    %2509 = vmatprep.subr.mxu0 0.0
    %2510 = vmatpush1.msra.mxu0 0.0
    %2511 = vmatprep.subr.mxu0 0.0
    %2512 = vmatpush1.msra.mxu0 0.0
    %2513 = vmatprep.subr.mxu0 0.0
    %2514 = vmatpush1.msra.mxu0 0.0
    %2515 = vmatprep.subr.mxu0 0.0
    %2516 = vmatpush1.msra.mxu0 0.0
    %2517 = vmatprep.subr.mxu0 0.0
    %2518 = vmatpush1.msra.mxu0 0.0
    %2519 = vmatprep.subr.mxu0 0.0
    %2520 = vmatpush1.msra.mxu0 0.0
    %2521 = vmatprep.subr.mxu0 0.0
    %2522 = vmatpush1.msra.mxu0 0.0
    %2523 = vmatprep.subr.mxu0 0.0
    %2524 = vmatpush1.msra.mxu0 0.0
    %2525 = vmatprep.subr.mxu0 0.0
    %2526 = vmatpush1.msra.mxu0 0.0
    %2527 = vmatprep.subr.mxu0 0.0
    %2528 = vmatpush1.msra.mxu0 0.0
    %2529 = vmatprep.subr.mxu0 0.0
    %2530 = vmatpush1.msra.mxu0 0.0
    %2531 = vmatprep.subr.mxu0 0.0
    %2532 = vmatpush1.msra.mxu0 0.0
    %2533 = vmatprep.mubr.f32.mxu0 0.0
    %2534 = vmatmul.mubr.f32.gmra.mrb[0].mxu0 %v2397
    %v2535 = vpop.f32.mrb[0].mxu0
    %v2536 = vadd.f32 %v668, %v2535
    %v2537 = vpop.f32.mrb[0].mxu0
    %2538 = vdwg.mxu0
    %2539 = vmatprep.subr.mxu0 %v814
    %2540 = vmatpush1.msra.mxu0 %v813
    %2541 = vmatprep.subr.mxu0 %v817
    %2542 = vmatpush1.msra.mxu0 %v816
    %2543 = vmatprep.subr.mxu0 %v820
    %2544 = vmatpush1.msra.mxu0 %v819
    %2545 = vmatprep.subr.mxu0 %v823
    %2546 = vmatpush1.msra.mxu0 %v822
    %2547 = vmatprep.subr.mxu0 %v826
    %2548 = vmatpush1.msra.mxu0 %v825
    %2549 = vmatprep.subr.mxu0 %v829
    %2550 = vmatpush1.msra.mxu0 %v828
    %2551 = vmatprep.subr.mxu0 %v832
    %2552 = vmatpush1.msra.mxu0 %v831
    %2553 = vmatprep.subr.mxu0 %v835
    %2554 = vmatpush1.msra.mxu0 %v834
    %2555 = vmatprep.subr.mxu0 %v838
    %2556 = vmatpush1.msra.mxu0 %v837
    %2557 = vmatprep.subr.mxu0 %v841
    %2558 = vmatpush1.msra.mxu0 %v840
    %2559 = vmatprep.subr.mxu0 %v844
    %2560 = vmatpush1.msra.mxu0 %v843
    %2561 = vmatprep.subr.mxu0 %v847
    %2562 = vmatpush1.msra.mxu0 %v846
    %2563 = vmatprep.subr.mxu0 %v850
    %2564 = vmatpush1.msra.mxu0 %v849
    %2565 = vmatprep.subr.mxu0 %v853
    %2566 = vmatpush1.msra.mxu0 %v852
    %2567 = vmatprep.subr.mxu0 %v856
    %2568 = vmatpush1.msra.mxu0 %v855
    %2569 = vmatprep.subr.mxu0 %v859
    %2570 = vmatpush1.msra.mxu0 %v858
    %2571 = vmatprep.subr.mxu0 0.0
    %2572 = vmatpush1.msra.mxu0 0.0
    %2573 = vmatprep.subr.mxu0 0.0
    %2574 = vmatpush1.msra.mxu0 0.0
    %2575 = vmatprep.subr.mxu0 0.0
    %2576 = vmatpush1.msra.mxu0 0.0
    %2577 = vmatprep.subr.mxu0 0.0
    %2578 = vmatpush1.msra.mxu0 0.0
    %2579 = vmatprep.subr.mxu0 0.0
    %2580 = vmatpush1.msra.mxu0 0.0
    %2581 = vmatprep.subr.mxu0 0.0
    %2582 = vmatpush1.msra.mxu0 0.0
    %2583 = vmatprep.subr.mxu0 0.0
    %2584 = vmatpush1.msra.mxu0 0.0
    %2585 = vmatprep.subr.mxu0 0.0
    %2586 = vmatpush1.msra.mxu0 0.0
    %2587 = vmatprep.subr.mxu0 0.0
    %2588 = vmatpush1.msra.mxu0 0.0
    %2589 = vmatprep.subr.mxu0 0.0
    %2590 = vmatpush1.msra.mxu0 0.0
    %2591 = vmatprep.subr.mxu0 0.0
    %2592 = vmatpush1.msra.mxu0 0.0
    %2593 = vmatprep.subr.mxu0 0.0
    %2594 = vmatpush1.msra.mxu0 0.0
    %2595 = vmatprep.subr.mxu0 0.0
    %2596 = vmatpush1.msra.mxu0 0.0
    %2597 = vmatprep.subr.mxu0 0.0
    %2598 = vmatpush1.msra.mxu0 0.0
    %2599 = vmatprep.subr.mxu0 0.0
    %2600 = vmatpush1.msra.mxu0 0.0
    %2601 = vmatprep.subr.mxu0 0.0
    %2602 = vmatpush1.msra.mxu0 0.0
    %2603 = vmatprep.mubr.f32.mxu0 0.0
    %2604 = vmatmul.mubr.f32.gmra.mrb[0].mxu0 %v2154
    %v2605 = vpop.f32.mrb[0].mxu0
    %v2606 = vadd.f32 %v866, %v2605
    %v2607 = vpop.f32.mrb[0].mxu0
    %v2608 = vadd.f32 %v870, %v2607
    %2609 = vdwg.mxu0
    %2610 = vmatprep.subr.mxu0 0.0
    %2611 = vmatpush1.msra.mxu0 %v815
    %2612 = vmatprep.subr.mxu0 0.0
    %2613 = vmatpush1.msra.mxu0 %v818
    %2614 = vmatprep.subr.mxu0 0.0
    %2615 = vmatpush1.msra.mxu0 %v821
    %2616 = vmatprep.subr.mxu0 0.0
    %2617 = vmatpush1.msra.mxu0 %v824
    %2618 = vmatprep.subr.mxu0 0.0
    %2619 = vmatpush1.msra.mxu0 %v827
    %2620 = vmatprep.subr.mxu0 0.0
    %2621 = vmatpush1.msra.mxu0 %v830
    %2622 = vmatprep.subr.mxu0 0.0
    %2623 = vmatpush1.msra.mxu0 %v833
    %2624 = vmatprep.subr.mxu0 0.0
    %2625 = vmatpush1.msra.mxu0 %v836
    %2626 = vmatprep.subr.mxu0 0.0
    %2627 = vmatpush1.msra.mxu0 %v839
    %2628 = vmatprep.subr.mxu0 0.0
    %2629 = vmatpush1.msra.mxu0 %v842
    %2630 = vmatprep.subr.mxu0 0.0
    %2631 = vmatpush1.msra.mxu0 %v845
    %2632 = vmatprep.subr.mxu0 0.0
    %2633 = vmatpush1.msra.mxu0 %v848
    %2634 = vmatprep.subr.mxu0 0.0
    %2635 = vmatpush1.msra.mxu0 %v851
    %2636 = vmatprep.subr.mxu0 0.0
    %2637 = vmatpush1.msra.mxu0 %v854
    %2638 = vmatprep.subr.mxu0 0.0
    %2639 = vmatpush1.msra.mxu0 %v857
    %2640 = vmatprep.subr.mxu0 0.0
    %2641 = vmatpush1.msra.mxu0 %v860
    %2642 = vmatprep.subr.mxu0 0.0
    %2643 = vmatpush1.msra.mxu0 0.0
    %2644 = vmatprep.subr.mxu0 0.0
    %2645 = vmatpush1.msra.mxu0 0.0
    %2646 = vmatprep.subr.mxu0 0.0
    %2647 = vmatpush1.msra.mxu0 0.0
    %2648 = vmatprep.subr.mxu0 0.0
    %2649 = vmatpush1.msra.mxu0 0.0
    %2650 = vmatprep.subr.mxu0 0.0
    %2651 = vmatpush1.msra.mxu0 0.0
    %2652 = vmatprep.subr.mxu0 0.0
    %2653 = vmatpush1.msra.mxu0 0.0
    %2654 = vmatprep.subr.mxu0 0.0
    %2655 = vmatpush1.msra.mxu0 0.0
    %2656 = vmatprep.subr.mxu0 0.0
    %2657 = vmatpush1.msra.mxu0 0.0
    %2658 = vmatprep.subr.mxu0 0.0
    %2659 = vmatpush1.msra.mxu0 0.0
    %2660 = vmatprep.subr.mxu0 0.0
    %2661 = vmatpush1.msra.mxu0 0.0
    %2662 = vmatprep.subr.mxu0 0.0
    %2663 = vmatpush1.msra.mxu0 0.0
    %2664 = vmatprep.subr.mxu0 0.0
    %2665 = vmatpush1.msra.mxu0 0.0
    %2666 = vmatprep.subr.mxu0 0.0
    %2667 = vmatpush1.msra.mxu0 0.0
    %2668 = vmatprep.subr.mxu0 0.0
    %2669 = vmatpush1.msra.mxu0 0.0
    %2670 = vmatprep.subr.mxu0 0.0
    %2671 = vmatpush1.msra.mxu0 0.0
    %2672 = vmatprep.subr.mxu0 0.0
    %2673 = vmatpush1.msra.mxu0 0.0
    %2674 = vmatprep.mubr.f32.mxu0 0.0
    %2675 = vmatmul.mubr.f32.gmra.mrb[0].mxu0 %v2154
    %v2676 = vpop.f32.mrb[0].mxu0
    %v2677 = vadd.f32 %v874, %v2676
    %v2678 = vpop.f32.mrb[0].mxu0
    %2679 = vdwg.mxu0
    %v2680 = vadd.f32 %v2465, %v2606
    %v2681 = vadd.f32 %v2467, %v2608
    %v2682 = vxor.u32 %v2680, 2147483648
    %v2683 = vxor.u32 %v2681, 2147483648
    %v2684 = vmul.f32 %v2682, 1.442695
    %v2685 = vpow.pop %v2684
    %v2686 = vmul.f32 %v2683, 1.442695
    %v2687 = vpow.pop %v2686
    %v2688 = vadd.f32 %v2685, 1.0
    %v2689 = vadd.f32 %v2687, 1.0
    %v2690 = vrcp.pop %v2688
    %v2691 = vmul.f32 1.0, %v2690
    %v2692 = vrcp.pop %v2689
    %v2693 = vmul.f32 1.0, %v2692
    %v2694 = vmul.f32 %v2691, %v2677
    %v2695 = vadd.f32 %v2536, %v2694
    %v2696 = vtanh.pop %v2695
    %v2697 = vsub.f32 1.0, %v2693
    %v2698 = vmul.f32 %v2697, %v2696
    %v2699 = vmul.f32 %v2693, %v2154
    %v2700 = vadd.f32 %v2698, %v2699
    %2701 = vmatprep.subr.mxu0 0.0
    %2702 = vmatpush1.msra.mxu0 %v1040
    %2703 = vmatprep.subr.mxu0 0.0
    %2704 = vmatpush1.msra.mxu0 %v1041
    %2705 = vmatprep.subr.mxu0 0.0
    %2706 = vmatpush1.msra.mxu0 %v1042
    %2707 = vmatprep.subr.mxu0 0.0
    %2708 = vmatpush1.msra.mxu0 %v1043
    %2709 = vmatprep.subr.mxu0 0.0
    %2710 = vmatpush1.msra.mxu0 %v1044
    %2711 = vmatprep.subr.mxu0 0.0
    %2712 = vmatpush1.msra.mxu0 %v1045
    %2713 = vmatprep.subr.mxu0 0.0
    %2714 = vmatpush1.msra.mxu0 %v1046
    %2715 = vmatprep.subr.mxu0 0.0
    %2716 = vmatpush1.msra.mxu0 %v1047
    %2717 = vmatprep.subr.mxu0 0.0
    %2718 = vmatpush1.msra.mxu0 %v1048
    %2719 = vmatprep.subr.mxu0 0.0
    %2720 = vmatpush1.msra.mxu0 %v1049
    %2721 = vmatprep.subr.mxu0 0.0
    %2722 = vmatpush1.msra.mxu0 %v1050
    %2723 = vmatprep.subr.mxu0 0.0
    %2724 = vmatpush1.msra.mxu0 %v1051
    %2725 = vmatprep.subr.mxu0 0.0
    %2726 = vmatpush1.msra.mxu0 %v1052
    %2727 = vmatprep.subr.mxu0 0.0
    %2728 = vmatpush1.msra.mxu0 %v1053
    %2729 = vmatprep.subr.mxu0 0.0
    %2730 = vmatpush1.msra.mxu0 %v1054
    %2731 = vmatprep.subr.mxu0 0.0
    %2732 = vmatpush1.msra.mxu0 %v1055
    %2733 = vmatprep.subr.mxu0 0.0
    %2734 = vmatpush1.msra.mxu0 0.0
    %2735 = vmatprep.subr.mxu0 0.0
    %2736 = vmatpush1.msra.mxu0 0.0
    %2737 = vmatprep.subr.mxu0 0.0
    %2738 = vmatpush1.msra.mxu0 0.0
    %2739 = vmatprep.subr.mxu0 0.0
    %2740 = vmatpush1.msra.mxu0 0.0
    %2741 = vmatprep.subr.mxu0 0.0
    %2742 = vmatpush1.msra.mxu0 0.0
    %2743 = vmatprep.subr.mxu0 0.0
    %2744 = vmatpush1.msra.mxu0 0.0
    %2745 = vmatprep.subr.mxu0 0.0
    %2746 = vmatpush1.msra.mxu0 0.0
    %2747 = vmatprep.subr.mxu0 0.0
    %2748 = vmatpush1.msra.mxu0 0.0
    %2749 = vmatprep.subr.mxu0 0.0
    %2750 = vmatpush1.msra.mxu0 0.0
    %2751 = vmatprep.subr.mxu0 0.0
    %2752 = vmatpush1.msra.mxu0 0.0
    %2753 = vmatprep.subr.mxu0 0.0
    %2754 = vmatpush1.msra.mxu0 0.0
    %2755 = vmatprep.subr.mxu0 0.0
    %2756 = vmatpush1.msra.mxu0 0.0
    %2757 = vmatprep.subr.mxu0 0.0
    %2758 = vmatpush1.msra.mxu0 0.0
    %2759 = vmatprep.subr.mxu0 0.0
    %2760 = vmatpush1.msra.mxu0 0.0
    %2761 = vmatprep.subr.mxu0 0.0
    %2762 = vmatpush1.msra.mxu0 0.0
    %2763 = vmatprep.subr.mxu0 0.0
    %2764 = vmatpush1.msra.mxu0 0.0
    %2765 = vmatprep.mubr.f32.mxu0 0.0
    %2766 = vmatmul.mubr.f32.gmra.mrb[0].mxu0 %v2700
    %v2767 = vpop.f32.mrb[0].mxu0
    %v2768 = vadd.f32 %v1061, %v2767
    %v2769 = vpop.f32.mrb[0].mxu0
    %2770 = vdwg.mxu0
    %v2771 = vmax.f32 %v2768, 0.0
    %s2772 = sld [smem:[#allocation4 + $0x3]]
    %v2773 = vstv %s2772
    %v2774 = vmul.f32 %v2771, %v2773
    %v2775 = vadd.f32 %v2229, %v2774
    %s2776 = smul.u32 4, 3
    %s2777 = smul.addr %s2776, 8
    %s2778 = scalar_lea.vmem [#allocation2], %s2777
    %v2779 = vld [vmem:[%s2778] sm:$0xff]
    %v2780 = vld [vmem:[%s2778 + $0x8] sm:$0xff]
    %v2781 = vld [vmem:[%s2778 + $0x10] sm:$0xff]
    %2782 = vmatprep.subr.mxu0 %v381
    %2783 = vmatpush1.msra.mxu0 %v380
    %2784 = vmatprep.subr.mxu0 %v384
    %2785 = vmatpush1.msra.mxu0 %v383
    %2786 = vmatprep.subr.mxu0 %v387
    %2787 = vmatpush1.msra.mxu0 %v386
    %2788 = vmatprep.subr.mxu0 %v390
    %2789 = vmatpush1.msra.mxu0 %v389
    %2790 = vmatprep.subr.mxu0 %v393
    %2791 = vmatpush1.msra.mxu0 %v392
    %2792 = vmatprep.subr.mxu0 %v396
    %2793 = vmatpush1.msra.mxu0 %v395
    %2794 = vmatprep.subr.mxu0 %v399
    %2795 = vmatpush1.msra.mxu0 %v398
    %2796 = vmatprep.subr.mxu0 %v402
    %2797 = vmatpush1.msra.mxu0 %v401
    %2798 = vmatprep.subr.mxu0 %v405
    %2799 = vmatpush1.msra.mxu0 %v404
    %2800 = vmatprep.subr.mxu0 %v408
    %2801 = vmatpush1.msra.mxu0 %v407
    %2802 = vmatprep.subr.mxu0 %v411
    %2803 = vmatpush1.msra.mxu0 %v410
    %2804 = vmatprep.subr.mxu0 %v414
    %2805 = vmatpush1.msra.mxu0 %v413
    %2806 = vmatprep.subr.mxu0 %v417
    %2807 = vmatpush1.msra.mxu0 %v416
    %2808 = vmatprep.subr.mxu0 %v420
    %2809 = vmatpush1.msra.mxu0 %v419
    %2810 = vmatprep.subr.mxu0 %v423
    %2811 = vmatpush1.msra.mxu0 %v422
    %2812 = vmatprep.subr.mxu0 %v426
    %2813 = vmatpush1.msra.mxu0 %v425
    %2814 = vmatprep.subr.mxu0 0.0
    %2815 = vmatpush1.msra.mxu0 0.0
    %2816 = vmatprep.subr.mxu0 0.0
    %2817 = vmatpush1.msra.mxu0 0.0
    %2818 = vmatprep.subr.mxu0 0.0
    %2819 = vmatpush1.msra.mxu0 0.0
    %2820 = vmatprep.subr.mxu0 0.0
    %2821 = vmatpush1.msra.mxu0 0.0
    %2822 = vmatprep.subr.mxu0 0.0
    %2823 = vmatpush1.msra.mxu0 0.0
    %2824 = vmatprep.subr.mxu0 0.0
    %2825 = vmatpush1.msra.mxu0 0.0
    %2826 = vmatprep.subr.mxu0 0.0
    %2827 = vmatpush1.msra.mxu0 0.0
    %2828 = vmatprep.subr.mxu0 0.0
    %2829 = vmatpush1.msra.mxu0 0.0
    %2830 = vmatprep.subr.mxu0 0.0
    %2831 = vmatpush1.msra.mxu0 0.0
    %2832 = vmatprep.subr.mxu0 0.0
    %2833 = vmatpush1.msra.mxu0 0.0
    %2834 = vmatprep.subr.mxu0 0.0
    %2835 = vmatpush1.msra.mxu0 0.0
    %2836 = vmatprep.subr.mxu0 0.0
    %2837 = vmatpush1.msra.mxu0 0.0
    %2838 = vmatprep.subr.mxu0 0.0
    %2839 = vmatpush1.msra.mxu0 0.0
    %2840 = vmatprep.subr.mxu0 0.0
    %2841 = vmatpush1.msra.mxu0 0.0
    %2842 = vmatprep.subr.mxu0 0.0
    %2843 = vmatpush1.msra.mxu0 0.0
    %2844 = vmatprep.subr.mxu0 0.0
    %2845 = vmatpush1.msra.mxu0 0.0
    %2846 = vmatprep.mubr.f32.mxu0 0.0
    %2847 = vmatmul.mubr.f32.gmra.mrb[0].mxu0 %v2397
    %v2848 = vpop.f32.mrb[0].mxu0
    %v2849 = vadd.f32 %v433, %v2848
    %v2850 = vpop.f32.mrb[0].mxu0
    %v2851 = vadd.f32 %v437, %v2850
    %2852 = vdwg.mxu0
    %2853 = vmatprep.subr.mxu0 0.0
    %2854 = vmatpush1.msra.mxu0 %v382
    %2855 = vmatprep.subr.mxu0 0.0
    %2856 = vmatpush1.msra.mxu0 %v385
    %2857 = vmatprep.subr.mxu0 0.0
    %2858 = vmatpush1.msra.mxu0 %v388
    %2859 = vmatprep.subr.mxu0 0.0
    %2860 = vmatpush1.msra.mxu0 %v391
    %2861 = vmatprep.subr.mxu0 0.0
    %2862 = vmatpush1.msra.mxu0 %v394
    %2863 = vmatprep.subr.mxu0 0.0
    %2864 = vmatpush1.msra.mxu0 %v397
    %2865 = vmatprep.subr.mxu0 0.0
    %2866 = vmatpush1.msra.mxu0 %v400
    %2867 = vmatprep.subr.mxu0 0.0
    %2868 = vmatpush1.msra.mxu0 %v403
    %2869 = vmatprep.subr.mxu0 0.0
    %2870 = vmatpush1.msra.mxu0 %v406
    %2871 = vmatprep.subr.mxu0 0.0
    %2872 = vmatpush1.msra.mxu0 %v409
    %2873 = vmatprep.subr.mxu0 0.0
    %2874 = vmatpush1.msra.mxu0 %v412
    %2875 = vmatprep.subr.mxu0 0.0
    %2876 = vmatpush1.msra.mxu0 %v415
    %2877 = vmatprep.subr.mxu0 0.0
    %2878 = vmatpush1.msra.mxu0 %v418
    %2879 = vmatprep.subr.mxu0 0.0
    %2880 = vmatpush1.msra.mxu0 %v421
    %2881 = vmatprep.subr.mxu0 0.0
    %2882 = vmatpush1.msra.mxu0 %v424
    %2883 = vmatprep.subr.mxu0 0.0
    %2884 = vmatpush1.msra.mxu0 %v427
    %2885 = vmatprep.subr.mxu0 0.0
    %2886 = vmatpush1.msra.mxu0 0.0
    %2887 = vmatprep.subr.mxu0 0.0
    %2888 = vmatpush1.msra.mxu0 0.0
    %2889 = vmatprep.subr.mxu0 0.0
    %2890 = vmatpush1.msra.mxu0 0.0
    %2891 = vmatprep.subr.mxu0 0.0
    %2892 = vmatpush1.msra.mxu0 0.0
    %2893 = vmatprep.subr.mxu0 0.0
    %2894 = vmatpush1.msra.mxu0 0.0
    %2895 = vmatprep.subr.mxu0 0.0
    %2896 = vmatpush1.msra.mxu0 0.0
    %2897 = vmatprep.subr.mxu0 0.0
    %2898 = vmatpush1.msra.mxu0 0.0
    %2899 = vmatprep.subr.mxu0 0.0
    %2900 = vmatpush1.msra.mxu0 0.0
    %2901 = vmatprep.subr.mxu0 0.0
    %2902 = vmatpush1.msra.mxu0 0.0
    %2903 = vmatprep.subr.mxu0 0.0
    %2904 = vmatpush1.msra.mxu0 0.0
    %2905 = vmatprep.subr.mxu0 0.0
    %2906 = vmatpush1.msra.mxu0 0.0
    %2907 = vmatprep.subr.mxu0 0.0
    %2908 = vmatpush1.msra.mxu0 0.0
    %2909 = vmatprep.subr.mxu0 0.0
    %2910 = vmatpush1.msra.mxu0 0.0
    %2911 = vmatprep.subr.mxu0 0.0
    %2912 = vmatpush1.msra.mxu0 0.0
    %2913 = vmatprep.subr.mxu0 0.0
    %2914 = vmatpush1.msra.mxu0 0.0
    %2915 = vmatprep.subr.mxu0 0.0
    %2916 = vmatpush1.msra.mxu0 0.0
    %2917 = vmatprep.mubr.f32.mxu0 0.0
    %2918 = vmatmul.mubr.f32.gmra.mrb[0].mxu0 %v2397
    %v2919 = vpop.f32.mrb[0].mxu0
    %v2920 = vadd.f32 %v441, %v2919
    %v2921 = vpop.f32.mrb[0].mxu0
    %2922 = vdwg.mxu0
    %v2923 = vadd.f32 %v2779, %v2849
    %v2924 = vadd.f32 %v2780, %v2851
    %v2925 = vxor.u32 %v2923, 2147483648
    %v2926 = vxor.u32 %v2924, 2147483648
    %v2927 = vmul.f32 %v2925, 1.442695
    %v2928 = vpow.pop %v2927
    %v2929 = vmul.f32 %v2926, 1.442695
    %v2930 = vpow.pop %v2929
    %v2931 = vadd.f32 %v2928, 1.0
    %v2932 = vadd.f32 %v2930, 1.0
    %v2933 = vrcp.pop %v2931
    %v2934 = vmul.f32 1.0, %v2933
    %v2935 = vrcp.pop %v2932
    %v2936 = vmul.f32 1.0, %v2935
    %v2937 = vmul.f32 %v2934, %v2920
    %v2938 = vadd.f32 %v2781, %v2937
    %v2939 = vtanh.pop %v2938
    %v2940 = vsub.f32 1.0, %v2936
    %v2941 = vmul.f32 %v2940, %v2939
    %v2942 = vmul.f32 %v2936, %v2397
    %v2943 = vadd.f32 %v2941, %v2942
    %2944 = vmatprep.subr.mxu0 %v608
    %2945 = vmatpush1.msra.mxu0 %v607
    %2946 = vmatprep.subr.mxu0 %v611
    %2947 = vmatpush1.msra.mxu0 %v610
    %2948 = vmatprep.subr.mxu0 %v614
    %2949 = vmatpush1.msra.mxu0 %v613
    %2950 = vmatprep.subr.mxu0 %v617
    %2951 = vmatpush1.msra.mxu0 %v616
    %2952 = vmatprep.subr.mxu0 %v620
    %2953 = vmatpush1.msra.mxu0 %v619
    %2954 = vmatprep.subr.mxu0 %v623
    %2955 = vmatpush1.msra.mxu0 %v622
    %2956 = vmatprep.subr.mxu0 %v626
    %2957 = vmatpush1.msra.mxu0 %v625
    %2958 = vmatprep.subr.mxu0 %v629
    %2959 = vmatpush1.msra.mxu0 %v628
    %2960 = vmatprep.subr.mxu0 %v632
    %2961 = vmatpush1.msra.mxu0 %v631
    %2962 = vmatprep.subr.mxu0 %v635
    %2963 = vmatpush1.msra.mxu0 %v634
    %2964 = vmatprep.subr.mxu0 %v638
    %2965 = vmatpush1.msra.mxu0 %v637
    %2966 = vmatprep.subr.mxu0 %v641
    %2967 = vmatpush1.msra.mxu0 %v640
    %2968 = vmatprep.subr.mxu0 %v644
    %2969 = vmatpush1.msra.mxu0 %v643
    %2970 = vmatprep.subr.mxu0 %v647
    %2971 = vmatpush1.msra.mxu0 %v646
    %2972 = vmatprep.subr.mxu0 %v650
    %2973 = vmatpush1.msra.mxu0 %v649
    %2974 = vmatprep.subr.mxu0 %v653
    %2975 = vmatpush1.msra.mxu0 %v652
    %2976 = vmatprep.subr.mxu0 0.0
    %2977 = vmatpush1.msra.mxu0 0.0
    %2978 = vmatprep.subr.mxu0 0.0
    %2979 = vmatpush1.msra.mxu0 0.0
    %2980 = vmatprep.subr.mxu0 0.0
    %2981 = vmatpush1.msra.mxu0 0.0
    %2982 = vmatprep.subr.mxu0 0.0
    %2983 = vmatpush1.msra.mxu0 0.0
    %2984 = vmatprep.subr.mxu0 0.0
    %2985 = vmatpush1.msra.mxu0 0.0
    %2986 = vmatprep.subr.mxu0 0.0
    %2987 = vmatpush1.msra.mxu0 0.0
    %2988 = vmatprep.subr.mxu0 0.0
    %2989 = vmatpush1.msra.mxu0 0.0
    %2990 = vmatprep.subr.mxu0 0.0
    %2991 = vmatpush1.msra.mxu0 0.0
    %2992 = vmatprep.subr.mxu0 0.0
    %2993 = vmatpush1.msra.mxu0 0.0
    %2994 = vmatprep.subr.mxu0 0.0
    %2995 = vmatpush1.msra.mxu0 0.0
    %2996 = vmatprep.subr.mxu0 0.0
    %2997 = vmatpush1.msra.mxu0 0.0
    %2998 = vmatprep.subr.mxu0 0.0
    %2999 = vmatpush1.msra.mxu0 0.0
    %3000 = vmatprep.subr.mxu0 0.0
    %3001 = vmatpush1.msra.mxu0 0.0
    %3002 = vmatprep.subr.mxu0 0.0
    %3003 = vmatpush1.msra.mxu0 0.0
    %3004 = vmatprep.subr.mxu0 0.0
    %3005 = vmatpush1.msra.mxu0 0.0
    %3006 = vmatprep.subr.mxu0 0.0
    %3007 = vmatpush1.msra.mxu0 0.0
    %3008 = vmatprep.mubr.f32.mxu0 0.0
    %3009 = vmatmul.mubr.f32.gmra.mrb[0].mxu0 %v2943
    %v3010 = vpop.f32.mrb[0].mxu0
    %v3011 = vadd.f32 %v660, %v3010
    %v3012 = vpop.f32.mrb[0].mxu0
    %v3013 = vadd.f32 %v664, %v3012
    %3014 = vdwg.mxu0
    %3015 = vmatprep.subr.mxu0 0.0
    %3016 = vmatpush1.msra.mxu0 %v609
    %3017 = vmatprep.subr.mxu0 0.0
    %3018 = vmatpush1.msra.mxu0 %v612
    %3019 = vmatprep.subr.mxu0 0.0
    %3020 = vmatpush1.msra.mxu0 %v615
    %3021 = vmatprep.subr.mxu0 0.0
    %3022 = vmatpush1.msra.mxu0 %v618
    %3023 = vmatprep.subr.mxu0 0.0
    %3024 = vmatpush1.msra.mxu0 %v621
    %3025 = vmatprep.subr.mxu0 0.0
    %3026 = vmatpush1.msra.mxu0 %v624
    %3027 = vmatprep.subr.mxu0 0.0
    %3028 = vmatpush1.msra.mxu0 %v627
    %3029 = vmatprep.subr.mxu0 0.0
    %3030 = vmatpush1.msra.mxu0 %v630
    %3031 = vmatprep.subr.mxu0 0.0
    %3032 = vmatpush1.msra.mxu0 %v633
    %3033 = vmatprep.subr.mxu0 0.0
    %3034 = vmatpush1.msra.mxu0 %v636
    %3035 = vmatprep.subr.mxu0 0.0
    %3036 = vmatpush1.msra.mxu0 %v639
    %3037 = vmatprep.subr.mxu0 0.0
    %3038 = vmatpush1.msra.mxu0 %v642
    %3039 = vmatprep.subr.mxu0 0.0
    %3040 = vmatpush1.msra.mxu0 %v645
    %3041 = vmatprep.subr.mxu0 0.0
    %3042 = vmatpush1.msra.mxu0 %v648
    %3043 = vmatprep.subr.mxu0 0.0
    %3044 = vmatpush1.msra.mxu0 %v651
    %3045 = vmatprep.subr.mxu0 0.0
    %3046 = vmatpush1.msra.mxu0 %v654
    %3047 = vmatprep.subr.mxu0 0.0
    %3048 = vmatpush1.msra.mxu0 0.0
    %3049 = vmatprep.subr.mxu0 0.0
    %3050 = vmatpush1.msra.mxu0 0.0
    %3051 = vmatprep.subr.mxu0 0.0
    %3052 = vmatpush1.msra.mxu0 0.0
    %3053 = vmatprep.subr.mxu0 0.0
    %3054 = vmatpush1.msra.mxu0 0.0
    %3055 = vmatprep.subr.mxu0 0.0
    %3056 = vmatpush1.msra.mxu0 0.0
    %3057 = vmatprep.subr.mxu0 0.0
    %3058 = vmatpush1.msra.mxu0 0.0
    %3059 = vmatprep.subr.mxu0 0.0
    %3060 = vmatpush1.msra.mxu0 0.0
    %3061 = vmatprep.subr.mxu0 0.0
    %3062 = vmatpush1.msra.mxu0 0.0
    %3063 = vmatprep.subr.mxu0 0.0
    %3064 = vmatpush1.msra.mxu0 0.0
    %3065 = vmatprep.subr.mxu0 0.0
    %3066 = vmatpush1.msra.mxu0 0.0
    %3067 = vmatprep.subr.mxu0 0.0
    %3068 = vmatpush1.msra.mxu0 0.0
    %3069 = vmatprep.subr.mxu0 0.0
    %3070 = vmatpush1.msra.mxu0 0.0
    %3071 = vmatprep.subr.mxu0 0.0
    %3072 = vmatpush1.msra.mxu0 0.0
    %3073 = vmatprep.subr.mxu0 0.0
    %3074 = vmatpush1.msra.mxu0 0.0
    %3075 = vmatprep.subr.mxu0 0.0
    %3076 = vmatpush1.msra.mxu0 0.0
    %3077 = vmatprep.subr.mxu0 0.0
    %3078 = vmatpush1.msra.mxu0 0.0
    %3079 = vmatprep.mubr.f32.mxu0 0.0
    %3080 = vmatmul.mubr.f32.gmra.mrb[0].mxu0 %v2943
    %v3081 = vpop.f32.mrb[0].mxu0
    %v3082 = vadd.f32 %v668, %v3081
    %v3083 = vpop.f32.mrb[0].mxu0
    %3084 = vdwg.mxu0
    %3085 = vmatprep.subr.mxu0 %v814
    %3086 = vmatpush1.msra.mxu0 %v813
    %3087 = vmatprep.subr.mxu0 %v817
    %3088 = vmatpush1.msra.mxu0 %v816
    %3089 = vmatprep.subr.mxu0 %v820
    %3090 = vmatpush1.msra.mxu0 %v819
    %3091 = vmatprep.subr.mxu0 %v823
    %3092 = vmatpush1.msra.mxu0 %v822
    %3093 = vmatprep.subr.mxu0 %v826
    %3094 = vmatpush1.msra.mxu0 %v825
    %3095 = vmatprep.subr.mxu0 %v829
    %3096 = vmatpush1.msra.mxu0 %v828
    %3097 = vmatprep.subr.mxu0 %v832
    %3098 = vmatpush1.msra.mxu0 %v831
    %3099 = vmatprep.subr.mxu0 %v835
    %3100 = vmatpush1.msra.mxu0 %v834
    %3101 = vmatprep.subr.mxu0 %v838
    %3102 = vmatpush1.msra.mxu0 %v837
    %3103 = vmatprep.subr.mxu0 %v841
    %3104 = vmatpush1.msra.mxu0 %v840
    %3105 = vmatprep.subr.mxu0 %v844
    %3106 = vmatpush1.msra.mxu0 %v843
    %3107 = vmatprep.subr.mxu0 %v847
    %3108 = vmatpush1.msra.mxu0 %v846
    %3109 = vmatprep.subr.mxu0 %v850
    %3110 = vmatpush1.msra.mxu0 %v849
    %3111 = vmatprep.subr.mxu0 %v853
    %3112 = vmatpush1.msra.mxu0 %v852
    %3113 = vmatprep.subr.mxu0 %v856
    %3114 = vmatpush1.msra.mxu0 %v855
    %3115 = vmatprep.subr.mxu0 %v859
    %3116 = vmatpush1.msra.mxu0 %v858
    %3117 = vmatprep.subr.mxu0 0.0
    %3118 = vmatpush1.msra.mxu0 0.0
    %3119 = vmatprep.subr.mxu0 0.0
    %3120 = vmatpush1.msra.mxu0 0.0
    %3121 = vmatprep.subr.mxu0 0.0
    %3122 = vmatpush1.msra.mxu0 0.0
    %3123 = vmatprep.subr.mxu0 0.0
    %3124 = vmatpush1.msra.mxu0 0.0
    %3125 = vmatprep.subr.mxu0 0.0
    %3126 = vmatpush1.msra.mxu0 0.0
    %3127 = vmatprep.subr.mxu0 0.0
    %3128 = vmatpush1.msra.mxu0 0.0
    %3129 = vmatprep.subr.mxu0 0.0
    %3130 = vmatpush1.msra.mxu0 0.0
    %3131 = vmatprep.subr.mxu0 0.0
    %3132 = vmatpush1.msra.mxu0 0.0
    %3133 = vmatprep.subr.mxu0 0.0
    %3134 = vmatpush1.msra.mxu0 0.0
    %3135 = vmatprep.subr.mxu0 0.0
    %3136 = vmatpush1.msra.mxu0 0.0
    %3137 = vmatprep.subr.mxu0 0.0
    %3138 = vmatpush1.msra.mxu0 0.0
    %3139 = vmatprep.subr.mxu0 0.0
    %3140 = vmatpush1.msra.mxu0 0.0
    %3141 = vmatprep.subr.mxu0 0.0
    %3142 = vmatpush1.msra.mxu0 0.0
    %3143 = vmatprep.subr.mxu0 0.0
    %3144 = vmatpush1.msra.mxu0 0.0
    %3145 = vmatprep.subr.mxu0 0.0
    %3146 = vmatpush1.msra.mxu0 0.0
    %3147 = vmatprep.subr.mxu0 0.0
    %3148 = vmatpush1.msra.mxu0 0.0
    %3149 = vmatprep.mubr.f32.mxu0 0.0
    %3150 = vmatmul.mubr.f32.gmra.mrb[0].mxu0 %v2700
    %v3151 = vpop.f32.mrb[0].mxu0
    %v3152 = vadd.f32 %v866, %v3151
    %v3153 = vpop.f32.mrb[0].mxu0
    %v3154 = vadd.f32 %v870, %v3153
    %3155 = vdwg.mxu0
    %3156 = vmatprep.subr.mxu0 0.0
    %3157 = vmatpush1.msra.mxu0 %v815
    %3158 = vmatprep.subr.mxu0 0.0
    %3159 = vmatpush1.msra.mxu0 %v818
    %3160 = vmatprep.subr.mxu0 0.0
    %3161 = vmatpush1.msra.mxu0 %v821
    %3162 = vmatprep.subr.mxu0 0.0
    %3163 = vmatpush1.msra.mxu0 %v824
    %3164 = vmatprep.subr.mxu0 0.0
    %3165 = vmatpush1.msra.mxu0 %v827
    %3166 = vmatprep.subr.mxu0 0.0
    %3167 = vmatpush1.msra.mxu0 %v830
    %3168 = vmatprep.subr.mxu0 0.0
    %3169 = vmatpush1.msra.mxu0 %v833
    %3170 = vmatprep.subr.mxu0 0.0
    %3171 = vmatpush1.msra.mxu0 %v836
    %3172 = vmatprep.subr.mxu0 0.0
    %3173 = vmatpush1.msra.mxu0 %v839
    %3174 = vmatprep.subr.mxu0 0.0
    %3175 = vmatpush1.msra.mxu0 %v842
    %3176 = vmatprep.subr.mxu0 0.0
    %3177 = vmatpush1.msra.mxu0 %v845
    %3178 = vmatprep.subr.mxu0 0.0
    %3179 = vmatpush1.msra.mxu0 %v848
    %3180 = vmatprep.subr.mxu0 0.0
    %3181 = vmatpush1.msra.mxu0 %v851
    %3182 = vmatprep.subr.mxu0 0.0
    %3183 = vmatpush1.msra.mxu0 %v854
    %3184 = vmatprep.subr.mxu0 0.0
    %3185 = vmatpush1.msra.mxu0 %v857
    %3186 = vmatprep.subr.mxu0 0.0
    %3187 = vmatpush1.msra.mxu0 %v860
    %3188 = vmatprep.subr.mxu0 0.0
    %3189 = vmatpush1.msra.mxu0 0.0
    %3190 = vmatprep.subr.mxu0 0.0
    %3191 = vmatpush1.msra.mxu0 0.0
    %3192 = vmatprep.subr.mxu0 0.0
    %3193 = vmatpush1.msra.mxu0 0.0
    %3194 = vmatprep.subr.mxu0 0.0
    %3195 = vmatpush1.msra.mxu0 0.0
    %3196 = vmatprep.subr.mxu0 0.0
    %3197 = vmatpush1.msra.mxu0 0.0
    %3198 = vmatprep.subr.mxu0 0.0
    %3199 = vmatpush1.msra.mxu0 0.0
    %3200 = vmatprep.subr.mxu0 0.0
    %3201 = vmatpush1.msra.mxu0 0.0
    %3202 = vmatprep.subr.mxu0 0.0
    %3203 = vmatpush1.msra.mxu0 0.0
    %3204 = vmatprep.subr.mxu0 0.0
    %3205 = vmatpush1.msra.mxu0 0.0
    %3206 = vmatprep.subr.mxu0 0.0
    %3207 = vmatpush1.msra.mxu0 0.0
    %3208 = vmatprep.subr.mxu0 0.0
    %3209 = vmatpush1.msra.mxu0 0.0
    %3210 = vmatprep.subr.mxu0 0.0
    %3211 = vmatpush1.msra.mxu0 0.0
    %3212 = vmatprep.subr.mxu0 0.0
    %3213 = vmatpush1.msra.mxu0 0.0
    %3214 = vmatprep.subr.mxu0 0.0
    %3215 = vmatpush1.msra.mxu0 0.0
    %3216 = vmatprep.subr.mxu0 0.0
    %3217 = vmatpush1.msra.mxu0 0.0
    %3218 = vmatprep.subr.mxu0 0.0
    %3219 = vmatpush1.msra.mxu0 0.0
    %3220 = vmatprep.mubr.f32.mxu0 0.0
    %3221 = vmatmul.mubr.f32.gmra.mrb[0].mxu0 %v2700
    %v3222 = vpop.f32.mrb[0].mxu0
    %v3223 = vadd.f32 %v874, %v3222
    %v3224 = vpop.f32.mrb[0].mxu0
    %3225 = vdwg.mxu0
    %v3226 = vadd.f32 %v3011, %v3152
    %v3227 = vadd.f32 %v3013, %v3154
    %v3228 = vxor.u32 %v3226, 2147483648
    %v3229 = vxor.u32 %v3227, 2147483648
    %v3230 = vmul.f32 %v3228, 1.442695
    %v3231 = vpow.pop %v3230
    %v3232 = vmul.f32 %v3229, 1.442695
    %v3233 = vpow.pop %v3232
    %v3234 = vadd.f32 %v3231, 1.0
    %v3235 = vadd.f32 %v3233, 1.0
    %v3236 = vrcp.pop %v3234
    %v3237 = vmul.f32 1.0, %v3236
    %v3238 = vrcp.pop %v3235
    %v3239 = vmul.f32 1.0, %v3238
    %v3240 = vmul.f32 %v3237, %v3223
    %v3241 = vadd.f32 %v3082, %v3240
    %v3242 = vtanh.pop %v3241
    %v3243 = vsub.f32 1.0, %v3239
    %v3244 = vmul.f32 %v3243, %v3242
    %v3245 = vmul.f32 %v3239, %v2700
    %v3246 = vadd.f32 %v3244, %v3245
    %3247 = vmatprep.subr.mxu0 0.0
    %3248 = vmatpush1.msra.mxu0 %v1040
    %3249 = vmatprep.subr.mxu0 0.0
    %3250 = vmatpush1.msra.mxu0 %v1041
    %3251 = vmatprep.subr.mxu0 0.0
    %3252 = vmatpush1.msra.mxu0 %v1042
    %3253 = vmatprep.subr.mxu0 0.0
    %3254 = vmatpush1.msra.mxu0 %v1043
    %3255 = vmatprep.subr.mxu0 0.0
    %3256 = vmatpush1.msra.mxu0 %v1044
    %3257 = vmatprep.subr.mxu0 0.0
    %3258 = vmatpush1.msra.mxu0 %v1045
    %3259 = vmatprep.subr.mxu0 0.0
    %3260 = vmatpush1.msra.mxu0 %v1046
    %3261 = vmatprep.subr.mxu0 0.0
    %3262 = vmatpush1.msra.mxu0 %v1047
    %3263 = vmatprep.subr.mxu0 0.0
    %3264 = vmatpush1.msra.mxu0 %v1048
    %3265 = vmatprep.subr.mxu0 0.0
    %3266 = vmatpush1.msra.mxu0 %v1049
    %3267 = vmatprep.subr.mxu0 0.0
    %3268 = vmatpush1.msra.mxu0 %v1050
    %3269 = vmatprep.subr.mxu0 0.0
    %3270 = vmatpush1.msra.mxu0 %v1051
    %3271 = vmatprep.subr.mxu0 0.0
    %3272 = vmatpush1.msra.mxu0 %v1052
    %3273 = vmatprep.subr.mxu0 0.0
    %3274 = vmatpush1.msra.mxu0 %v1053
    %3275 = vmatprep.subr.mxu0 0.0
    %3276 = vmatpush1.msra.mxu0 %v1054
    %3277 = vmatprep.subr.mxu0 0.0
    %3278 = vmatpush1.msra.mxu0 %v1055
    %3279 = vmatprep.subr.mxu0 0.0
    %3280 = vmatpush1.msra.mxu0 0.0
    %3281 = vmatprep.subr.mxu0 0.0
    %3282 = vmatpush1.msra.mxu0 0.0
    %3283 = vmatprep.subr.mxu0 0.0
    %3284 = vmatpush1.msra.mxu0 0.0
    %3285 = vmatprep.subr.mxu0 0.0
    %3286 = vmatpush1.msra.mxu0 0.0
    %3287 = vmatprep.subr.mxu0 0.0
    %3288 = vmatpush1.msra.mxu0 0.0
    %3289 = vmatprep.subr.mxu0 0.0
    %3290 = vmatpush1.msra.mxu0 0.0
    %3291 = vmatprep.subr.mxu0 0.0
    %3292 = vmatpush1.msra.mxu0 0.0
    %3293 = vmatprep.subr.mxu0 0.0
    %3294 = vmatpush1.msra.mxu0 0.0
    %3295 = vmatprep.subr.mxu0 0.0
    %3296 = vmatpush1.msra.mxu0 0.0
    %3297 = vmatprep.subr.mxu0 0.0
    %3298 = vmatpush1.msra.mxu0 0.0
    %3299 = vmatprep.subr.mxu0 0.0
    %3300 = vmatpush1.msra.mxu0 0.0
    %3301 = vmatprep.subr.mxu0 0.0
    %3302 = vmatpush1.msra.mxu0 0.0
    %3303 = vmatprep.subr.mxu0 0.0
    %3304 = vmatpush1.msra.mxu0 0.0
    %3305 = vmatprep.subr.mxu0 0.0
    %3306 = vmatpush1.msra.mxu0 0.0
    %3307 = vmatprep.subr.mxu0 0.0
    %3308 = vmatpush1.msra.mxu0 0.0
    %3309 = vmatprep.subr.mxu0 0.0
    %3310 = vmatpush1.msra.mxu0 0.0
    %3311 = vmatprep.mubr.f32.mxu0 0.0
    %3312 = vmatmul.mubr.f32.gmra.mrb[0].mxu0 %v3246
    %v3313 = vpop.f32.mrb[0].mxu0
    %v3314 = vadd.f32 %v1061, %v3313
    %v3315 = vpop.f32.mrb[0].mxu0
    %3316 = vdwg.mxu0
    %v3317 = vmax.f32 %v3314, 0.0
    %s3318 = sld [smem:[#allocation4 + $0x4]]
    %v3319 = vstv %s3318
    %v3320 = vmul.f32 %v3317, %v3319
    %v3321 = vadd.f32 %v2775, %v3320
    %s3322 = smul.u32 5, 3
    %s3323 = smul.addr %s3322, 8
    %s3324 = scalar_lea.vmem [#allocation2], %s3323
    %v3325 = vld [vmem:[%s3324] sm:$0xff]
    %v3326 = vld [vmem:[%s3324 + $0x8] sm:$0xff]
    %v3327 = vld [vmem:[%s3324 + $0x10] sm:$0xff]
    %3328 = vmatprep.subr.mxu0 %v381
    %3329 = vmatpush1.msra.mxu0 %v380
    %3330 = vmatprep.subr.mxu0 %v384
    %3331 = vmatpush1.msra.mxu0 %v383
    %3332 = vmatprep.subr.mxu0 %v387
    %3333 = vmatpush1.msra.mxu0 %v386
    %3334 = vmatprep.subr.mxu0 %v390
    %3335 = vmatpush1.msra.mxu0 %v389
    %3336 = vmatprep.subr.mxu0 %v393
    %3337 = vmatpush1.msra.mxu0 %v392
    %3338 = vmatprep.subr.mxu0 %v396
    %3339 = vmatpush1.msra.mxu0 %v395
    %3340 = vmatprep.subr.mxu0 %v399
    %3341 = vmatpush1.msra.mxu0 %v398
    %3342 = vmatprep.subr.mxu0 %v402
    %3343 = vmatpush1.msra.mxu0 %v401
    %3344 = vmatprep.subr.mxu0 %v405
    %3345 = vmatpush1.msra.mxu0 %v404
    %3346 = vmatprep.subr.mxu0 %v408
    %3347 = vmatpush1.msra.mxu0 %v407
    %3348 = vmatprep.subr.mxu0 %v411
    %3349 = vmatpush1.msra.mxu0 %v410
    %3350 = vmatprep.subr.mxu0 %v414
    %3351 = vmatpush1.msra.mxu0 %v413
    %3352 = vmatprep.subr.mxu0 %v417
    %3353 = vmatpush1.msra.mxu0 %v416
    %3354 = vmatprep.subr.mxu0 %v420
    %3355 = vmatpush1.msra.mxu0 %v419
    %3356 = vmatprep.subr.mxu0 %v423
    %3357 = vmatpush1.msra.mxu0 %v422
    %3358 = vmatprep.subr.mxu0 %v426
    %3359 = vmatpush1.msra.mxu0 %v425
    %3360 = vmatprep.subr.mxu0 0.0
    %3361 = vmatpush1.msra.mxu0 0.0
    %3362 = vmatprep.subr.mxu0 0.0
    %3363 = vmatpush1.msra.mxu0 0.0
    %3364 = vmatprep.subr.mxu0 0.0
    %3365 = vmatpush1.msra.mxu0 0.0
    %3366 = vmatprep.subr.mxu0 0.0
    %3367 = vmatpush1.msra.mxu0 0.0
    %3368 = vmatprep.subr.mxu0 0.0
    %3369 = vmatpush1.msra.mxu0 0.0
    %3370 = vmatprep.subr.mxu0 0.0
    %3371 = vmatpush1.msra.mxu0 0.0
    %3372 = vmatprep.subr.mxu0 0.0
    %3373 = vmatpush1.msra.mxu0 0.0
    %3374 = vmatprep.subr.mxu0 0.0
    %3375 = vmatpush1.msra.mxu0 0.0
    %3376 = vmatprep.subr.mxu0 0.0
    %3377 = vmatpush1.msra.mxu0 0.0
    %3378 = vmatprep.subr.mxu0 0.0
    %3379 = vmatpush1.msra.mxu0 0.0
    %3380 = vmatprep.subr.mxu0 0.0
    %3381 = vmatpush1.msra.mxu0 0.0
    %3382 = vmatprep.subr.mxu0 0.0
    %3383 = vmatpush1.msra.mxu0 0.0
    %3384 = vmatprep.subr.mxu0 0.0
    %3385 = vmatpush1.msra.mxu0 0.0
    %3386 = vmatprep.subr.mxu0 0.0
    %3387 = vmatpush1.msra.mxu0 0.0
    %3388 = vmatprep.subr.mxu0 0.0
    %3389 = vmatpush1.msra.mxu0 0.0
    %3390 = vmatprep.subr.mxu0 0.0
    %3391 = vmatpush1.msra.mxu0 0.0
    %3392 = vmatprep.mubr.f32.mxu0 0.0
    %3393 = vmatmul.mubr.f32.gmra.mrb[0].mxu0 %v2943
    %v3394 = vpop.f32.mrb[0].mxu0
    %v3395 = vadd.f32 %v433, %v3394
    %v3396 = vpop.f32.mrb[0].mxu0
    %v3397 = vadd.f32 %v437, %v3396
    %3398 = vdwg.mxu0
    %3399 = vmatprep.subr.mxu0 0.0
    %3400 = vmatpush1.msra.mxu0 %v382
    %3401 = vmatprep.subr.mxu0 0.0
    %3402 = vmatpush1.msra.mxu0 %v385
    %3403 = vmatprep.subr.mxu0 0.0
    %3404 = vmatpush1.msra.mxu0 %v388
    %3405 = vmatprep.subr.mxu0 0.0
    %3406 = vmatpush1.msra.mxu0 %v391
    %3407 = vmatprep.subr.mxu0 0.0
    %3408 = vmatpush1.msra.mxu0 %v394
    %3409 = vmatprep.subr.mxu0 0.0
    %3410 = vmatpush1.msra.mxu0 %v397
    %3411 = vmatprep.subr.mxu0 0.0
    %3412 = vmatpush1.msra.mxu0 %v400
    %3413 = vmatprep.subr.mxu0 0.0
    %3414 = vmatpush1.msra.mxu0 %v403
    %3415 = vmatprep.subr.mxu0 0.0
    %3416 = vmatpush1.msra.mxu0 %v406
    %3417 = vmatprep.subr.mxu0 0.0
    %3418 = vmatpush1.msra.mxu0 %v409
    %3419 = vmatprep.subr.mxu0 0.0
    %3420 = vmatpush1.msra.mxu0 %v412
    %3421 = vmatprep.subr.mxu0 0.0
    %3422 = vmatpush1.msra.mxu0 %v415
    %3423 = vmatprep.subr.mxu0 0.0
    %3424 = vmatpush1.msra.mxu0 %v418
    %3425 = vmatprep.subr.mxu0 0.0
    %3426 = vmatpush1.msra.mxu0 %v421
    %3427 = vmatprep.subr.mxu0 0.0
    %3428 = vmatpush1.msra.mxu0 %v424
    %3429 = vmatprep.subr.mxu0 0.0
    %3430 = vmatpush1.msra.mxu0 %v427
    %3431 = vmatprep.subr.mxu0 0.0
    %3432 = vmatpush1.msra.mxu0 0.0
    %3433 = vmatprep.subr.mxu0 0.0
    %3434 = vmatpush1.msra.mxu0 0.0
    %3435 = vmatprep.subr.mxu0 0.0
    %3436 = vmatpush1.msra.mxu0 0.0
    %3437 = vmatprep.subr.mxu0 0.0
    %3438 = vmatpush1.msra.mxu0 0.0
    %3439 = vmatprep.subr.mxu0 0.0
    %3440 = vmatpush1.msra.mxu0 0.0
    %3441 = vmatprep.subr.mxu0 0.0
    %3442 = vmatpush1.msra.mxu0 0.0
    %3443 = vmatprep.subr.mxu0 0.0
    %3444 = vmatpush1.msra.mxu0 0.0
    %3445 = vmatprep.subr.mxu0 0.0
    %3446 = vmatpush1.msra.mxu0 0.0
    %3447 = vmatprep.subr.mxu0 0.0
    %3448 = vmatpush1.msra.mxu0 0.0
    %3449 = vmatprep.subr.mxu0 0.0
    %3450 = vmatpush1.msra.mxu0 0.0
    %3451 = vmatprep.subr.mxu0 0.0
    %3452 = vmatpush1.msra.mxu0 0.0
    %3453 = vmatprep.subr.mxu0 0.0
    %3454 = vmatpush1.msra.mxu0 0.0
    %3455 = vmatprep.subr.mxu0 0.0
    %3456 = vmatpush1.msra.mxu0 0.0
    %3457 = vmatprep.subr.mxu0 0.0
    %3458 = vmatpush1.msra.mxu0 0.0
    %3459 = vmatprep.subr.mxu0 0.0
    %3460 = vmatpush1.msra.mxu0 0.0
    %3461 = vmatprep.subr.mxu0 0.0
    %3462 = vmatpush1.msra.mxu0 0.0
    %3463 = vmatprep.mubr.f32.mxu0 0.0
    %3464 = vmatmul.mubr.f32.gmra.mrb[0].mxu0 %v2943
    %v3465 = vpop.f32.mrb[0].mxu0
    %v3466 = vadd.f32 %v441, %v3465
    %v3467 = vpop.f32.mrb[0].mxu0
    %3468 = vdwg.mxu0
    %v3469 = vadd.f32 %v3325, %v3395
    %v3470 = vadd.f32 %v3326, %v3397
    %v3471 = vxor.u32 %v3469, 2147483648
    %v3472 = vxor.u32 %v3470, 2147483648
    %v3473 = vmul.f32 %v3471, 1.442695
    %v3474 = vpow.pop %v3473
    %v3475 = vmul.f32 %v3472, 1.442695
    %v3476 = vpow.pop %v3475
    %v3477 = vadd.f32 %v3474, 1.0
    %v3478 = vadd.f32 %v3476, 1.0
    %v3479 = vrcp.pop %v3477
    %v3480 = vmul.f32 1.0, %v3479
    %v3481 = vrcp.pop %v3478
    %v3482 = vmul.f32 1.0, %v3481
    %v3483 = vmul.f32 %v3480, %v3466
    %v3484 = vadd.f32 %v3327, %v3483
    %v3485 = vtanh.pop %v3484
    %v3486 = vsub.f32 1.0, %v3482
    %v3487 = vmul.f32 %v3486, %v3485
    %v3488 = vmul.f32 %v3482, %v2943
    %v3489 = vadd.f32 %v3487, %v3488
    %3490 = vmatprep.subr.mxu0 %v608
    %3491 = vmatpush1.msra.mxu0 %v607
    %3492 = vmatprep.subr.mxu0 %v611
    %3493 = vmatpush1.msra.mxu0 %v610
    %3494 = vmatprep.subr.mxu0 %v614
    %3495 = vmatpush1.msra.mxu0 %v613
    %3496 = vmatprep.subr.mxu0 %v617
    %3497 = vmatpush1.msra.mxu0 %v616
    %3498 = vmatprep.subr.mxu0 %v620
    %3499 = vmatpush1.msra.mxu0 %v619
    %3500 = vmatprep.subr.mxu0 %v623
    %3501 = vmatpush1.msra.mxu0 %v622
    %3502 = vmatprep.subr.mxu0 %v626
    %3503 = vmatpush1.msra.mxu0 %v625
    %3504 = vmatprep.subr.mxu0 %v629
    %3505 = vmatpush1.msra.mxu0 %v628
    %3506 = vmatprep.subr.mxu0 %v632
    %3507 = vmatpush1.msra.mxu0 %v631
    %3508 = vmatprep.subr.mxu0 %v635
    %3509 = vmatpush1.msra.mxu0 %v634
    %3510 = vmatprep.subr.mxu0 %v638
    %3511 = vmatpush1.msra.mxu0 %v637
    %3512 = vmatprep.subr.mxu0 %v641
    %3513 = vmatpush1.msra.mxu0 %v640
    %3514 = vmatprep.subr.mxu0 %v644
    %3515 = vmatpush1.msra.mxu0 %v643
    %3516 = vmatprep.subr.mxu0 %v647
    %3517 = vmatpush1.msra.mxu0 %v646
    %3518 = vmatprep.subr.mxu0 %v650
    %3519 = vmatpush1.msra.mxu0 %v649
    %3520 = vmatprep.subr.mxu0 %v653
    %3521 = vmatpush1.msra.mxu0 %v652
    %3522 = vmatprep.subr.mxu0 0.0
    %3523 = vmatpush1.msra.mxu0 0.0
    %3524 = vmatprep.subr.mxu0 0.0
    %3525 = vmatpush1.msra.mxu0 0.0
    %3526 = vmatprep.subr.mxu0 0.0
    %3527 = vmatpush1.msra.mxu0 0.0
    %3528 = vmatprep.subr.mxu0 0.0
    %3529 = vmatpush1.msra.mxu0 0.0
    %3530 = vmatprep.subr.mxu0 0.0
    %3531 = vmatpush1.msra.mxu0 0.0
    %3532 = vmatprep.subr.mxu0 0.0
    %3533 = vmatpush1.msra.mxu0 0.0
    %3534 = vmatprep.subr.mxu0 0.0
    %3535 = vmatpush1.msra.mxu0 0.0
    %3536 = vmatprep.subr.mxu0 0.0
    %3537 = vmatpush1.msra.mxu0 0.0
    %3538 = vmatprep.subr.mxu0 0.0
    %3539 = vmatpush1.msra.mxu0 0.0
    %3540 = vmatprep.subr.mxu0 0.0
    %3541 = vmatpush1.msra.mxu0 0.0
    %3542 = vmatprep.subr.mxu0 0.0
    %3543 = vmatpush1.msra.mxu0 0.0
    %3544 = vmatprep.subr.mxu0 0.0
    %3545 = vmatpush1.msra.mxu0 0.0
    %3546 = vmatprep.subr.mxu0 0.0
    %3547 = vmatpush1.msra.mxu0 0.0
    %3548 = vmatprep.subr.mxu0 0.0
    %3549 = vmatpush1.msra.mxu0 0.0
    %3550 = vmatprep.subr.mxu0 0.0
    %3551 = vmatpush1.msra.mxu0 0.0
    %3552 = vmatprep.subr.mxu0 0.0
    %3553 = vmatpush1.msra.mxu0 0.0
    %3554 = vmatprep.mubr.f32.mxu0 0.0
    %3555 = vmatmul.mubr.f32.gmra.mrb[0].mxu0 %v3489
    %v3556 = vpop.f32.mrb[0].mxu0
    %v3557 = vadd.f32 %v660, %v3556
    %v3558 = vpop.f32.mrb[0].mxu0
    %v3559 = vadd.f32 %v664, %v3558
    %3560 = vdwg.mxu0
    %3561 = vmatprep.subr.mxu0 0.0
    %3562 = vmatpush1.msra.mxu0 %v609
    %3563 = vmatprep.subr.mxu0 0.0
    %3564 = vmatpush1.msra.mxu0 %v612
    %3565 = vmatprep.subr.mxu0 0.0
    %3566 = vmatpush1.msra.mxu0 %v615
    %3567 = vmatprep.subr.mxu0 0.0
    %3568 = vmatpush1.msra.mxu0 %v618
    %3569 = vmatprep.subr.mxu0 0.0
    %3570 = vmatpush1.msra.mxu0 %v621
    %3571 = vmatprep.subr.mxu0 0.0
    %3572 = vmatpush1.msra.mxu0 %v624
    %3573 = vmatprep.subr.mxu0 0.0
    %3574 = vmatpush1.msra.mxu0 %v627
    %3575 = vmatprep.subr.mxu0 0.0
    %3576 = vmatpush1.msra.mxu0 %v630
    %3577 = vmatprep.subr.mxu0 0.0
    %3578 = vmatpush1.msra.mxu0 %v633
    %3579 = vmatprep.subr.mxu0 0.0
    %3580 = vmatpush1.msra.mxu0 %v636
    %3581 = vmatprep.subr.mxu0 0.0
    %3582 = vmatpush1.msra.mxu0 %v639
    %3583 = vmatprep.subr.mxu0 0.0
    %3584 = vmatpush1.msra.mxu0 %v642
    %3585 = vmatprep.subr.mxu0 0.0
    %3586 = vmatpush1.msra.mxu0 %v645
    %3587 = vmatprep.subr.mxu0 0.0
    %3588 = vmatpush1.msra.mxu0 %v648
    %3589 = vmatprep.subr.mxu0 0.0
    %3590 = vmatpush1.msra.mxu0 %v651
    %3591 = vmatprep.subr.mxu0 0.0
    %3592 = vmatpush1.msra.mxu0 %v654
    %3593 = vmatprep.subr.mxu0 0.0
    %3594 = vmatpush1.msra.mxu0 0.0
    %3595 = vmatprep.subr.mxu0 0.0
    %3596 = vmatpush1.msra.mxu0 0.0
    %3597 = vmatprep.subr.mxu0 0.0
    %3598 = vmatpush1.msra.mxu0 0.0
    %3599 = vmatprep.subr.mxu0 0.0
    %3600 = vmatpush1.msra.mxu0 0.0
    %3601 = vmatprep.subr.mxu0 0.0
    %3602 = vmatpush1.msra.mxu0 0.0
    %3603 = vmatprep.subr.mxu0 0.0
    %3604 = vmatpush1.msra.mxu0 0.0
    %3605 = vmatprep.subr.mxu0 0.0
    %3606 = vmatpush1.msra.mxu0 0.0
    %3607 = vmatprep.subr.mxu0 0.0
    %3608 = vmatpush1.msra.mxu0 0.0
    %3609 = vmatprep.subr.mxu0 0.0
    %3610 = vmatpush1.msra.mxu0 0.0
    %3611 = vmatprep.subr.mxu0 0.0
    %3612 = vmatpush1.msra.mxu0 0.0
    %3613 = vmatprep.subr.mxu0 0.0
    %3614 = vmatpush1.msra.mxu0 0.0
    %3615 = vmatprep.subr.mxu0 0.0
    %3616 = vmatpush1.msra.mxu0 0.0
    %3617 = vmatprep.subr.mxu0 0.0
    %3618 = vmatpush1.msra.mxu0 0.0
    %3619 = vmatprep.subr.mxu0 0.0
    %3620 = vmatpush1.msra.mxu0 0.0
    %3621 = vmatprep.subr.mxu0 0.0
    %3622 = vmatpush1.msra.mxu0 0.0
    %3623 = vmatprep.subr.mxu0 0.0
    %3624 = vmatpush1.msra.mxu0 0.0
    %3625 = vmatprep.mubr.f32.mxu0 0.0
    %3626 = vmatmul.mubr.f32.gmra.mrb[0].mxu0 %v3489
    %v3627 = vpop.f32.mrb[0].mxu0
    %v3628 = vadd.f32 %v668, %v3627
    %v3629 = vpop.f32.mrb[0].mxu0
    %3630 = vdwg.mxu0
    %3631 = vmatprep.subr.mxu0 %v814
    %3632 = vmatpush1.msra.mxu0 %v813
    %3633 = vmatprep.subr.mxu0 %v817
    %3634 = vmatpush1.msra.mxu0 %v816
    %3635 = vmatprep.subr.mxu0 %v820
    %3636 = vmatpush1.msra.mxu0 %v819
    %3637 = vmatprep.subr.mxu0 %v823
    %3638 = vmatpush1.msra.mxu0 %v822
    %3639 = vmatprep.subr.mxu0 %v826
    %3640 = vmatpush1.msra.mxu0 %v825
    %3641 = vmatprep.subr.mxu0 %v829
    %3642 = vmatpush1.msra.mxu0 %v828
    %3643 = vmatprep.subr.mxu0 %v832
    %3644 = vmatpush1.msra.mxu0 %v831
    %3645 = vmatprep.subr.mxu0 %v835
    %3646 = vmatpush1.msra.mxu0 %v834
    %3647 = vmatprep.subr.mxu0 %v838
    %3648 = vmatpush1.msra.mxu0 %v837
    %3649 = vmatprep.subr.mxu0 %v841
    %3650 = vmatpush1.msra.mxu0 %v840
    %3651 = vmatprep.subr.mxu0 %v844
    %3652 = vmatpush1.msra.mxu0 %v843
    %3653 = vmatprep.subr.mxu0 %v847
    %3654 = vmatpush1.msra.mxu0 %v846
    %3655 = vmatprep.subr.mxu0 %v850
    %3656 = vmatpush1.msra.mxu0 %v849
    %3657 = vmatprep.subr.mxu0 %v853
    %3658 = vmatpush1.msra.mxu0 %v852
    %3659 = vmatprep.subr.mxu0 %v856
    %3660 = vmatpush1.msra.mxu0 %v855
    %3661 = vmatprep.subr.mxu0 %v859
    %3662 = vmatpush1.msra.mxu0 %v858
    %3663 = vmatprep.subr.mxu0 0.0
    %3664 = vmatpush1.msra.mxu0 0.0
    %3665 = vmatprep.subr.mxu0 0.0
    %3666 = vmatpush1.msra.mxu0 0.0
    %3667 = vmatprep.subr.mxu0 0.0
    %3668 = vmatpush1.msra.mxu0 0.0
    %3669 = vmatprep.subr.mxu0 0.0
    %3670 = vmatpush1.msra.mxu0 0.0
    %3671 = vmatprep.subr.mxu0 0.0
    %3672 = vmatpush1.msra.mxu0 0.0
    %3673 = vmatprep.subr.mxu0 0.0
    %3674 = vmatpush1.msra.mxu0 0.0
    %3675 = vmatprep.subr.mxu0 0.0
    %3676 = vmatpush1.msra.mxu0 0.0
    %3677 = vmatprep.subr.mxu0 0.0
    %3678 = vmatpush1.msra.mxu0 0.0
    %3679 = vmatprep.subr.mxu0 0.0
    %3680 = vmatpush1.msra.mxu0 0.0
    %3681 = vmatprep.subr.mxu0 0.0
    %3682 = vmatpush1.msra.mxu0 0.0
    %3683 = vmatprep.subr.mxu0 0.0
    %3684 = vmatpush1.msra.mxu0 0.0
    %3685 = vmatprep.subr.mxu0 0.0
    %3686 = vmatpush1.msra.mxu0 0.0
    %3687 = vmatprep.subr.mxu0 0.0
    %3688 = vmatpush1.msra.mxu0 0.0
    %3689 = vmatprep.subr.mxu0 0.0
    %3690 = vmatpush1.msra.mxu0 0.0
    %3691 = vmatprep.subr.mxu0 0.0
    %3692 = vmatpush1.msra.mxu0 0.0
    %3693 = vmatprep.subr.mxu0 0.0
    %3694 = vmatpush1.msra.mxu0 0.0
    %3695 = vmatprep.mubr.f32.mxu0 0.0
    %3696 = vmatmul.mubr.f32.gmra.mrb[0].mxu0 %v3246
    %v3697 = vpop.f32.mrb[0].mxu0
    %v3698 = vadd.f32 %v866, %v3697
    %v3699 = vpop.f32.mrb[0].mxu0
    %v3700 = vadd.f32 %v870, %v3699
    %3701 = vdwg.mxu0
    %3702 = vmatprep.subr.mxu0 0.0
    %3703 = vmatpush1.msra.mxu0 %v815
    %3704 = vmatprep.subr.mxu0 0.0
    %3705 = vmatpush1.msra.mxu0 %v818
    %3706 = vmatprep.subr.mxu0 0.0
    %3707 = vmatpush1.msra.mxu0 %v821
    %3708 = vmatprep.subr.mxu0 0.0
    %3709 = vmatpush1.msra.mxu0 %v824
    %3710 = vmatprep.subr.mxu0 0.0
    %3711 = vmatpush1.msra.mxu0 %v827
    %3712 = vmatprep.subr.mxu0 0.0
    %3713 = vmatpush1.msra.mxu0 %v830
    %3714 = vmatprep.subr.mxu0 0.0
    %3715 = vmatpush1.msra.mxu0 %v833
    %3716 = vmatprep.subr.mxu0 0.0
    %3717 = vmatpush1.msra.mxu0 %v836
    %3718 = vmatprep.subr.mxu0 0.0
    %3719 = vmatpush1.msra.mxu0 %v839
    %3720 = vmatprep.subr.mxu0 0.0
    %3721 = vmatpush1.msra.mxu0 %v842
    %3722 = vmatprep.subr.mxu0 0.0
    %3723 = vmatpush1.msra.mxu0 %v845
    %3724 = vmatprep.subr.mxu0 0.0
    %3725 = vmatpush1.msra.mxu0 %v848
    %3726 = vmatprep.subr.mxu0 0.0
    %3727 = vmatpush1.msra.mxu0 %v851
    %3728 = vmatprep.subr.mxu0 0.0
    %3729 = vmatpush1.msra.mxu0 %v854
    %3730 = vmatprep.subr.mxu0 0.0
    %3731 = vmatpush1.msra.mxu0 %v857
    %3732 = vmatprep.subr.mxu0 0.0
    %3733 = vmatpush1.msra.mxu0 %v860
    %3734 = vmatprep.subr.mxu0 0.0
    %3735 = vmatpush1.msra.mxu0 0.0
    %3736 = vmatprep.subr.mxu0 0.0
    %3737 = vmatpush1.msra.mxu0 0.0
    %3738 = vmatprep.subr.mxu0 0.0
    %3739 = vmatpush1.msra.mxu0 0.0
    %3740 = vmatprep.subr.mxu0 0.0
    %3741 = vmatpush1.msra.mxu0 0.0
    %3742 = vmatprep.subr.mxu0 0.0
    %3743 = vmatpush1.msra.mxu0 0.0
    %3744 = vmatprep.subr.mxu0 0.0
    %3745 = vmatpush1.msra.mxu0 0.0
    %3746 = vmatprep.subr.mxu0 0.0
    %3747 = vmatpush1.msra.mxu0 0.0
    %3748 = vmatprep.subr.mxu0 0.0
    %3749 = vmatpush1.msra.mxu0 0.0
    %3750 = vmatprep.subr.mxu0 0.0
    %3751 = vmatpush1.msra.mxu0 0.0
    %3752 = vmatprep.subr.mxu0 0.0
    %3753 = vmatpush1.msra.mxu0 0.0
    %3754 = vmatprep.subr.mxu0 0.0
    %3755 = vmatpush1.msra.mxu0 0.0
    %3756 = vmatprep.subr.mxu0 0.0
    %3757 = vmatpush1.msra.mxu0 0.0
    %3758 = vmatprep.subr.mxu0 0.0
    %3759 = vmatpush1.msra.mxu0 0.0
    %3760 = vmatprep.subr.mxu0 0.0
    %3761 = vmatpush1.msra.mxu0 0.0
    %3762 = vmatprep.subr.mxu0 0.0
    %3763 = vmatpush1.msra.mxu0 0.0
    %3764 = vmatprep.subr.mxu0 0.0
    %3765 = vmatpush1.msra.mxu0 0.0
    %3766 = vmatprep.mubr.f32.mxu0 0.0
    %3767 = vmatmul.mubr.f32.gmra.mrb[0].mxu0 %v3246
    %v3768 = vpop.f32.mrb[0].mxu0
    %v3769 = vadd.f32 %v874, %v3768
    %v3770 = vpop.f32.mrb[0].mxu0
    %3771 = vdwg.mxu0
    %v3772 = vadd.f32 %v3557, %v3698
    %v3773 = vadd.f32 %v3559, %v3700
    %v3774 = vxor.u32 %v3772, 2147483648
    %v3775 = vxor.u32 %v3773, 2147483648
    %v3776 = vmul.f32 %v3774, 1.442695
    %v3777 = vpow.pop %v3776
    %v3778 = vmul.f32 %v3775, 1.442695
    %v3779 = vpow.pop %v3778
    %v3780 = vadd.f32 %v3777, 1.0
    %v3781 = vadd.f32 %v3779, 1.0
    %v3782 = vrcp.pop %v3780
    %v3783 = vmul.f32 1.0, %v3782
    %v3784 = vrcp.pop %v3781
    %v3785 = vmul.f32 1.0, %v3784
    %v3786 = vmul.f32 %v3783, %v3769
    %v3787 = vadd.f32 %v3628, %v3786
    %v3788 = vtanh.pop %v3787
    %v3789 = vsub.f32 1.0, %v3785
    %v3790 = vmul.f32 %v3789, %v3788
    %v3791 = vmul.f32 %v3785, %v3246
    %v3792 = vadd.f32 %v3790, %v3791
    %3793 = vmatprep.subr.mxu0 0.0
    %3794 = vmatpush1.msra.mxu0 %v1040
    %3795 = vmatprep.subr.mxu0 0.0
    %3796 = vmatpush1.msra.mxu0 %v1041
    %3797 = vmatprep.subr.mxu0 0.0
    %3798 = vmatpush1.msra.mxu0 %v1042
    %3799 = vmatprep.subr.mxu0 0.0
    %3800 = vmatpush1.msra.mxu0 %v1043
    %3801 = vmatprep.subr.mxu0 0.0
    %3802 = vmatpush1.msra.mxu0 %v1044
    %3803 = vmatprep.subr.mxu0 0.0
    %3804 = vmatpush1.msra.mxu0 %v1045
    %3805 = vmatprep.subr.mxu0 0.0
    %3806 = vmatpush1.msra.mxu0 %v1046
    %3807 = vmatprep.subr.mxu0 0.0
    %3808 = vmatpush1.msra.mxu0 %v1047
    %3809 = vmatprep.subr.mxu0 0.0
    %3810 = vmatpush1.msra.mxu0 %v1048
    %3811 = vmatprep.subr.mxu0 0.0
    %3812 = vmatpush1.msra.mxu0 %v1049
    %3813 = vmatprep.subr.mxu0 0.0
    %3814 = vmatpush1.msra.mxu0 %v1050
    %3815 = vmatprep.subr.mxu0 0.0
    %3816 = vmatpush1.msra.mxu0 %v1051
    %3817 = vmatprep.subr.mxu0 0.0
    %3818 = vmatpush1.msra.mxu0 %v1052
    %3819 = vmatprep.subr.mxu0 0.0
    %3820 = vmatpush1.msra.mxu0 %v1053
    %3821 = vmatprep.subr.mxu0 0.0
    %3822 = vmatpush1.msra.mxu0 %v1054
    %3823 = vmatprep.subr.mxu0 0.0
    %3824 = vmatpush1.msra.mxu0 %v1055
    %3825 = vmatprep.subr.mxu0 0.0
    %3826 = vmatpush1.msra.mxu0 0.0
    %3827 = vmatprep.subr.mxu0 0.0
    %3828 = vmatpush1.msra.mxu0 0.0
    %3829 = vmatprep.subr.mxu0 0.0
    %3830 = vmatpush1.msra.mxu0 0.0
    %3831 = vmatprep.subr.mxu0 0.0
    %3832 = vmatpush1.msra.mxu0 0.0
    %3833 = vmatprep.subr.mxu0 0.0
    %3834 = vmatpush1.msra.mxu0 0.0
    %3835 = vmatprep.subr.mxu0 0.0
    %3836 = vmatpush1.msra.mxu0 0.0
    %3837 = vmatprep.subr.mxu0 0.0
    %3838 = vmatpush1.msra.mxu0 0.0
    %3839 = vmatprep.subr.mxu0 0.0
    %3840 = vmatpush1.msra.mxu0 0.0
    %3841 = vmatprep.subr.mxu0 0.0
    %3842 = vmatpush1.msra.mxu0 0.0
    %3843 = vmatprep.subr.mxu0 0.0
    %3844 = vmatpush1.msra.mxu0 0.0
    %3845 = vmatprep.subr.mxu0 0.0
    %3846 = vmatpush1.msra.mxu0 0.0
    %3847 = vmatprep.subr.mxu0 0.0
    %3848 = vmatpush1.msra.mxu0 0.0
    %3849 = vmatprep.subr.mxu0 0.0
    %3850 = vmatpush1.msra.mxu0 0.0
    %3851 = vmatprep.subr.mxu0 0.0
    %3852 = vmatpush1.msra.mxu0 0.0
    %3853 = vmatprep.subr.mxu0 0.0
    %3854 = vmatpush1.msra.mxu0 0.0
    %3855 = vmatprep.subr.mxu0 0.0
    %3856 = vmatpush1.msra.mxu0 0.0
    %3857 = vmatprep.mubr.f32.mxu0 0.0
    %3858 = vmatmul.mubr.f32.gmra.mrb[0].mxu0 %v3792
    %v3859 = vpop.f32.mrb[0].mxu0
    %v3860 = vadd.f32 %v1061, %v3859
    %v3861 = vpop.f32.mrb[0].mxu0
    %3862 = vdwg.mxu0
    %v3863 = vmax.f32 %v3860, 0.0
    %s3864 = sld [smem:[#allocation4 + $0x5]]
    %v3865 = vstv %s3864
    %v3866 = vmul.f32 %v3863, %v3865
    %v3867 = vadd.f32 %v3321, %v3866
    %s3868 = smul.u32 6, 3
    %s3869 = smul.addr %s3868, 8
    %s3870 = scalar_lea.vmem [#allocation2], %s3869
    %v3871 = vld [vmem:[%s3870] sm:$0xff]
    %v3872 = vld [vmem:[%s3870 + $0x8] sm:$0xff]
    %v3873 = vld [vmem:[%s3870 + $0x10] sm:$0xff]
    %3874 = vmatprep.subr.mxu0 %v381
    %3875 = vmatpush1.msra.mxu0 %v380
    %3876 = vmatprep.subr.mxu0 %v384
    %3877 = vmatpush1.msra.mxu0 %v383
    %3878 = vmatprep.subr.mxu0 %v387
    %3879 = vmatpush1.msra.mxu0 %v386
    %3880 = vmatprep.subr.mxu0 %v390
    %3881 = vmatpush1.msra.mxu0 %v389
    %3882 = vmatprep.subr.mxu0 %v393
    %3883 = vmatpush1.msra.mxu0 %v392
    %3884 = vmatprep.subr.mxu0 %v396
    %3885 = vmatpush1.msra.mxu0 %v395
    %3886 = vmatprep.subr.mxu0 %v399
    %3887 = vmatpush1.msra.mxu0 %v398
    %3888 = vmatprep.subr.mxu0 %v402
    %3889 = vmatpush1.msra.mxu0 %v401
    %3890 = vmatprep.subr.mxu0 %v405
    %3891 = vmatpush1.msra.mxu0 %v404
    %3892 = vmatprep.subr.mxu0 %v408
    %3893 = vmatpush1.msra.mxu0 %v407
    %3894 = vmatprep.subr.mxu0 %v411
    %3895 = vmatpush1.msra.mxu0 %v410
    %3896 = vmatprep.subr.mxu0 %v414
    %3897 = vmatpush1.msra.mxu0 %v413
    %3898 = vmatprep.subr.mxu0 %v417
    %3899 = vmatpush1.msra.mxu0 %v416
    %3900 = vmatprep.subr.mxu0 %v420
    %3901 = vmatpush1.msra.mxu0 %v419
    %3902 = vmatprep.subr.mxu0 %v423
    %3903 = vmatpush1.msra.mxu0 %v422
    %3904 = vmatprep.subr.mxu0 %v426
    %3905 = vmatpush1.msra.mxu0 %v425
    %3906 = vmatprep.subr.mxu0 0.0
    %3907 = vmatpush1.msra.mxu0 0.0
    %3908 = vmatprep.subr.mxu0 0.0
    %3909 = vmatpush1.msra.mxu0 0.0
    %3910 = vmatprep.subr.mxu0 0.0
    %3911 = vmatpush1.msra.mxu0 0.0
    %3912 = vmatprep.subr.mxu0 0.0
    %3913 = vmatpush1.msra.mxu0 0.0
    %3914 = vmatprep.subr.mxu0 0.0
    %3915 = vmatpush1.msra.mxu0 0.0
    %3916 = vmatprep.subr.mxu0 0.0
    %3917 = vmatpush1.msra.mxu0 0.0
    %3918 = vmatprep.subr.mxu0 0.0
    %3919 = vmatpush1.msra.mxu0 0.0
    %3920 = vmatprep.subr.mxu0 0.0
    %3921 = vmatpush1.msra.mxu0 0.0
    %3922 = vmatprep.subr.mxu0 0.0
    %3923 = vmatpush1.msra.mxu0 0.0
    %3924 = vmatprep.subr.mxu0 0.0
    %3925 = vmatpush1.msra.mxu0 0.0
    %3926 = vmatprep.subr.mxu0 0.0
    %3927 = vmatpush1.msra.mxu0 0.0
    %3928 = vmatprep.subr.mxu0 0.0
    %3929 = vmatpush1.msra.mxu0 0.0
    %3930 = vmatprep.subr.mxu0 0.0
    %3931 = vmatpush1.msra.mxu0 0.0
    %3932 = vmatprep.subr.mxu0 0.0
    %3933 = vmatpush1.msra.mxu0 0.0
    %3934 = vmatprep.subr.mxu0 0.0
    %3935 = vmatpush1.msra.mxu0 0.0
    %3936 = vmatprep.subr.mxu0 0.0
    %3937 = vmatpush1.msra.mxu0 0.0
    %3938 = vmatprep.mubr.f32.mxu0 0.0
    %3939 = vmatmul.mubr.f32.gmra.mrb[0].mxu0 %v3489
    %v3940 = vpop.f32.mrb[0].mxu0
    %v3941 = vadd.f32 %v433, %v3940
    %v3942 = vpop.f32.mrb[0].mxu0
    %v3943 = vadd.f32 %v437, %v3942
    %3944 = vdwg.mxu0
    %3945 = vmatprep.subr.mxu0 0.0
    %3946 = vmatpush1.msra.mxu0 %v382
    %3947 = vmatprep.subr.mxu0 0.0
    %3948 = vmatpush1.msra.mxu0 %v385
    %3949 = vmatprep.subr.mxu0 0.0
    %3950 = vmatpush1.msra.mxu0 %v388
    %3951 = vmatprep.subr.mxu0 0.0
    %3952 = vmatpush1.msra.mxu0 %v391
    %3953 = vmatprep.subr.mxu0 0.0
    %3954 = vmatpush1.msra.mxu0 %v394
    %3955 = vmatprep.subr.mxu0 0.0
    %3956 = vmatpush1.msra.mxu0 %v397
    %3957 = vmatprep.subr.mxu0 0.0
    %3958 = vmatpush1.msra.mxu0 %v400
    %3959 = vmatprep.subr.mxu0 0.0
    %3960 = vmatpush1.msra.mxu0 %v403
    %3961 = vmatprep.subr.mxu0 0.0
    %3962 = vmatpush1.msra.mxu0 %v406
    %3963 = vmatprep.subr.mxu0 0.0
    %3964 = vmatpush1.msra.mxu0 %v409
    %3965 = vmatprep.subr.mxu0 0.0
    %3966 = vmatpush1.msra.mxu0 %v412
    %3967 = vmatprep.subr.mxu0 0.0
    %3968 = vmatpush1.msra.mxu0 %v415
    %3969 = vmatprep.subr.mxu0 0.0
    %3970 = vmatpush1.msra.mxu0 %v418
    %3971 = vmatprep.subr.mxu0 0.0
    %3972 = vmatpush1.msra.mxu0 %v421
    %3973 = vmatprep.subr.mxu0 0.0
    %3974 = vmatpush1.msra.mxu0 %v424
    %3975 = vmatprep.subr.mxu0 0.0
    %3976 = vmatpush1.msra.mxu0 %v427
    %3977 = vmatprep.subr.mxu0 0.0
    %3978 = vmatpush1.msra.mxu0 0.0
    %3979 = vmatprep.subr.mxu0 0.0
    %3980 = vmatpush1.msra.mxu0 0.0
    %3981 = vmatprep.subr.mxu0 0.0
    %3982 = vmatpush1.msra.mxu0 0.0
    %3983 = vmatprep.subr.mxu0 0.0
    %3984 = vmatpush1.msra.mxu0 0.0
    %3985 = vmatprep.subr.mxu0 0.0
    %3986 = vmatpush1.msra.mxu0 0.0
    %3987 = vmatprep.subr.mxu0 0.0
    %3988 = vmatpush1.msra.mxu0 0.0
    %3989 = vmatprep.subr.mxu0 0.0
    %3990 = vmatpush1.msra.mxu0 0.0
    %3991 = vmatprep.subr.mxu0 0.0
    %3992 = vmatpush1.msra.mxu0 0.0
    %3993 = vmatprep.subr.mxu0 0.0
    %3994 = vmatpush1.msra.mxu0 0.0
    %3995 = vmatprep.subr.mxu0 0.0
    %3996 = vmatpush1.msra.mxu0 0.0
    %3997 = vmatprep.subr.mxu0 0.0
    %3998 = vmatpush1.msra.mxu0 0.0
    %3999 = vmatprep.subr.mxu0 0.0
    %4000 = vmatpush1.msra.mxu0 0.0
    %4001 = vmatprep.subr.mxu0 0.0
    %4002 = vmatpush1.msra.mxu0 0.0
    %4003 = vmatprep.subr.mxu0 0.0
    %4004 = vmatpush1.msra.mxu0 0.0
    %4005 = vmatprep.subr.mxu0 0.0
    %4006 = vmatpush1.msra.mxu0 0.0
    %4007 = vmatprep.subr.mxu0 0.0
    %4008 = vmatpush1.msra.mxu0 0.0
    %4009 = vmatprep.mubr.f32.mxu0 0.0
    %4010 = vmatmul.mubr.f32.gmra.mrb[0].mxu0 %v3489
    %v4011 = vpop.f32.mrb[0].mxu0
    %v4012 = vadd.f32 %v441, %v4011
    %v4013 = vpop.f32.mrb[0].mxu0
    %4014 = vdwg.mxu0
    %v4015 = vadd.f32 %v3871, %v3941
    %v4016 = vadd.f32 %v3872, %v3943
    %v4017 = vxor.u32 %v4015, 2147483648
    %v4018 = vxor.u32 %v4016, 2147483648
    %v4019 = vmul.f32 %v4017, 1.442695
    %v4020 = vpow.pop %v4019
    %v4021 = vmul.f32 %v4018, 1.442695
    %v4022 = vpow.pop %v4021
    %v4023 = vadd.f32 %v4020, 1.0
    %v4024 = vadd.f32 %v4022, 1.0
    %v4025 = vrcp.pop %v4023
    %v4026 = vmul.f32 1.0, %v4025
    %v4027 = vrcp.pop %v4024
    %v4028 = vmul.f32 1.0, %v4027
    %v4029 = vmul.f32 %v4026, %v4012
    %v4030 = vadd.f32 %v3873, %v4029
    %v4031 = vtanh.pop %v4030
    %v4032 = vsub.f32 1.0, %v4028
    %v4033 = vmul.f32 %v4032, %v4031
    %v4034 = vmul.f32 %v4028, %v3489
    %v4035 = vadd.f32 %v4033, %v4034
    %4036 = vmatprep.subr.mxu0 %v608
    %4037 = vmatpush1.msra.mxu0 %v607
    %4038 = vmatprep.subr.mxu0 %v611
    %4039 = vmatpush1.msra.mxu0 %v610
    %4040 = vmatprep.subr.mxu0 %v614
    %4041 = vmatpush1.msra.mxu0 %v613
    %4042 = vmatprep.subr.mxu0 %v617
    %4043 = vmatpush1.msra.mxu0 %v616
    %4044 = vmatprep.subr.mxu0 %v620
    %4045 = vmatpush1.msra.mxu0 %v619
    %4046 = vmatprep.subr.mxu0 %v623
    %4047 = vmatpush1.msra.mxu0 %v622
    %4048 = vmatprep.subr.mxu0 %v626
    %4049 = vmatpush1.msra.mxu0 %v625
    %4050 = vmatprep.subr.mxu0 %v629
    %4051 = vmatpush1.msra.mxu0 %v628
    %4052 = vmatprep.subr.mxu0 %v632
    %4053 = vmatpush1.msra.mxu0 %v631
    %4054 = vmatprep.subr.mxu0 %v635
    %4055 = vmatpush1.msra.mxu0 %v634
    %4056 = vmatprep.subr.mxu0 %v638
    %4057 = vmatpush1.msra.mxu0 %v637
    %4058 = vmatprep.subr.mxu0 %v641
    %4059 = vmatpush1.msra.mxu0 %v640
    %4060 = vmatprep.subr.mxu0 %v644
    %4061 = vmatpush1.msra.mxu0 %v643
    %4062 = vmatprep.subr.mxu0 %v647
    %4063 = vmatpush1.msra.mxu0 %v646
    %4064 = vmatprep.subr.mxu0 %v650
    %4065 = vmatpush1.msra.mxu0 %v649
    %4066 = vmatprep.subr.mxu0 %v653
    %4067 = vmatpush1.msra.mxu0 %v652
    %4068 = vmatprep.subr.mxu0 0.0
    %4069 = vmatpush1.msra.mxu0 0.0
    %4070 = vmatprep.subr.mxu0 0.0
    %4071 = vmatpush1.msra.mxu0 0.0
    %4072 = vmatprep.subr.mxu0 0.0
    %4073 = vmatpush1.msra.mxu0 0.0
    %4074 = vmatprep.subr.mxu0 0.0
    %4075 = vmatpush1.msra.mxu0 0.0
    %4076 = vmatprep.subr.mxu0 0.0
    %4077 = vmatpush1.msra.mxu0 0.0
    %4078 = vmatprep.subr.mxu0 0.0
    %4079 = vmatpush1.msra.mxu0 0.0
    %4080 = vmatprep.subr.mxu0 0.0
    %4081 = vmatpush1.msra.mxu0 0.0
    %4082 = vmatprep.subr.mxu0 0.0
    %4083 = vmatpush1.msra.mxu0 0.0
    %4084 = vmatprep.subr.mxu0 0.0
    %4085 = vmatpush1.msra.mxu0 0.0
    %4086 = vmatprep.subr.mxu0 0.0
    %4087 = vmatpush1.msra.mxu0 0.0
    %4088 = vmatprep.subr.mxu0 0.0
    %4089 = vmatpush1.msra.mxu0 0.0
    %4090 = vmatprep.subr.mxu0 0.0
    %4091 = vmatpush1.msra.mxu0 0.0
    %4092 = vmatprep.subr.mxu0 0.0
    %4093 = vmatpush1.msra.mxu0 0.0
    %4094 = vmatprep.subr.mxu0 0.0
    %4095 = vmatpush1.msra.mxu0 0.0
    %4096 = vmatprep.subr.mxu0 0.0
    %4097 = vmatpush1.msra.mxu0 0.0
    %4098 = vmatprep.subr.mxu0 0.0
    %4099 = vmatpush1.msra.mxu0 0.0
    %4100 = vmatprep.mubr.f32.mxu0 0.0
    %4101 = vmatmul.mubr.f32.gmra.mrb[0].mxu0 %v4035
    %v4102 = vpop.f32.mrb[0].mxu0
    %v4103 = vadd.f32 %v660, %v4102
    %v4104 = vpop.f32.mrb[0].mxu0
    %v4105 = vadd.f32 %v664, %v4104
    %4106 = vdwg.mxu0
    %4107 = vmatprep.subr.mxu0 0.0
    %4108 = vmatpush1.msra.mxu0 %v609
    %4109 = vmatprep.subr.mxu0 0.0
    %4110 = vmatpush1.msra.mxu0 %v612
    %4111 = vmatprep.subr.mxu0 0.0
    %4112 = vmatpush1.msra.mxu0 %v615
    %4113 = vmatprep.subr.mxu0 0.0
    %4114 = vmatpush1.msra.mxu0 %v618
    %4115 = vmatprep.subr.mxu0 0.0
    %4116 = vmatpush1.msra.mxu0 %v621
    %4117 = vmatprep.subr.mxu0 0.0
    %4118 = vmatpush1.msra.mxu0 %v624
    %4119 = vmatprep.subr.mxu0 0.0
    %4120 = vmatpush1.msra.mxu0 %v627
    %4121 = vmatprep.subr.mxu0 0.0
    %4122 = vmatpush1.msra.mxu0 %v630
    %4123 = vmatprep.subr.mxu0 0.0
    %4124 = vmatpush1.msra.mxu0 %v633
    %4125 = vmatprep.subr.mxu0 0.0
    %4126 = vmatpush1.msra.mxu0 %v636
    %4127 = vmatprep.subr.mxu0 0.0
    %4128 = vmatpush1.msra.mxu0 %v639
    %4129 = vmatprep.subr.mxu0 0.0
    %4130 = vmatpush1.msra.mxu0 %v642
    %4131 = vmatprep.subr.mxu0 0.0
    %4132 = vmatpush1.msra.mxu0 %v645
    %4133 = vmatprep.subr.mxu0 0.0
    %4134 = vmatpush1.msra.mxu0 %v648
    %4135 = vmatprep.subr.mxu0 0.0
    %4136 = vmatpush1.msra.mxu0 %v651
    %4137 = vmatprep.subr.mxu0 0.0
    %4138 = vmatpush1.msra.mxu0 %v654
    %4139 = vmatprep.subr.mxu0 0.0
    %4140 = vmatpush1.msra.mxu0 0.0
    %4141 = vmatprep.subr.mxu0 0.0
    %4142 = vmatpush1.msra.mxu0 0.0
    %4143 = vmatprep.subr.mxu0 0.0
    %4144 = vmatpush1.msra.mxu0 0.0
    %4145 = vmatprep.subr.mxu0 0.0
    %4146 = vmatpush1.msra.mxu0 0.0
    %4147 = vmatprep.subr.mxu0 0.0
    %4148 = vmatpush1.msra.mxu0 0.0
    %4149 = vmatprep.subr.mxu0 0.0
    %4150 = vmatpush1.msra.mxu0 0.0
    %4151 = vmatprep.subr.mxu0 0.0
    %4152 = vmatpush1.msra.mxu0 0.0
    %4153 = vmatprep.subr.mxu0 0.0
    %4154 = vmatpush1.msra.mxu0 0.0
    %4155 = vmatprep.subr.mxu0 0.0
    %4156 = vmatpush1.msra.mxu0 0.0
    %4157 = vmatprep.subr.mxu0 0.0
    %4158 = vmatpush1.msra.mxu0 0.0
    %4159 = vmatprep.subr.mxu0 0.0
    %4160 = vmatpush1.msra.mxu0 0.0
    %4161 = vmatprep.subr.mxu0 0.0
    %4162 = vmatpush1.msra.mxu0 0.0
    %4163 = vmatprep.subr.mxu0 0.0
    %4164 = vmatpush1.msra.mxu0 0.0
    %4165 = vmatprep.subr.mxu0 0.0
    %4166 = vmatpush1.msra.mxu0 0.0
    %4167 = vmatprep.subr.mxu0 0.0
    %4168 = vmatpush1.msra.mxu0 0.0
    %4169 = vmatprep.subr.mxu0 0.0
    %4170 = vmatpush1.msra.mxu0 0.0
    %4171 = vmatprep.mubr.f32.mxu0 0.0
    %4172 = vmatmul.mubr.f32.gmra.mrb[0].mxu0 %v4035
    %v4173 = vpop.f32.mrb[0].mxu0
    %v4174 = vadd.f32 %v668, %v4173
    %v4175 = vpop.f32.mrb[0].mxu0
    %4176 = vdwg.mxu0
    %4177 = vmatprep.subr.mxu0 %v814
    %4178 = vmatpush1.msra.mxu0 %v813
    %4179 = vmatprep.subr.mxu0 %v817
    %4180 = vmatpush1.msra.mxu0 %v816
    %4181 = vmatprep.subr.mxu0 %v820
    %4182 = vmatpush1.msra.mxu0 %v819
    %4183 = vmatprep.subr.mxu0 %v823
    %4184 = vmatpush1.msra.mxu0 %v822
    %4185 = vmatprep.subr.mxu0 %v826
    %4186 = vmatpush1.msra.mxu0 %v825
    %4187 = vmatprep.subr.mxu0 %v829
    %4188 = vmatpush1.msra.mxu0 %v828
    %4189 = vmatprep.subr.mxu0 %v832
    %4190 = vmatpush1.msra.mxu0 %v831
    %4191 = vmatprep.subr.mxu0 %v835
    %4192 = vmatpush1.msra.mxu0 %v834
    %4193 = vmatprep.subr.mxu0 %v838
    %4194 = vmatpush1.msra.mxu0 %v837
    %4195 = vmatprep.subr.mxu0 %v841
    %4196 = vmatpush1.msra.mxu0 %v840
    %4197 = vmatprep.subr.mxu0 %v844
    %4198 = vmatpush1.msra.mxu0 %v843
    %4199 = vmatprep.subr.mxu0 %v847
    %4200 = vmatpush1.msra.mxu0 %v846
    %4201 = vmatprep.subr.mxu0 %v850
    %4202 = vmatpush1.msra.mxu0 %v849
    %4203 = vmatprep.subr.mxu0 %v853
    %4204 = vmatpush1.msra.mxu0 %v852
    %4205 = vmatprep.subr.mxu0 %v856
    %4206 = vmatpush1.msra.mxu0 %v855
    %4207 = vmatprep.subr.mxu0 %v859
    %4208 = vmatpush1.msra.mxu0 %v858
    %4209 = vmatprep.subr.mxu0 0.0
    %4210 = vmatpush1.msra.mxu0 0.0
    %4211 = vmatprep.subr.mxu0 0.0
    %4212 = vmatpush1.msra.mxu0 0.0
    %4213 = vmatprep.subr.mxu0 0.0
    %4214 = vmatpush1.msra.mxu0 0.0
    %4215 = vmatprep.subr.mxu0 0.0
    %4216 = vmatpush1.msra.mxu0 0.0
    %4217 = vmatprep.subr.mxu0 0.0
    %4218 = vmatpush1.msra.mxu0 0.0
    %4219 = vmatprep.subr.mxu0 0.0
    %4220 = vmatpush1.msra.mxu0 0.0
    %4221 = vmatprep.subr.mxu0 0.0
    %4222 = vmatpush1.msra.mxu0 0.0
    %4223 = vmatprep.subr.mxu0 0.0
    %4224 = vmatpush1.msra.mxu0 0.0
    %4225 = vmatprep.subr.mxu0 0.0
    %4226 = vmatpush1.msra.mxu0 0.0
    %4227 = vmatprep.subr.mxu0 0.0
    %4228 = vmatpush1.msra.mxu0 0.0
    %4229 = vmatprep.subr.mxu0 0.0
    %4230 = vmatpush1.msra.mxu0 0.0
    %4231 = vmatprep.subr.mxu0 0.0
    %4232 = vmatpush1.msra.mxu0 0.0
    %4233 = vmatprep.subr.mxu0 0.0
    %4234 = vmatpush1.msra.mxu0 0.0
    %4235 = vmatprep.subr.mxu0 0.0
    %4236 = vmatpush1.msra.mxu0 0.0
    %4237 = vmatprep.subr.mxu0 0.0
    %4238 = vmatpush1.msra.mxu0 0.0
    %4239 = vmatprep.subr.mxu0 0.0
    %4240 = vmatpush1.msra.mxu0 0.0
    %4241 = vmatprep.mubr.f32.mxu0 0.0
    %4242 = vmatmul.mubr.f32.gmra.mrb[0].mxu0 %v3792
    %v4243 = vpop.f32.mrb[0].mxu0
    %v4244 = vadd.f32 %v866, %v4243
    %v4245 = vpop.f32.mrb[0].mxu0
    %v4246 = vadd.f32 %v870, %v4245
    %4247 = vdwg.mxu0
    %4248 = vmatprep.subr.mxu0 0.0
    %4249 = vmatpush1.msra.mxu0 %v815
    %4250 = vmatprep.subr.mxu0 0.0
    %4251 = vmatpush1.msra.mxu0 %v818
    %4252 = vmatprep.subr.mxu0 0.0
    %4253 = vmatpush1.msra.mxu0 %v821
    %4254 = vmatprep.subr.mxu0 0.0
    %4255 = vmatpush1.msra.mxu0 %v824
    %4256 = vmatprep.subr.mxu0 0.0
    %4257 = vmatpush1.msra.mxu0 %v827
    %4258 = vmatprep.subr.mxu0 0.0
    %4259 = vmatpush1.msra.mxu0 %v830
    %4260 = vmatprep.subr.mxu0 0.0
    %4261 = vmatpush1.msra.mxu0 %v833
    %4262 = vmatprep.subr.mxu0 0.0
    %4263 = vmatpush1.msra.mxu0 %v836
    %4264 = vmatprep.subr.mxu0 0.0
    %4265 = vmatpush1.msra.mxu0 %v839
    %4266 = vmatprep.subr.mxu0 0.0
    %4267 = vmatpush1.msra.mxu0 %v842
    %4268 = vmatprep.subr.mxu0 0.0
    %4269 = vmatpush1.msra.mxu0 %v845
    %4270 = vmatprep.subr.mxu0 0.0
    %4271 = vmatpush1.msra.mxu0 %v848
    %4272 = vmatprep.subr.mxu0 0.0
    %4273 = vmatpush1.msra.mxu0 %v851
    %4274 = vmatprep.subr.mxu0 0.0
    %4275 = vmatpush1.msra.mxu0 %v854
    %4276 = vmatprep.subr.mxu0 0.0
    %4277 = vmatpush1.msra.mxu0 %v857
    %4278 = vmatprep.subr.mxu0 0.0
    %4279 = vmatpush1.msra.mxu0 %v860
    %4280 = vmatprep.subr.mxu0 0.0
    %4281 = vmatpush1.msra.mxu0 0.0
    %4282 = vmatprep.subr.mxu0 0.0
    %4283 = vmatpush1.msra.mxu0 0.0
    %4284 = vmatprep.subr.mxu0 0.0
    %4285 = vmatpush1.msra.mxu0 0.0
    %4286 = vmatprep.subr.mxu0 0.0
    %4287 = vmatpush1.msra.mxu0 0.0
    %4288 = vmatprep.subr.mxu0 0.0
    %4289 = vmatpush1.msra.mxu0 0.0
    %4290 = vmatprep.subr.mxu0 0.0
    %4291 = vmatpush1.msra.mxu0 0.0
    %4292 = vmatprep.subr.mxu0 0.0
    %4293 = vmatpush1.msra.mxu0 0.0
    %4294 = vmatprep.subr.mxu0 0.0
    %4295 = vmatpush1.msra.mxu0 0.0
    %4296 = vmatprep.subr.mxu0 0.0
    %4297 = vmatpush1.msra.mxu0 0.0
    %4298 = vmatprep.subr.mxu0 0.0
    %4299 = vmatpush1.msra.mxu0 0.0
    %4300 = vmatprep.subr.mxu0 0.0
    %4301 = vmatpush1.msra.mxu0 0.0
    %4302 = vmatprep.subr.mxu0 0.0
    %4303 = vmatpush1.msra.mxu0 0.0
    %4304 = vmatprep.subr.mxu0 0.0
    %4305 = vmatpush1.msra.mxu0 0.0
    %4306 = vmatprep.subr.mxu0 0.0
    %4307 = vmatpush1.msra.mxu0 0.0
    %4308 = vmatprep.subr.mxu0 0.0
    %4309 = vmatpush1.msra.mxu0 0.0
    %4310 = vmatprep.subr.mxu0 0.0
    %4311 = vmatpush1.msra.mxu0 0.0
    %4312 = vmatprep.mubr.f32.mxu0 0.0
    %4313 = vmatmul.mubr.f32.gmra.mrb[0].mxu0 %v3792
    %v4314 = vpop.f32.mrb[0].mxu0
    %v4315 = vadd.f32 %v874, %v4314
    %v4316 = vpop.f32.mrb[0].mxu0
    %4317 = vdwg.mxu0
    %v4318 = vadd.f32 %v4103, %v4244
    %v4319 = vadd.f32 %v4105, %v4246
    %v4320 = vxor.u32 %v4318, 2147483648
    %v4321 = vxor.u32 %v4319, 2147483648
    %v4322 = vmul.f32 %v4320, 1.442695
    %v4323 = vpow.pop %v4322
    %v4324 = vmul.f32 %v4321, 1.442695
    %v4325 = vpow.pop %v4324
    %v4326 = vadd.f32 %v4323, 1.0
    %v4327 = vadd.f32 %v4325, 1.0
    %v4328 = vrcp.pop %v4326
    %v4329 = vmul.f32 1.0, %v4328
    %v4330 = vrcp.pop %v4327
    %v4331 = vmul.f32 1.0, %v4330
    %v4332 = vmul.f32 %v4329, %v4315
    %v4333 = vadd.f32 %v4174, %v4332
    %v4334 = vtanh.pop %v4333
    %v4335 = vsub.f32 1.0, %v4331
    %v4336 = vmul.f32 %v4335, %v4334
    %v4337 = vmul.f32 %v4331, %v3792
    %v4338 = vadd.f32 %v4336, %v4337
    %4339 = vmatprep.subr.mxu0 0.0
    %4340 = vmatpush1.msra.mxu0 %v1040
    %4341 = vmatprep.subr.mxu0 0.0
    %4342 = vmatpush1.msra.mxu0 %v1041
    %4343 = vmatprep.subr.mxu0 0.0
    %4344 = vmatpush1.msra.mxu0 %v1042
    %4345 = vmatprep.subr.mxu0 0.0
    %4346 = vmatpush1.msra.mxu0 %v1043
    %4347 = vmatprep.subr.mxu0 0.0
    %4348 = vmatpush1.msra.mxu0 %v1044
    %4349 = vmatprep.subr.mxu0 0.0
    %4350 = vmatpush1.msra.mxu0 %v1045
    %4351 = vmatprep.subr.mxu0 0.0
    %4352 = vmatpush1.msra.mxu0 %v1046
    %4353 = vmatprep.subr.mxu0 0.0
    %4354 = vmatpush1.msra.mxu0 %v1047
    %4355 = vmatprep.subr.mxu0 0.0
    %4356 = vmatpush1.msra.mxu0 %v1048
    %4357 = vmatprep.subr.mxu0 0.0
    %4358 = vmatpush1.msra.mxu0 %v1049
    %4359 = vmatprep.subr.mxu0 0.0
    %4360 = vmatpush1.msra.mxu0 %v1050
    %4361 = vmatprep.subr.mxu0 0.0
    %4362 = vmatpush1.msra.mxu0 %v1051
    %4363 = vmatprep.subr.mxu0 0.0
    %4364 = vmatpush1.msra.mxu0 %v1052
    %4365 = vmatprep.subr.mxu0 0.0
    %4366 = vmatpush1.msra.mxu0 %v1053
    %4367 = vmatprep.subr.mxu0 0.0
    %4368 = vmatpush1.msra.mxu0 %v1054
    %4369 = vmatprep.subr.mxu0 0.0
    %4370 = vmatpush1.msra.mxu0 %v1055
    %4371 = vmatprep.subr.mxu0 0.0
    %4372 = vmatpush1.msra.mxu0 0.0
    %4373 = vmatprep.subr.mxu0 0.0
    %4374 = vmatpush1.msra.mxu0 0.0
    %4375 = vmatprep.subr.mxu0 0.0
    %4376 = vmatpush1.msra.mxu0 0.0
    %4377 = vmatprep.subr.mxu0 0.0
    %4378 = vmatpush1.msra.mxu0 0.0
    %4379 = vmatprep.subr.mxu0 0.0
    %4380 = vmatpush1.msra.mxu0 0.0
    %4381 = vmatprep.subr.mxu0 0.0
    %4382 = vmatpush1.msra.mxu0 0.0
    %4383 = vmatprep.subr.mxu0 0.0
    %4384 = vmatpush1.msra.mxu0 0.0
    %4385 = vmatprep.subr.mxu0 0.0
    %4386 = vmatpush1.msra.mxu0 0.0
    %4387 = vmatprep.subr.mxu0 0.0
    %4388 = vmatpush1.msra.mxu0 0.0
    %4389 = vmatprep.subr.mxu0 0.0
    %4390 = vmatpush1.msra.mxu0 0.0
    %4391 = vmatprep.subr.mxu0 0.0
    %4392 = vmatpush1.msra.mxu0 0.0
    %4393 = vmatprep.subr.mxu0 0.0
    %4394 = vmatpush1.msra.mxu0 0.0
    %4395 = vmatprep.subr.mxu0 0.0
    %4396 = vmatpush1.msra.mxu0 0.0
    %4397 = vmatprep.subr.mxu0 0.0
    %4398 = vmatpush1.msra.mxu0 0.0
    %4399 = vmatprep.subr.mxu0 0.0
    %4400 = vmatpush1.msra.mxu0 0.0
    %4401 = vmatprep.subr.mxu0 0.0
    %4402 = vmatpush1.msra.mxu0 0.0
    %4403 = vmatprep.mubr.f32.mxu0 0.0
    %4404 = vmatmul.mubr.f32.gmra.mrb[0].mxu0 %v4338
    %v4405 = vpop.f32.mrb[0].mxu0
    %v4406 = vadd.f32 %v1061, %v4405
    %v4407 = vpop.f32.mrb[0].mxu0
    %4408 = vdwg.mxu0
    %v4409 = vmax.f32 %v4406, 0.0
    %s4410 = sld [smem:[#allocation4 + $0x6]]
    %v4411 = vstv %s4410
    %v4412 = vmul.f32 %v4409, %v4411
    %v4413 = vadd.f32 %v3867, %v4412
    %s4414 = smul.u32 7, 3
    %s4415 = smul.addr %s4414, 8
    %s4416 = scalar_lea.vmem [#allocation2], %s4415
    %v4417 = vld [vmem:[%s4416] sm:$0xff]
    %v4418 = vld [vmem:[%s4416 + $0x8] sm:$0xff]
    %v4419 = vld [vmem:[%s4416 + $0x10] sm:$0xff]
    %4420 = vmatprep.subr.mxu0 %v381
    %4421 = vmatpush1.msra.mxu0 %v380
    %4422 = vmatprep.subr.mxu0 %v384
    %4423 = vmatpush1.msra.mxu0 %v383
    %4424 = vmatprep.subr.mxu0 %v387
    %4425 = vmatpush1.msra.mxu0 %v386
    %4426 = vmatprep.subr.mxu0 %v390
    %4427 = vmatpush1.msra.mxu0 %v389
    %4428 = vmatprep.subr.mxu0 %v393
    %4429 = vmatpush1.msra.mxu0 %v392
    %4430 = vmatprep.subr.mxu0 %v396
    %4431 = vmatpush1.msra.mxu0 %v395
    %4432 = vmatprep.subr.mxu0 %v399
    %4433 = vmatpush1.msra.mxu0 %v398
    %4434 = vmatprep.subr.mxu0 %v402
    %4435 = vmatpush1.msra.mxu0 %v401
    %4436 = vmatprep.subr.mxu0 %v405
    %4437 = vmatpush1.msra.mxu0 %v404
    %4438 = vmatprep.subr.mxu0 %v408
    %4439 = vmatpush1.msra.mxu0 %v407
    %4440 = vmatprep.subr.mxu0 %v411
    %4441 = vmatpush1.msra.mxu0 %v410
    %4442 = vmatprep.subr.mxu0 %v414
    %4443 = vmatpush1.msra.mxu0 %v413
    %4444 = vmatprep.subr.mxu0 %v417
    %4445 = vmatpush1.msra.mxu0 %v416
    %4446 = vmatprep.subr.mxu0 %v420
    %4447 = vmatpush1.msra.mxu0 %v419
    %4448 = vmatprep.subr.mxu0 %v423
    %4449 = vmatpush1.msra.mxu0 %v422
    %4450 = vmatprep.subr.mxu0 %v426
    %4451 = vmatpush1.msra.mxu0 %v425
    %4452 = vmatprep.subr.mxu0 0.0
    %4453 = vmatpush1.msra.mxu0 0.0
    %4454 = vmatprep.subr.mxu0 0.0
    %4455 = vmatpush1.msra.mxu0 0.0
    %4456 = vmatprep.subr.mxu0 0.0
    %4457 = vmatpush1.msra.mxu0 0.0
    %4458 = vmatprep.subr.mxu0 0.0
    %4459 = vmatpush1.msra.mxu0 0.0
    %4460 = vmatprep.subr.mxu0 0.0
    %4461 = vmatpush1.msra.mxu0 0.0
    %4462 = vmatprep.subr.mxu0 0.0
    %4463 = vmatpush1.msra.mxu0 0.0
    %4464 = vmatprep.subr.mxu0 0.0
    %4465 = vmatpush1.msra.mxu0 0.0
    %4466 = vmatprep.subr.mxu0 0.0
    %4467 = vmatpush1.msra.mxu0 0.0
    %4468 = vmatprep.subr.mxu0 0.0
    %4469 = vmatpush1.msra.mxu0 0.0
    %4470 = vmatprep.subr.mxu0 0.0
    %4471 = vmatpush1.msra.mxu0 0.0
    %4472 = vmatprep.subr.mxu0 0.0
    %4473 = vmatpush1.msra.mxu0 0.0
    %4474 = vmatprep.subr.mxu0 0.0
    %4475 = vmatpush1.msra.mxu0 0.0
    %4476 = vmatprep.subr.mxu0 0.0
    %4477 = vmatpush1.msra.mxu0 0.0
    %4478 = vmatprep.subr.mxu0 0.0
    %4479 = vmatpush1.msra.mxu0 0.0
    %4480 = vmatprep.subr.mxu0 0.0
    %4481 = vmatpush1.msra.mxu0 0.0
    %4482 = vmatprep.subr.mxu0 0.0
    %4483 = vmatpush1.msra.mxu0 0.0
    %4484 = vmatprep.mubr.f32.mxu0 0.0
    %4485 = vmatmul.mubr.f32.gmra.mrb[0].mxu0 %v4035
    %v4486 = vpop.f32.mrb[0].mxu0
    %v4487 = vadd.f32 %v433, %v4486
    %v4488 = vpop.f32.mrb[0].mxu0
    %v4489 = vadd.f32 %v437, %v4488
    %4490 = vdwg.mxu0
    %4491 = vmatprep.subr.mxu0 0.0
    %4492 = vmatpush1.msra.mxu0 %v382
    %4493 = vmatprep.subr.mxu0 0.0
    %4494 = vmatpush1.msra.mxu0 %v385
    %4495 = vmatprep.subr.mxu0 0.0
    %4496 = vmatpush1.msra.mxu0 %v388
    %4497 = vmatprep.subr.mxu0 0.0
    %4498 = vmatpush1.msra.mxu0 %v391
    %4499 = vmatprep.subr.mxu0 0.0
    %4500 = vmatpush1.msra.mxu0 %v394
    %4501 = vmatprep.subr.mxu0 0.0
    %4502 = vmatpush1.msra.mxu0 %v397
    %4503 = vmatprep.subr.mxu0 0.0
    %4504 = vmatpush1.msra.mxu0 %v400
    %4505 = vmatprep.subr.mxu0 0.0
    %4506 = vmatpush1.msra.mxu0 %v403
    %4507 = vmatprep.subr.mxu0 0.0
    %4508 = vmatpush1.msra.mxu0 %v406
    %4509 = vmatprep.subr.mxu0 0.0
    %4510 = vmatpush1.msra.mxu0 %v409
    %4511 = vmatprep.subr.mxu0 0.0
    %4512 = vmatpush1.msra.mxu0 %v412
    %4513 = vmatprep.subr.mxu0 0.0
    %4514 = vmatpush1.msra.mxu0 %v415
    %4515 = vmatprep.subr.mxu0 0.0
    %4516 = vmatpush1.msra.mxu0 %v418
    %4517 = vmatprep.subr.mxu0 0.0
    %4518 = vmatpush1.msra.mxu0 %v421
    %4519 = vmatprep.subr.mxu0 0.0
    %4520 = vmatpush1.msra.mxu0 %v424
    %4521 = vmatprep.subr.mxu0 0.0
    %4522 = vmatpush1.msra.mxu0 %v427
    %4523 = vmatprep.subr.mxu0 0.0
    %4524 = vmatpush1.msra.mxu0 0.0
    %4525 = vmatprep.subr.mxu0 0.0
    %4526 = vmatpush1.msra.mxu0 0.0
    %4527 = vmatprep.subr.mxu0 0.0
    %4528 = vmatpush1.msra.mxu0 0.0
    %4529 = vmatprep.subr.mxu0 0.0
    %4530 = vmatpush1.msra.mxu0 0.0
    %4531 = vmatprep.subr.mxu0 0.0
    %4532 = vmatpush1.msra.mxu0 0.0
    %4533 = vmatprep.subr.mxu0 0.0
    %4534 = vmatpush1.msra.mxu0 0.0
    %4535 = vmatprep.subr.mxu0 0.0
    %4536 = vmatpush1.msra.mxu0 0.0
    %4537 = vmatprep.subr.mxu0 0.0
    %4538 = vmatpush1.msra.mxu0 0.0
    %4539 = vmatprep.subr.mxu0 0.0
    %4540 = vmatpush1.msra.mxu0 0.0
    %4541 = vmatprep.subr.mxu0 0.0
    %4542 = vmatpush1.msra.mxu0 0.0
    %4543 = vmatprep.subr.mxu0 0.0
    %4544 = vmatpush1.msra.mxu0 0.0
    %4545 = vmatprep.subr.mxu0 0.0
    %4546 = vmatpush1.msra.mxu0 0.0
    %4547 = vmatprep.subr.mxu0 0.0
    %4548 = vmatpush1.msra.mxu0 0.0
    %4549 = vmatprep.subr.mxu0 0.0
    %4550 = vmatpush1.msra.mxu0 0.0
    %4551 = vmatprep.subr.mxu0 0.0
    %4552 = vmatpush1.msra.mxu0 0.0
    %4553 = vmatprep.subr.mxu0 0.0
    %4554 = vmatpush1.msra.mxu0 0.0
    %4555 = vmatprep.mubr.f32.mxu0 0.0
    %4556 = vmatmul.mubr.f32.gmra.mrb[0].mxu0 %v4035
    %v4557 = vpop.f32.mrb[0].mxu0
    %v4558 = vadd.f32 %v441, %v4557
    %v4559 = vpop.f32.mrb[0].mxu0
    %4560 = vdwg.mxu0
    %v4561 = vadd.f32 %v4417, %v4487
    %v4562 = vadd.f32 %v4418, %v4489
    %v4563 = vxor.u32 %v4561, 2147483648
    %v4564 = vxor.u32 %v4562, 2147483648
    %v4565 = vmul.f32 %v4563, 1.442695
    %v4566 = vpow.pop %v4565
    %v4567 = vmul.f32 %v4564, 1.442695
    %v4568 = vpow.pop %v4567
    %v4569 = vadd.f32 %v4566, 1.0
    %v4570 = vadd.f32 %v4568, 1.0
    %v4571 = vrcp.pop %v4569
    %v4572 = vmul.f32 1.0, %v4571
    %v4573 = vrcp.pop %v4570
    %v4574 = vmul.f32 1.0, %v4573
    %v4575 = vmul.f32 %v4572, %v4558
    %v4576 = vadd.f32 %v4419, %v4575
    %v4577 = vtanh.pop %v4576
    %v4578 = vsub.f32 1.0, %v4574
    %v4579 = vmul.f32 %v4578, %v4577
    %v4580 = vmul.f32 %v4574, %v4035
    %v4581 = vadd.f32 %v4579, %v4580
    %4582 = vmatprep.subr.mxu0 %v608
    %4583 = vmatpush1.msra.mxu0 %v607
    %4584 = vmatprep.subr.mxu0 %v611
    %4585 = vmatpush1.msra.mxu0 %v610
    %4586 = vmatprep.subr.mxu0 %v614
    %4587 = vmatpush1.msra.mxu0 %v613
    %4588 = vmatprep.subr.mxu0 %v617
    %4589 = vmatpush1.msra.mxu0 %v616
    %4590 = vmatprep.subr.mxu0 %v620
    %4591 = vmatpush1.msra.mxu0 %v619
    %4592 = vmatprep.subr.mxu0 %v623
    %4593 = vmatpush1.msra.mxu0 %v622
    %4594 = vmatprep.subr.mxu0 %v626
    %4595 = vmatpush1.msra.mxu0 %v625
    %4596 = vmatprep.subr.mxu0 %v629
    %4597 = vmatpush1.msra.mxu0 %v628
    %4598 = vmatprep.subr.mxu0 %v632
    %4599 = vmatpush1.msra.mxu0 %v631
    %4600 = vmatprep.subr.mxu0 %v635
    %4601 = vmatpush1.msra.mxu0 %v634
    %4602 = vmatprep.subr.mxu0 %v638
    %4603 = vmatpush1.msra.mxu0 %v637
    %4604 = vmatprep.subr.mxu0 %v641
    %4605 = vmatpush1.msra.mxu0 %v640
    %4606 = vmatprep.subr.mxu0 %v644
    %4607 = vmatpush1.msra.mxu0 %v643
    %4608 = vmatprep.subr.mxu0 %v647
    %4609 = vmatpush1.msra.mxu0 %v646
    %4610 = vmatprep.subr.mxu0 %v650
    %4611 = vmatpush1.msra.mxu0 %v649
    %4612 = vmatprep.subr.mxu0 %v653
    %4613 = vmatpush1.msra.mxu0 %v652
    %4614 = vmatprep.subr.mxu0 0.0
    %4615 = vmatpush1.msra.mxu0 0.0
    %4616 = vmatprep.subr.mxu0 0.0
    %4617 = vmatpush1.msra.mxu0 0.0
    %4618 = vmatprep.subr.mxu0 0.0
    %4619 = vmatpush1.msra.mxu0 0.0
    %4620 = vmatprep.subr.mxu0 0.0
    %4621 = vmatpush1.msra.mxu0 0.0
    %4622 = vmatprep.subr.mxu0 0.0
    %4623 = vmatpush1.msra.mxu0 0.0
    %4624 = vmatprep.subr.mxu0 0.0
    %4625 = vmatpush1.msra.mxu0 0.0
    %4626 = vmatprep.subr.mxu0 0.0
    %4627 = vmatpush1.msra.mxu0 0.0
    %4628 = vmatprep.subr.mxu0 0.0
    %4629 = vmatpush1.msra.mxu0 0.0
    %4630 = vmatprep.subr.mxu0 0.0
    %4631 = vmatpush1.msra.mxu0 0.0
    %4632 = vmatprep.subr.mxu0 0.0
    %4633 = vmatpush1.msra.mxu0 0.0
    %4634 = vmatprep.subr.mxu0 0.0
    %4635 = vmatpush1.msra.mxu0 0.0
    %4636 = vmatprep.subr.mxu0 0.0
    %4637 = vmatpush1.msra.mxu0 0.0
    %4638 = vmatprep.subr.mxu0 0.0
    %4639 = vmatpush1.msra.mxu0 0.0
    %4640 = vmatprep.subr.mxu0 0.0
    %4641 = vmatpush1.msra.mxu0 0.0
    %4642 = vmatprep.subr.mxu0 0.0
    %4643 = vmatpush1.msra.mxu0 0.0
    %4644 = vmatprep.subr.mxu0 0.0
    %4645 = vmatpush1.msra.mxu0 0.0
    %4646 = vmatprep.mubr.f32.mxu0 0.0
    %4647 = vmatmul.mubr.f32.gmra.mrb[0].mxu0 %v4581
    %v4648 = vpop.f32.mrb[0].mxu0
    %v4649 = vadd.f32 %v660, %v4648
    %v4650 = vpop.f32.mrb[0].mxu0
    %v4651 = vadd.f32 %v664, %v4650
    %4652 = vdwg.mxu0
    %4653 = vmatprep.subr.mxu0 0.0
    %4654 = vmatpush1.msra.mxu0 %v609
    %4655 = vmatprep.subr.mxu0 0.0
    %4656 = vmatpush1.msra.mxu0 %v612
    %4657 = vmatprep.subr.mxu0 0.0
    %4658 = vmatpush1.msra.mxu0 %v615
    %4659 = vmatprep.subr.mxu0 0.0
    %4660 = vmatpush1.msra.mxu0 %v618
    %4661 = vmatprep.subr.mxu0 0.0
    %4662 = vmatpush1.msra.mxu0 %v621
    %4663 = vmatprep.subr.mxu0 0.0
    %4664 = vmatpush1.msra.mxu0 %v624
    %4665 = vmatprep.subr.mxu0 0.0
    %4666 = vmatpush1.msra.mxu0 %v627
    %4667 = vmatprep.subr.mxu0 0.0
    %4668 = vmatpush1.msra.mxu0 %v630
    %4669 = vmatprep.subr.mxu0 0.0
    %4670 = vmatpush1.msra.mxu0 %v633
    %4671 = vmatprep.subr.mxu0 0.0
    %4672 = vmatpush1.msra.mxu0 %v636
    %4673 = vmatprep.subr.mxu0 0.0
    %4674 = vmatpush1.msra.mxu0 %v639
    %4675 = vmatprep.subr.mxu0 0.0
    %4676 = vmatpush1.msra.mxu0 %v642
    %4677 = vmatprep.subr.mxu0 0.0
    %4678 = vmatpush1.msra.mxu0 %v645
    %4679 = vmatprep.subr.mxu0 0.0
    %4680 = vmatpush1.msra.mxu0 %v648
    %4681 = vmatprep.subr.mxu0 0.0
    %4682 = vmatpush1.msra.mxu0 %v651
    %4683 = vmatprep.subr.mxu0 0.0
    %4684 = vmatpush1.msra.mxu0 %v654
    %4685 = vmatprep.subr.mxu0 0.0
    %4686 = vmatpush1.msra.mxu0 0.0
    %4687 = vmatprep.subr.mxu0 0.0
    %4688 = vmatpush1.msra.mxu0 0.0
    %4689 = vmatprep.subr.mxu0 0.0
    %4690 = vmatpush1.msra.mxu0 0.0
    %4691 = vmatprep.subr.mxu0 0.0
    %4692 = vmatpush1.msra.mxu0 0.0
    %4693 = vmatprep.subr.mxu0 0.0
    %4694 = vmatpush1.msra.mxu0 0.0
    %4695 = vmatprep.subr.mxu0 0.0
    %4696 = vmatpush1.msra.mxu0 0.0
    %4697 = vmatprep.subr.mxu0 0.0
    %4698 = vmatpush1.msra.mxu0 0.0
    %4699 = vmatprep.subr.mxu0 0.0
    %4700 = vmatpush1.msra.mxu0 0.0
    %4701 = vmatprep.subr.mxu0 0.0
    %4702 = vmatpush1.msra.mxu0 0.0
    %4703 = vmatprep.subr.mxu0 0.0
    %4704 = vmatpush1.msra.mxu0 0.0
    %4705 = vmatprep.subr.mxu0 0.0
    %4706 = vmatpush1.msra.mxu0 0.0
    %4707 = vmatprep.subr.mxu0 0.0
    %4708 = vmatpush1.msra.mxu0 0.0
    %4709 = vmatprep.subr.mxu0 0.0
    %4710 = vmatpush1.msra.mxu0 0.0
    %4711 = vmatprep.subr.mxu0 0.0
    %4712 = vmatpush1.msra.mxu0 0.0
    %4713 = vmatprep.subr.mxu0 0.0
    %4714 = vmatpush1.msra.mxu0 0.0
    %4715 = vmatprep.subr.mxu0 0.0
    %4716 = vmatpush1.msra.mxu0 0.0
    %4717 = vmatprep.mubr.f32.mxu0 0.0
    %4718 = vmatmul.mubr.f32.gmra.mrb[0].mxu0 %v4581
    %v4719 = vpop.f32.mrb[0].mxu0
    %v4720 = vadd.f32 %v668, %v4719
    %v4721 = vpop.f32.mrb[0].mxu0
    %4722 = vdwg.mxu0
    %4723 = vmatprep.subr.mxu0 %v814
    %4724 = vmatpush1.msra.mxu0 %v813
    %4725 = vmatprep.subr.mxu0 %v817
    %4726 = vmatpush1.msra.mxu0 %v816
    %4727 = vmatprep.subr.mxu0 %v820
    %4728 = vmatpush1.msra.mxu0 %v819
    %4729 = vmatprep.subr.mxu0 %v823
    %4730 = vmatpush1.msra.mxu0 %v822
    %4731 = vmatprep.subr.mxu0 %v826
    %4732 = vmatpush1.msra.mxu0 %v825
    %4733 = vmatprep.subr.mxu0 %v829
    %4734 = vmatpush1.msra.mxu0 %v828
    %4735 = vmatprep.subr.mxu0 %v832
    %4736 = vmatpush1.msra.mxu0 %v831
    %4737 = vmatprep.subr.mxu0 %v835
    %4738 = vmatpush1.msra.mxu0 %v834
    %4739 = vmatprep.subr.mxu0 %v838
    %4740 = vmatpush1.msra.mxu0 %v837
    %4741 = vmatprep.subr.mxu0 %v841
    %4742 = vmatpush1.msra.mxu0 %v840
    %4743 = vmatprep.subr.mxu0 %v844
    %4744 = vmatpush1.msra.mxu0 %v843
    %4745 = vmatprep.subr.mxu0 %v847
    %4746 = vmatpush1.msra.mxu0 %v846
    %4747 = vmatprep.subr.mxu0 %v850
    %4748 = vmatpush1.msra.mxu0 %v849
    %4749 = vmatprep.subr.mxu0 %v853
    %4750 = vmatpush1.msra.mxu0 %v852
    %4751 = vmatprep.subr.mxu0 %v856
    %4752 = vmatpush1.msra.mxu0 %v855
    %4753 = vmatprep.subr.mxu0 %v859
    %4754 = vmatpush1.msra.mxu0 %v858
    %4755 = vmatprep.subr.mxu0 0.0
    %4756 = vmatpush1.msra.mxu0 0.0
    %4757 = vmatprep.subr.mxu0 0.0
    %4758 = vmatpush1.msra.mxu0 0.0
    %4759 = vmatprep.subr.mxu0 0.0
    %4760 = vmatpush1.msra.mxu0 0.0
    %4761 = vmatprep.subr.mxu0 0.0
    %4762 = vmatpush1.msra.mxu0 0.0
    %4763 = vmatprep.subr.mxu0 0.0
    %4764 = vmatpush1.msra.mxu0 0.0
    %4765 = vmatprep.subr.mxu0 0.0
    %4766 = vmatpush1.msra.mxu0 0.0
    %4767 = vmatprep.subr.mxu0 0.0
    %4768 = vmatpush1.msra.mxu0 0.0
    %4769 = vmatprep.subr.mxu0 0.0
    %4770 = vmatpush1.msra.mxu0 0.0
    %4771 = vmatprep.subr.mxu0 0.0
    %4772 = vmatpush1.msra.mxu0 0.0
    %4773 = vmatprep.subr.mxu0 0.0
    %4774 = vmatpush1.msra.mxu0 0.0
    %4775 = vmatprep.subr.mxu0 0.0
    %4776 = vmatpush1.msra.mxu0 0.0
    %4777 = vmatprep.subr.mxu0 0.0
    %4778 = vmatpush1.msra.mxu0 0.0
    %4779 = vmatprep.subr.mxu0 0.0
    %4780 = vmatpush1.msra.mxu0 0.0
    %4781 = vmatprep.subr.mxu0 0.0
    %4782 = vmatpush1.msra.mxu0 0.0
    %4783 = vmatprep.subr.mxu0 0.0
    %4784 = vmatpush1.msra.mxu0 0.0
    %4785 = vmatprep.subr.mxu0 0.0
    %4786 = vmatpush1.msra.mxu0 0.0
    %4787 = vmatprep.mubr.f32.mxu0 0.0
    %4788 = vmatmul.mubr.f32.gmra.mrb[0].mxu0 %v4338
    %v4789 = vpop.f32.mrb[0].mxu0
    %v4790 = vadd.f32 %v866, %v4789
    %v4791 = vpop.f32.mrb[0].mxu0
    %v4792 = vadd.f32 %v870, %v4791
    %4793 = vdwg.mxu0
    %4794 = vmatprep.subr.mxu0 0.0
    %4795 = vmatpush1.msra.mxu0 %v815
    %4796 = vmatprep.subr.mxu0 0.0
    %4797 = vmatpush1.msra.mxu0 %v818
    %4798 = vmatprep.subr.mxu0 0.0
    %4799 = vmatpush1.msra.mxu0 %v821
    %4800 = vmatprep.subr.mxu0 0.0
    %4801 = vmatpush1.msra.mxu0 %v824
    %4802 = vmatprep.subr.mxu0 0.0
    %4803 = vmatpush1.msra.mxu0 %v827
    %4804 = vmatprep.subr.mxu0 0.0
    %4805 = vmatpush1.msra.mxu0 %v830
    %4806 = vmatprep.subr.mxu0 0.0
    %4807 = vmatpush1.msra.mxu0 %v833
    %4808 = vmatprep.subr.mxu0 0.0
    %4809 = vmatpush1.msra.mxu0 %v836
    %4810 = vmatprep.subr.mxu0 0.0
    %4811 = vmatpush1.msra.mxu0 %v839
    %4812 = vmatprep.subr.mxu0 0.0
    %4813 = vmatpush1.msra.mxu0 %v842
    %4814 = vmatprep.subr.mxu0 0.0
    %4815 = vmatpush1.msra.mxu0 %v845
    %4816 = vmatprep.subr.mxu0 0.0
    %4817 = vmatpush1.msra.mxu0 %v848
    %4818 = vmatprep.subr.mxu0 0.0
    %4819 = vmatpush1.msra.mxu0 %v851
    %4820 = vmatprep.subr.mxu0 0.0
    %4821 = vmatpush1.msra.mxu0 %v854
    %4822 = vmatprep.subr.mxu0 0.0
    %4823 = vmatpush1.msra.mxu0 %v857
    %4824 = vmatprep.subr.mxu0 0.0
    %4825 = vmatpush1.msra.mxu0 %v860
    %4826 = vmatprep.subr.mxu0 0.0
    %4827 = vmatpush1.msra.mxu0 0.0
    %4828 = vmatprep.subr.mxu0 0.0
    %4829 = vmatpush1.msra.mxu0 0.0
    %4830 = vmatprep.subr.mxu0 0.0
    %4831 = vmatpush1.msra.mxu0 0.0
    %4832 = vmatprep.subr.mxu0 0.0
    %4833 = vmatpush1.msra.mxu0 0.0
    %4834 = vmatprep.subr.mxu0 0.0
    %4835 = vmatpush1.msra.mxu0 0.0
    %4836 = vmatprep.subr.mxu0 0.0
    %4837 = vmatpush1.msra.mxu0 0.0
    %4838 = vmatprep.subr.mxu0 0.0
    %4839 = vmatpush1.msra.mxu0 0.0
    %4840 = vmatprep.subr.mxu0 0.0
    %4841 = vmatpush1.msra.mxu0 0.0
    %4842 = vmatprep.subr.mxu0 0.0
    %4843 = vmatpush1.msra.mxu0 0.0
    %4844 = vmatprep.subr.mxu0 0.0
    %4845 = vmatpush1.msra.mxu0 0.0
    %4846 = vmatprep.subr.mxu0 0.0
    %4847 = vmatpush1.msra.mxu0 0.0
    %4848 = vmatprep.subr.mxu0 0.0
    %4849 = vmatpush1.msra.mxu0 0.0
    %4850 = vmatprep.subr.mxu0 0.0
    %4851 = vmatpush1.msra.mxu0 0.0
    %4852 = vmatprep.subr.mxu0 0.0
    %4853 = vmatpush1.msra.mxu0 0.0
    %4854 = vmatprep.subr.mxu0 0.0
    %4855 = vmatpush1.msra.mxu0 0.0
    %4856 = vmatprep.subr.mxu0 0.0
    %4857 = vmatpush1.msra.mxu0 0.0
    %4858 = vmatprep.mubr.f32.mxu0 0.0
    %4859 = vmatmul.mubr.f32.gmra.mrb[0].mxu0 %v4338
    %v4860 = vpop.f32.mrb[0].mxu0
    %v4861 = vadd.f32 %v874, %v4860
    %v4862 = vpop.f32.mrb[0].mxu0
    %4863 = vdwg.mxu0
    %v4864 = vadd.f32 %v4649, %v4790
    %v4865 = vadd.f32 %v4651, %v4792
    %v4866 = vxor.u32 %v4864, 2147483648
    %v4867 = vxor.u32 %v4865, 2147483648
    %v4868 = vmul.f32 %v4866, 1.442695
    %v4869 = vpow.pop %v4868
    %v4870 = vmul.f32 %v4867, 1.442695
    %v4871 = vpow.pop %v4870
    %v4872 = vadd.f32 %v4869, 1.0
    %v4873 = vadd.f32 %v4871, 1.0
    %v4874 = vrcp.pop %v4872
    %v4875 = vmul.f32 1.0, %v4874
    %v4876 = vrcp.pop %v4873
    %v4877 = vmul.f32 1.0, %v4876
    %v4878 = vmul.f32 %v4875, %v4861
    %v4879 = vadd.f32 %v4720, %v4878
    %v4880 = vtanh.pop %v4879
    %v4881 = vsub.f32 1.0, %v4877
    %v4882 = vmul.f32 %v4881, %v4880
    %v4883 = vmul.f32 %v4877, %v4338
    %v4884 = vadd.f32 %v4882, %v4883
    %4885 = vmatprep.subr.mxu0 0.0
    %4886 = vmatpush1.msra.mxu0 %v1040
    %4887 = vmatprep.subr.mxu0 0.0
    %4888 = vmatpush1.msra.mxu0 %v1041
    %4889 = vmatprep.subr.mxu0 0.0
    %4890 = vmatpush1.msra.mxu0 %v1042
    %4891 = vmatprep.subr.mxu0 0.0
    %4892 = vmatpush1.msra.mxu0 %v1043
    %4893 = vmatprep.subr.mxu0 0.0
    %4894 = vmatpush1.msra.mxu0 %v1044
    %4895 = vmatprep.subr.mxu0 0.0
    %4896 = vmatpush1.msra.mxu0 %v1045
    %4897 = vmatprep.subr.mxu0 0.0
    %4898 = vmatpush1.msra.mxu0 %v1046
    %4899 = vmatprep.subr.mxu0 0.0
    %4900 = vmatpush1.msra.mxu0 %v1047
    %4901 = vmatprep.subr.mxu0 0.0
    %4902 = vmatpush1.msra.mxu0 %v1048
    %4903 = vmatprep.subr.mxu0 0.0
    %4904 = vmatpush1.msra.mxu0 %v1049
    %4905 = vmatprep.subr.mxu0 0.0
    %4906 = vmatpush1.msra.mxu0 %v1050
    %4907 = vmatprep.subr.mxu0 0.0
    %4908 = vmatpush1.msra.mxu0 %v1051
    %4909 = vmatprep.subr.mxu0 0.0
    %4910 = vmatpush1.msra.mxu0 %v1052
    %4911 = vmatprep.subr.mxu0 0.0
    %4912 = vmatpush1.msra.mxu0 %v1053
    %4913 = vmatprep.subr.mxu0 0.0
    %4914 = vmatpush1.msra.mxu0 %v1054
    %4915 = vmatprep.subr.mxu0 0.0
    %4916 = vmatpush1.msra.mxu0 %v1055
    %4917 = vmatprep.subr.mxu0 0.0
    %4918 = vmatpush1.msra.mxu0 0.0
    %4919 = vmatprep.subr.mxu0 0.0
    %4920 = vmatpush1.msra.mxu0 0.0
    %4921 = vmatprep.subr.mxu0 0.0
    %4922 = vmatpush1.msra.mxu0 0.0
    %4923 = vmatprep.subr.mxu0 0.0
    %4924 = vmatpush1.msra.mxu0 0.0
    %4925 = vmatprep.subr.mxu0 0.0
    %4926 = vmatpush1.msra.mxu0 0.0
    %4927 = vmatprep.subr.mxu0 0.0
    %4928 = vmatpush1.msra.mxu0 0.0
    %4929 = vmatprep.subr.mxu0 0.0
    %4930 = vmatpush1.msra.mxu0 0.0
    %4931 = vmatprep.subr.mxu0 0.0
    %4932 = vmatpush1.msra.mxu0 0.0
    %4933 = vmatprep.subr.mxu0 0.0
    %4934 = vmatpush1.msra.mxu0 0.0
    %4935 = vmatprep.subr.mxu0 0.0
    %4936 = vmatpush1.msra.mxu0 0.0
    %4937 = vmatprep.subr.mxu0 0.0
    %4938 = vmatpush1.msra.mxu0 0.0
    %4939 = vmatprep.subr.mxu0 0.0
    %4940 = vmatpush1.msra.mxu0 0.0
    %4941 = vmatprep.subr.mxu0 0.0
    %4942 = vmatpush1.msra.mxu0 0.0
    %4943 = vmatprep.subr.mxu0 0.0
    %4944 = vmatpush1.msra.mxu0 0.0
    %4945 = vmatprep.subr.mxu0 0.0
    %4946 = vmatpush1.msra.mxu0 0.0
    %4947 = vmatprep.subr.mxu0 0.0
    %4948 = vmatpush1.msra.mxu0 0.0
    %4949 = vmatprep.mubr.f32.mxu0 0.0
    %4950 = vmatmul.mubr.f32.gmra.mrb[0].mxu0 %v4884
    %v4951 = vpop.f32.mrb[0].mxu0
    %v4952 = vadd.f32 %v1061, %v4951
    %v4953 = vpop.f32.mrb[0].mxu0
    %4954 = vdwg.mxu0
    %v4955 = vmax.f32 %v4952, 0.0
    %s4956 = sld [smem:[#allocation4 + $0x7]]
    %v4957 = vstv %s4956
    %v4958 = vmul.f32 %v4955, %v4957
    %v4959 = vadd.f32 %v4413, %v4958
    %s4960 = sld [smem:[#allocation3]]
    %v4961 = vstv %s4960
    %v4962 = vadd.f32 %v4959, %v4961
    %v4963 = vmax.f32 %v4962, 0.0
    %4964 = vst [vmem:[%s13] sm:$0xff] %v4963
    // Predicated region
    $region58: #{grunet_forward.1} parent=1 // pred_check
      _
    $region59: #{grunet_forward.1} parent=1 // pred_check_branch
      %4966 = sbr.rel (0) target = $region61
    $region60: #{grunet_forward.1} parent=1 // pred_region
      _
    $region61: #{grunet_forward.1} parent=1 // pred_fallthru
      _
    // Predicated region
    $region62: #{grunet_forward.1} parent=1 // pred_check
      _
    $region63: #{grunet_forward.1} parent=1 // pred_check_branch
      %4968 = sbr.rel (0) target = $region65
    $region64: #{grunet_forward.1} parent=1 // pred_region
      _
    $region65: #{grunet_forward.1} parent=1 // pred_fallthru
      _
    %4969 = vsyncpa [#allocation5], 1

</llo_original>
